<compile_context>
chip_gen: v7x
topology: tpu7x:2x2x1
jax: 0.10.0
libtpu: 0.0.40
codegen_flags: <defaults>
</compile_context>

<pallas_src>
import functools

import jax
import jax.numpy as jnp
from jax.experimental import pallas as pl
from jax.experimental.pallas import tpu as pltpu


# ----------------------------- Pallas kernel --------------------------------
def cross_attn_layer_kernel(
    q_ref, k_ref,                       # (1, TN, C) f32, (1, M, C) f32
    wq_ref, wk_ref, wv_ref,             # (C, C) bf16, pre-transposed (in, out)
    wp_ref, bp_ref,                     # (C, C) bf16 (in, out), (1, C) f32
    gamma_ref, beta_ref,                # (1, C) f32, (1, C) f32
    w1_ref, b1_ref,                     # (C, 2C) bf16 (in, out), (1, 2C) f32
    w2_ref, b2_ref,                     # (2C, C) bf16 (in, out), (1, C) f32
    out_ref,                            # (1, TN, C)
    *, num_heads: int,
):
    f32 = jnp.float32
    bf16 = jnp.bfloat16

    q = q_ref[0]                        # (TN, C) f32 (residual path stays f32)
    k = k_ref[0]                        # (M, C)  f32; v = k (module default)

    TN, C = q.shape
    M = k.shape[0]
    H = num_heads
    hd = C // H
    scale = hd ** (-0.5)

    # Hoisted constant loads (weights already transposed + bf16 in the wrapper).
    wq = wq_ref[...]; wk = wk_ref[...]; wv = wv_ref[...]
    wp = wp_ref[...]; w1 = w1_ref[...]; w2 = w2_ref[...]
    bp = bp_ref[...]                    # (1, C)  f32
    gamma = gamma_ref[...]              # (1, C)  f32
    beta = beta_ref[...]                # (1, C)  f32
    b1 = b1_ref[...]                    # (1, 2C) f32
    b2 = b2_ref[...]                    # (1, C)  f32

    # --- q/k/v projections (bias-free): bf16 operands, f32 accumulation ---
    q_bf = q.astype(bf16)
    k_bf = k.astype(bf16)
    # Fold the softmax scale into the projected queries.
    qp = jnp.dot(q_bf, wq, preferred_element_type=f32) * scale   # (TN, C) f32
    kp = jnp.dot(k_bf, wk, preferred_element_type=f32)           # (M, C)  f32
    vp = jnp.dot(k_bf, wv, preferred_element_type=f32)           # (M, C)  f32

    qp_bf = qp.astype(bf16)
    kp_bf = kp.astype(bf16)
    vp_bf = vp.astype(bf16)

    # --- per-head attention: 2-D matmuls on static lane slices, no relayouts
    o_heads = []
    for h in range(H):
        lo, hi = h * hd, (h + 1) * hd
        qh = qp_bf[:, lo:hi]            # (TN, hd) bf16
        kh = kp_bf[:, lo:hi]            # (M, hd)  bf16
        vh = vp_bf[:, lo:hi]            # (M, hd)  bf16
        # q @ k^T without an explicit transpose: contract dim 1 of both.
        s = jax.lax.dot_general(qh, kh, (((1,), (1,)), ((), ())),
                                preferred_element_type=f32)      # (TN, M) f32
        s_max = jnp.max(s, axis=-1, keepdims=True)
        p = jnp.exp(s - s_max)
        inv = pl.reciprocal(jnp.sum(p, axis=-1, keepdims=True), approx=True)
        p_bf = (p * inv).astype(bf16)
        o_heads.append(jnp.dot(p_bf, vh, preferred_element_type=f32))  # (TN, hd)
    o = jnp.concatenate(o_heads, axis=-1)                        # (TN, C) f32

    # --- output projection (bias) + first residual (f32) ---
    x = jnp.dot(o.astype(bf16), wp, preferred_element_type=f32) + bp
    q1 = q + x                                                   # (TN, C) f32

    # --- LayerNorm(d_model), eps = 1e-5 (f32) ---
    mean = jnp.mean(q1, axis=-1, keepdims=True)
    cen = q1 - mean
    var = jnp.mean(cen * cen, axis=-1, keepdims=True)
    ln = cen * jax.lax.rsqrt(var + 1e-5) * gamma + beta

    # --- MLP: Linear(C, 2C) -> QuickGELU -> Linear(2C, C) ---
    hmid = jnp.dot(ln.astype(bf16), w1, preferred_element_type=f32) + b1  # (TN, 2C)
    g = hmid * jax.nn.sigmoid(1.702 * hmid)
    y = jnp.dot(g.astype(bf16), w2, preferred_element_type=f32) + b2      # (TN, C)

    # --- second residual (dropouts are identity in eval) ---
    out_ref[0] = (q1 + y).astype(out_ref.dtype)


# ------------------------------ wrapper --------------------------------------
def cross_attention_layer(q, k, params, num_heads, tile_n=None):
    """q: (B, N, C), k: (B, M, C); v is taken equal to k (module default).
    Params are PyTorch-layout: Linear weights (out, in), biases/LN as (1, d)."""
    B, N, C = q.shape
    _, M, _ = k.shape

    if tile_n is None:
        # Tile large query sequences; a small N stays one full block (legal
        # because the block shape then equals the array dims).
        tile_n = 256 if (N % 256 == 0 and C % 128 == 0) else N
    assert N % tile_n == 0, "query length must be divisible by tile_n"
    n_tiles = N // tile_n

    bf16, f32 = jnp.bfloat16, jnp.float32
    # One-time host/XLA-side prep: transpose Linear weights to (in, out) and
    # cast MXU operands to bf16. Biases / LayerNorm affine stay f32.
    wq_t = params["wq"].T.astype(bf16)
    wk_t = params["wk"].T.astype(bf16)
    wv_t = params["wv"].T.astype(bf16)
    wp_t = params["wp"].T.astype(bf16)
    w1_t = params["w1"].T.astype(bf16)      # (C, 2C)
    w2_t = params["w2"].T.astype(bf16)      # (2C, C)
    bp = params["bp"].astype(f32)
    gamma = params["gamma"].astype(f32)
    beta = params["beta"].astype(f32)
    b1 = params["b1"].astype(f32)
    b2 = params["b2"].astype(f32)

    kernel = functools.partial(cross_attn_layer_kernel, num_heads=num_heads)

    def run(single_buffer_consts: bool):
        def const_spec(*shape):
            idx = lambda b, n: (0,) * len(shape)
            if single_buffer_consts:
                # Constant index_map => no need for double buffering.
                return pl.BlockSpec(shape, idx,
                                    pipeline_mode=pl.Buffered(buffer_count=1))
            return pl.BlockSpec(shape, idx)

        grid_spec = pltpu.PrefetchScalarGridSpec(
            num_scalar_prefetch=0,
            grid=(B, n_tiles),
            in_specs=[
                pl.BlockSpec((1, tile_n, C), lambda b, n: (b, n, 0)),   # q
                pl.BlockSpec((1, M, C), lambda b, n: (b, 0, 0)),        # k (=v)
                const_spec(C, C),            # wq^T
                const_spec(C, C),            # wk^T
                const_spec(C, C),            # wv^T
                const_spec(C, C),            # wp^T
                const_spec(1, C),            # proj bias
                const_spec(1, C),            # ln gamma
                const_spec(1, C),            # ln beta
                const_spec(C, 2 * C),        # mlp w1^T
                const_spec(1, 2 * C),        # mlp b1
                const_spec(2 * C, C),        # mlp w2^T
                const_spec(1, C),            # mlp b2
            ],
            out_specs=pl.BlockSpec((1, tile_n, C), lambda b, n: (b, n, 0)),
        )
        return pl.pallas_call(
            kernel,
            out_shape=jax.ShapeDtypeStruct((B, N, C), q.dtype),
            grid_spec=grid_spec,
            compiler_params=pltpu.CompilerParams(
                dimension_semantics=("parallel", "parallel"),
                vmem_limit_bytes=48 * 1024 * 1024,
            ),
        )(q, k, wq_t, wk_t, wv_t, wp_t, bp, gamma, beta, w1_t, b1, w2_t, b2)

    try:
        return run(True)
    except Exception:
        # Graceful fallback if this Pallas build does not honor per-BlockSpec
        # pipeline_mode; everything else is unchanged.
        return run(False)


# ---------------------- pure-JAX reference (for checking) --------------------
def cross_attention_layer_ref(q, k, params, num_heads):
    B, N, C = q.shape
    M = k.shape[1]
    H, hd = num_heads, C // num_heads
    scale = hd ** (-0.5)
    v = k

    qp = q @ params["wq"].T
    kp = k @ params["wk"].T
    vp = v @ params["wv"].T
    qh = qp.reshape(B, N, H, hd).transpose(0, 2, 1, 3)
    kh = kp.reshape(B, M, H, hd).transpose(0, 2, 1, 3)
    vh = vp.reshape(B, M, H, hd).transpose(0, 2, 1, 3)
    attn = jnp.einsum('bhnd,bhmd->bhnm', qh, kh) * scale
    attn = jax.nn.softmax(attn, axis=-1)
    o = jnp.einsum('bhnm,bhmd->bhnd', attn, vh).transpose(0, 2, 1, 3).reshape(B, N, C)
    x = o @ params["wp"].T + params["bp"][0]
    q1 = q + x

    mean = jnp.mean(q1, axis=-1, keepdims=True)
    var = jnp.mean((q1 - mean) ** 2, axis=-1, keepdims=True)
    ln = (q1 - mean) / jnp.sqrt(var + 1e-5) * params["gamma"][0] + params["beta"][0]
    h = ln @ params["w1"].T + params["b1"][0]
    g = h * jax.nn.sigmoid(1.702 * h)
    y = g @ params["w2"].T + params["b2"][0]
    return q1 + y


# --------------------------------- main --------------------------------------
if __name__ == "__main__":
    B, N, M, C, H = 2, 8, 8, 32, 4   # d_model=32, nhead=4

    key = jax.random.PRNGKey(0)
    keys = jax.random.split(key, 11)

    def init(kk, shape, s=0.1):
        return (s * jax.random.normal(kk, shape)).astype(jnp.float32)

    params = {
        "wq": init(keys[0], (C, C)),
        "wk": init(keys[1], (C, C)),
        "wv": init(keys[2], (C, C)),
        "wp": init(keys[3], (C, C)),
        "bp": init(keys[4], (1, C)),
        "gamma": jnp.ones((1, C), jnp.float32),
        "beta": jnp.zeros((1, C), jnp.float32),
        "w1": init(keys[5], (2 * C, C)),
        "b1": init(keys[6], (1, 2 * C)),
        "w2": init(keys[7], (C, 2 * C)),
        "b2": init(keys[8], (1, C)),
    }

    q = jax.random.normal(keys[9], (B, N, C), jnp.float32)
    k = jax.random.normal(keys[10], (B, M, C), jnp.float32)

    out = cross_attention_layer(q, k, params, num_heads=H)
    out = jax.block_until_ready(out)

    ref = cross_attention_layer_ref(q, k, params, num_heads=H)
    assert out.shape == (B, N, C)
    # Kernel uses bf16 MXU operands (f32 accumulation); reference is all-f32.
    assert jnp.allclose(out, ref, atol=2e-2, rtol=2e-2), "mismatch vs reference"

    print("KERNEL_OK")
</pallas_src>

<mosaic_0001>
module attributes {stable_mosaic.version = 11 : i64} {
  func.func @cross_attn_layer_kernel(%arg0: i32, %arg1: i32, %arg2: memref<1x8x32xf32, #tpu.memory_space<vmem>>, %arg3: memref<1x8x32xf32, #tpu.memory_space<vmem>>, %arg4: memref<32x32xbf16, #tpu.memory_space<vmem>>, %arg5: memref<32x32xbf16, #tpu.memory_space<vmem>>, %arg6: memref<32x32xbf16, #tpu.memory_space<vmem>>, %arg7: memref<32x32xbf16, #tpu.memory_space<vmem>>, %arg8: memref<1x32xf32, #tpu.memory_space<vmem>>, %arg9: memref<1x32xf32, #tpu.memory_space<vmem>>, %arg10: memref<1x32xf32, #tpu.memory_space<vmem>>, %arg11: memref<32x64xbf16, #tpu.memory_space<vmem>>, %arg12: memref<1x64xf32, #tpu.memory_space<vmem>>, %arg13: memref<64x32xbf16, #tpu.memory_space<vmem>>, %arg14: memref<1x32xf32, #tpu.memory_space<vmem>>, %arg15: memref<1x8x32xf32, #tpu.memory_space<vmem>>) attributes {dimension_semantics = [#tpu.dimension_semantics<parallel>, #tpu.dimension_semantics<parallel>], iteration_bounds = array<i64: 2, 1>, scalar_prefetch = 0 : i64, scratch_operands = 0 : i64, tpu.core_type = #tpu.core_type<tc>, window_params = [{transform_indices = @transform_0, window_bounds = array<i64: 1, 8, 32>}, {transform_indices = @transform_1, window_bounds = array<i64: 1, 8, 32>}, {pipeline_mode = #tpu.pipeline_mode<synchronous>, transform_indices = @transform_2, window_bounds = array<i64: 32, 32>}, {pipeline_mode = #tpu.pipeline_mode<synchronous>, transform_indices = @transform_3, window_bounds = array<i64: 32, 32>}, {pipeline_mode = #tpu.pipeline_mode<synchronous>, transform_indices = @transform_4, window_bounds = array<i64: 32, 32>}, {pipeline_mode = #tpu.pipeline_mode<synchronous>, transform_indices = @transform_5, window_bounds = array<i64: 32, 32>}, {pipeline_mode = #tpu.pipeline_mode<synchronous>, transform_indices = @transform_6, window_bounds = array<i64: 1, 32>}, {pipeline_mode = #tpu.pipeline_mode<synchronous>, transform_indices = @transform_7, window_bounds = array<i64: 1, 32>}, {pipeline_mode = #tpu.pipeline_mode<synchronous>, transform_indices = @transform_8, window_bounds = array<i64: 1, 32>}, {pipeline_mode = #tpu.pipeline_mode<synchronous>, transform_indices = @transform_9, window_bounds = array<i64: 32, 64>}, {pipeline_mode = #tpu.pipeline_mode<synchronous>, transform_indices = @transform_10, window_bounds = array<i64: 1, 64>}, {pipeline_mode = #tpu.pipeline_mode<synchronous>, transform_indices = @transform_11, window_bounds = array<i64: 64, 32>}, {pipeline_mode = #tpu.pipeline_mode<synchronous>, transform_indices = @transform_12, window_bounds = array<i64: 1, 32>}, {transform_indices = @transform_13, window_bounds = array<i64: 1, 8, 32>}]} {
    %c0 = arith.constant 0 : index
    %c0_0 = arith.constant 0 : index
    %c0_1 = arith.constant 0 : index
    %0 = vector.load %arg2[%c0, %c0_0, %c0_1] : memref<1x8x32xf32, #tpu.memory_space<vmem>>, vector<1x8x32xf32>
    %1 = vector.shape_cast %0 : vector<1x8x32xf32> to vector<8x32xf32>
    %c0_2 = arith.constant 0 : index
    %c0_3 = arith.constant 0 : index
    %c0_4 = arith.constant 0 : index
    %2 = vector.load %arg3[%c0_2, %c0_3, %c0_4] : memref<1x8x32xf32, #tpu.memory_space<vmem>>, vector<1x8x32xf32>
    %3 = vector.shape_cast %2 : vector<1x8x32xf32> to vector<8x32xf32>
    %c0_5 = arith.constant 0 : index
    %c0_6 = arith.constant 0 : index
    %4 = vector.load %arg4[%c0_5, %c0_6] : memref<32x32xbf16, #tpu.memory_space<vmem>>, vector<32x32xbf16>
    %c0_7 = arith.constant 0 : index
    %c0_8 = arith.constant 0 : index
    %5 = vector.load %arg5[%c0_7, %c0_8] : memref<32x32xbf16, #tpu.memory_space<vmem>>, vector<32x32xbf16>
    %c0_9 = arith.constant 0 : index
    %c0_10 = arith.constant 0 : index
    %6 = vector.load %arg6[%c0_9, %c0_10] : memref<32x32xbf16, #tpu.memory_space<vmem>>, vector<32x32xbf16>
    %c0_11 = arith.constant 0 : index
    %c0_12 = arith.constant 0 : index
    %7 = vector.load %arg7[%c0_11, %c0_12] : memref<32x32xbf16, #tpu.memory_space<vmem>>, vector<32x32xbf16>
    %c0_13 = arith.constant 0 : index
    %c0_14 = arith.constant 0 : index
    %8 = vector.load %arg11[%c0_13, %c0_14] : memref<32x64xbf16, #tpu.memory_space<vmem>>, vector<32x64xbf16>
    %c0_15 = arith.constant 0 : index
    %c0_16 = arith.constant 0 : index
    %9 = vector.load %arg13[%c0_15, %c0_16] : memref<64x32xbf16, #tpu.memory_space<vmem>>, vector<64x32xbf16>
    %c0_17 = arith.constant 0 : index
    %c0_18 = arith.constant 0 : index
    %10 = vector.load %arg8[%c0_17, %c0_18] : memref<1x32xf32, #tpu.memory_space<vmem>>, vector<1x32xf32>
    %c0_19 = arith.constant 0 : index
    %c0_20 = arith.constant 0 : index
    %11 = vector.load %arg9[%c0_19, %c0_20] : memref<1x32xf32, #tpu.memory_space<vmem>>, vector<1x32xf32>
    %c0_21 = arith.constant 0 : index
    %c0_22 = arith.constant 0 : index
    %12 = vector.load %arg10[%c0_21, %c0_22] : memref<1x32xf32, #tpu.memory_space<vmem>>, vector<1x32xf32>
    %c0_23 = arith.constant 0 : index
    %c0_24 = arith.constant 0 : index
    %13 = vector.load %arg12[%c0_23, %c0_24] : memref<1x64xf32, #tpu.memory_space<vmem>>, vector<1x64xf32>
    %c0_25 = arith.constant 0 : index
    %c0_26 = arith.constant 0 : index
    %14 = vector.load %arg14[%c0_25, %c0_26] : memref<1x32xf32, #tpu.memory_space<vmem>>, vector<1x32xf32>
    %15 = arith.truncf %1 : vector<8x32xf32> to vector<8x32xbf16>
    %16 = arith.truncf %3 : vector<8x32xf32> to vector<8x32xbf16>
    %cst = arith.constant dense<0.000000e+00> : vector<8x32xf32>
    %17 = tpu.matmul %15, %4, %cst {dimension_numbers = #tpu.dot_dimension_numbers<[1], [0], [0], [1], [0, 0, 1, 1], [], []>} : vector<8x32xbf16>, vector<32x32xbf16>, vector<8x32xf32> -> vector<8x32xf32>
    %cst_27 = arith.constant 0.353553385 : f32
    %18 = vector.broadcast %cst_27 : f32 to vector<8x32xf32>
    %19 = arith.mulf %17, %18 : vector<8x32xf32>
    %cst_28 = arith.constant dense<0.000000e+00> : vector<8x32xf32>
    %20 = tpu.matmul %16, %5, %cst_28 {dimension_numbers = #tpu.dot_dimension_numbers<[1], [0], [0], [1], [0, 0, 1, 1], [], []>} : vector<8x32xbf16>, vector<32x32xbf16>, vector<8x32xf32> -> vector<8x32xf32>
    %cst_29 = arith.constant dense<0.000000e+00> : vector<8x32xf32>
    %21 = tpu.matmul %16, %6, %cst_29 {dimension_numbers = #tpu.dot_dimension_numbers<[1], [0], [0], [1], [0, 0, 1, 1], [], []>} : vector<8x32xbf16>, vector<32x32xbf16>, vector<8x32xf32> -> vector<8x32xf32>
    %22 = arith.truncf %19 : vector<8x32xf32> to vector<8x32xbf16>
    %23 = arith.truncf %20 : vector<8x32xf32> to vector<8x32xbf16>
    %24 = arith.truncf %21 : vector<8x32xf32> to vector<8x32xbf16>
    %25 = vector.extract_strided_slice %22 {offsets = [0, 0], sizes = [8, 8], strides = [1, 1]} : vector<8x32xbf16> to vector<8x8xbf16>
    %26 = vector.extract_strided_slice %23 {offsets = [0, 0], sizes = [8, 8], strides = [1, 1]} : vector<8x32xbf16> to vector<8x8xbf16>
    %27 = vector.extract_strided_slice %24 {offsets = [0, 0], sizes = [8, 8], strides = [1, 1]} : vector<8x32xbf16> to vector<8x8xbf16>
    %cst_30 = arith.constant dense<0.000000e+00> : vector<8x8xf32>
    %28 = tpu.matmul %25, %26, %cst_30 {dimension_numbers = #tpu.dot_dimension_numbers<[1], [1], [0], [0], [0, 0, 1, 0], [], []>} : vector<8x8xbf16>, vector<8x8xbf16>, vector<8x8xf32> -> vector<8x8xf32>
    %cst_31 = arith.constant dense<0xFF800000> : vector<8xf32>
    %29 = vector.multi_reduction <maximumf>, %28, %cst_31 [1] : vector<8x8xf32> to vector<8xf32>
    %30 = vector.shape_cast %29 : vector<8xf32> to vector<8x1xf32>
    %31 = vector.broadcast %30 : vector<8x1xf32> to vector<8x8xf32>
    %32 = arith.subf %28, %31 : vector<8x8xf32>
    %33 = math.exp %32 : vector<8x8xf32>
    %cst_32 = arith.constant dense<0.000000e+00> : vector<8xf32>
    %34 = vector.multi_reduction <add>, %33, %cst_32 [1] : vector<8x8xf32> to vector<8xf32>
    %35 = vector.shape_cast %34 : vector<8xf32> to vector<8x1xf32>
    %36 = tpu.reciprocal %35 {approx = true} : vector<8x1xf32> -> vector<8x1xf32>
    %37 = vector.broadcast %36 : vector<8x1xf32> to vector<8x8xf32>
    %38 = arith.mulf %33, %37 : vector<8x8xf32>
    %39 = arith.truncf %38 : vector<8x8xf32> to vector<8x8xbf16>
    %cst_33 = arith.constant dense<0.000000e+00> : vector<8x8xf32>
    %40 = tpu.matmul %39, %27, %cst_33 {dimension_numbers = #tpu.dot_dimension_numbers<[1], [0], [0], [1], [0, 0, 1, 1], [], []>} : vector<8x8xbf16>, vector<8x8xbf16>, vector<8x8xf32> -> vector<8x8xf32>
    %41 = vector.extract_strided_slice %22 {offsets = [0, 8], sizes = [8, 8], strides = [1, 1]} : vector<8x32xbf16> to vector<8x8xbf16>
    %42 = vector.extract_strided_slice %23 {offsets = [0, 8], sizes = [8, 8], strides = [1, 1]} : vector<8x32xbf16> to vector<8x8xbf16>
    %43 = vector.extract_strided_slice %24 {offsets = [0, 8], sizes = [8, 8], strides = [1, 1]} : vector<8x32xbf16> to vector<8x8xbf16>
    %cst_34 = arith.constant dense<0.000000e+00> : vector<8x8xf32>
    %44 = tpu.matmul %41, %42, %cst_34 {dimension_numbers = #tpu.dot_dimension_numbers<[1], [1], [0], [0], [0, 0, 1, 0], [], []>} : vector<8x8xbf16>, vector<8x8xbf16>, vector<8x8xf32> -> vector<8x8xf32>
    %cst_35 = arith.constant dense<0xFF800000> : vector<8xf32>
    %45 = vector.multi_reduction <maximumf>, %44, %cst_35 [1] : vector<8x8xf32> to vector<8xf32>
    %46 = vector.shape_cast %45 : vector<8xf32> to vector<8x1xf32>
    %47 = vector.broadcast %46 : vector<8x1xf32> to vector<8x8xf32>
    %48 = arith.subf %44, %47 : vector<8x8xf32>
    %49 = math.exp %48 : vector<8x8xf32>
    %cst_36 = arith.constant dense<0.000000e+00> : vector<8xf32>
    %50 = vector.multi_reduction <add>, %49, %cst_36 [1] : vector<8x8xf32> to vector<8xf32>
    %51 = vector.shape_cast %50 : vector<8xf32> to vector<8x1xf32>
    %52 = tpu.reciprocal %51 {approx = true} : vector<8x1xf32> -> vector<8x1xf32>
    %53 = vector.broadcast %52 : vector<8x1xf32> to vector<8x8xf32>
    %54 = arith.mulf %49, %53 : vector<8x8xf32>
    %55 = arith.truncf %54 : vector<8x8xf32> to vector<8x8xbf16>
    %cst_37 = arith.constant dense<0.000000e+00> : vector<8x8xf32>
    %56 = tpu.matmul %55, %43, %cst_37 {dimension_numbers = #tpu.dot_dimension_numbers<[1], [0], [0], [1], [0, 0, 1, 1], [], []>} : vector<8x8xbf16>, vector<8x8xbf16>, vector<8x8xf32> -> vector<8x8xf32>
    %57 = vector.extract_strided_slice %22 {offsets = [0, 16], sizes = [8, 8], strides = [1, 1]} : vector<8x32xbf16> to vector<8x8xbf16>
    %58 = vector.extract_strided_slice %23 {offsets = [0, 16], sizes = [8, 8], strides = [1, 1]} : vector<8x32xbf16> to vector<8x8xbf16>
    %59 = vector.extract_strided_slice %24 {offsets = [0, 16], sizes = [8, 8], strides = [1, 1]} : vector<8x32xbf16> to vector<8x8xbf16>
    %cst_38 = arith.constant dense<0.000000e+00> : vector<8x8xf32>
    %60 = tpu.matmul %57, %58, %cst_38 {dimension_numbers = #tpu.dot_dimension_numbers<[1], [1], [0], [0], [0, 0, 1, 0], [], []>} : vector<8x8xbf16>, vector<8x8xbf16>, vector<8x8xf32> -> vector<8x8xf32>
    %cst_39 = arith.constant dense<0xFF800000> : vector<8xf32>
    %61 = vector.multi_reduction <maximumf>, %60, %cst_39 [1] : vector<8x8xf32> to vector<8xf32>
    %62 = vector.shape_cast %61 : vector<8xf32> to vector<8x1xf32>
    %63 = vector.broadcast %62 : vector<8x1xf32> to vector<8x8xf32>
    %64 = arith.subf %60, %63 : vector<8x8xf32>
    %65 = math.exp %64 : vector<8x8xf32>
    %cst_40 = arith.constant dense<0.000000e+00> : vector<8xf32>
    %66 = vector.multi_reduction <add>, %65, %cst_40 [1] : vector<8x8xf32> to vector<8xf32>
    %67 = vector.shape_cast %66 : vector<8xf32> to vector<8x1xf32>
    %68 = tpu.reciprocal %67 {approx = true} : vector<8x1xf32> -> vector<8x1xf32>
    %69 = vector.broadcast %68 : vector<8x1xf32> to vector<8x8xf32>
    %70 = arith.mulf %65, %69 : vector<8x8xf32>
    %71 = arith.truncf %70 : vector<8x8xf32> to vector<8x8xbf16>
    %cst_41 = arith.constant dense<0.000000e+00> : vector<8x8xf32>
    %72 = tpu.matmul %71, %59, %cst_41 {dimension_numbers = #tpu.dot_dimension_numbers<[1], [0], [0], [1], [0, 0, 1, 1], [], []>} : vector<8x8xbf16>, vector<8x8xbf16>, vector<8x8xf32> -> vector<8x8xf32>
    %73 = vector.extract_strided_slice %22 {offsets = [0, 24], sizes = [8, 8], strides = [1, 1]} : vector<8x32xbf16> to vector<8x8xbf16>
    %74 = vector.extract_strided_slice %23 {offsets = [0, 24], sizes = [8, 8], strides = [1, 1]} : vector<8x32xbf16> to vector<8x8xbf16>
    %75 = vector.extract_strided_slice %24 {offsets = [0, 24], sizes = [8, 8], strides = [1, 1]} : vector<8x32xbf16> to vector<8x8xbf16>
    %cst_42 = arith.constant dense<0.000000e+00> : vector<8x8xf32>
    %76 = tpu.matmul %73, %74, %cst_42 {dimension_numbers = #tpu.dot_dimension_numbers<[1], [1], [0], [0], [0, 0, 1, 0], [], []>} : vector<8x8xbf16>, vector<8x8xbf16>, vector<8x8xf32> -> vector<8x8xf32>
    %cst_43 = arith.constant dense<0xFF800000> : vector<8xf32>
    %77 = vector.multi_reduction <maximumf>, %76, %cst_43 [1] : vector<8x8xf32> to vector<8xf32>
    %78 = vector.shape_cast %77 : vector<8xf32> to vector<8x1xf32>
    %79 = vector.broadcast %78 : vector<8x1xf32> to vector<8x8xf32>
    %80 = arith.subf %76, %79 : vector<8x8xf32>
    %81 = math.exp %80 : vector<8x8xf32>
    %cst_44 = arith.constant dense<0.000000e+00> : vector<8xf32>
    %82 = vector.multi_reduction <add>, %81, %cst_44 [1] : vector<8x8xf32> to vector<8xf32>
    %83 = vector.shape_cast %82 : vector<8xf32> to vector<8x1xf32>
    %84 = tpu.reciprocal %83 {approx = true} : vector<8x1xf32> -> vector<8x1xf32>
    %85 = vector.broadcast %84 : vector<8x1xf32> to vector<8x8xf32>
    %86 = arith.mulf %81, %85 : vector<8x8xf32>
    %87 = arith.truncf %86 : vector<8x8xf32> to vector<8x8xbf16>
    %cst_45 = arith.constant dense<0.000000e+00> : vector<8x8xf32>
    %88 = tpu.matmul %87, %75, %cst_45 {dimension_numbers = #tpu.dot_dimension_numbers<[1], [0], [0], [1], [0, 0, 1, 1], [], []>} : vector<8x8xbf16>, vector<8x8xbf16>, vector<8x8xf32> -> vector<8x8xf32>
    %89 = tpu.concatenate %40, %56, %72, %88 in 1 : vector<8x8xf32>, vector<8x8xf32>, vector<8x8xf32>, vector<8x8xf32> -> vector<8x32xf32>
    %90 = arith.truncf %89 : vector<8x32xf32> to vector<8x32xbf16>
    %cst_46 = arith.constant dense<0.000000e+00> : vector<8x32xf32>
    %91 = tpu.matmul %90, %7, %cst_46 {dimension_numbers = #tpu.dot_dimension_numbers<[1], [0], [0], [1], [0, 0, 1, 1], [], []>} : vector<8x32xbf16>, vector<32x32xbf16>, vector<8x32xf32> -> vector<8x32xf32>
    %92 = vector.broadcast %10 : vector<1x32xf32> to vector<8x32xf32>
    %93 = arith.addf %91, %92 : vector<8x32xf32>
    %94 = arith.addf %1, %93 : vector<8x32xf32>
    %cst_47 = arith.constant dense<0.000000e+00> : vector<8xf32>
    %95 = vector.multi_reduction <add>, %94, %cst_47 [1] : vector<8x32xf32> to vector<8xf32>
    %96 = vector.shape_cast %95 : vector<8xf32> to vector<8x1xf32>
    %cst_48 = arith.constant 3.200000e+01 : f32
    %97 = vector.broadcast %cst_48 : f32 to vector<8x1xf32>
    %98 = arith.divf %96, %97 : vector<8x1xf32>
    %99 = vector.broadcast %98 : vector<8x1xf32> to vector<8x32xf32>
    %100 = arith.subf %94, %99 : vector<8x32xf32>
    %101 = arith.mulf %100, %100 : vector<8x32xf32>
    %cst_49 = arith.constant dense<0.000000e+00> : vector<8xf32>
    %102 = vector.multi_reduction <add>, %101, %cst_49 [1] : vector<8x32xf32> to vector<8xf32>
    %103 = vector.shape_cast %102 : vector<8xf32> to vector<8x1xf32>
    %cst_50 = arith.constant 3.200000e+01 : f32
    %104 = vector.broadcast %cst_50 : f32 to vector<8x1xf32>
    %105 = arith.divf %103, %104 : vector<8x1xf32>
    %cst_51 = arith.constant 9.99999974E-6 : f32
    %106 = vector.broadcast %cst_51 : f32 to vector<8x1xf32>
    %107 = arith.addf %105, %106 : vector<8x1xf32>
    %108 = math.rsqrt %107 : vector<8x1xf32>
    %109 = vector.broadcast %108 : vector<8x1xf32> to vector<8x32xf32>
    %110 = arith.mulf %100, %109 : vector<8x32xf32>
    %111 = vector.broadcast %11 : vector<1x32xf32> to vector<8x32xf32>
    %112 = arith.mulf %110, %111 : vector<8x32xf32>
    %113 = vector.broadcast %12 : vector<1x32xf32> to vector<8x32xf32>
    %114 = arith.addf %112, %113 : vector<8x32xf32>
    %115 = arith.truncf %114 : vector<8x32xf32> to vector<8x32xbf16>
    %cst_52 = arith.constant dense<0.000000e+00> : vector<8x64xf32>
    %116 = tpu.matmul %115, %8, %cst_52 {dimension_numbers = #tpu.dot_dimension_numbers<[1], [0], [0], [1], [0, 0, 1, 1], [], []>} : vector<8x32xbf16>, vector<32x64xbf16>, vector<8x64xf32> -> vector<8x64xf32>
    %117 = vector.broadcast %13 : vector<1x64xf32> to vector<8x64xf32>
    %118 = arith.addf %116, %117 : vector<8x64xf32>
    %cst_53 = arith.constant 1.702000e+00 : f32
    %119 = vector.broadcast %cst_53 : f32 to vector<8x64xf32>
    %120 = arith.mulf %119, %118 : vector<8x64xf32>
    %121 = arith.negf %120 : vector<8x64xf32>
    %122 = math.exp %121 : vector<8x64xf32>
    %cst_54 = arith.constant 1.000000e+00 : f32
    %123 = vector.broadcast %cst_54 : f32 to vector<8x64xf32>
    %124 = arith.addf %123, %122 : vector<8x64xf32>
    %125 = arith.divf %123, %124 : vector<8x64xf32>
    %126 = arith.mulf %118, %125 : vector<8x64xf32>
    %127 = arith.truncf %126 : vector<8x64xf32> to vector<8x64xbf16>
    %cst_55 = arith.constant dense<0.000000e+00> : vector<8x32xf32>
    %128 = tpu.matmul %127, %9, %cst_55 {dimension_numbers = #tpu.dot_dimension_numbers<[1], [0], [0], [1], [0, 0, 1, 1], [], []>} : vector<8x64xbf16>, vector<64x32xbf16>, vector<8x32xf32> -> vector<8x32xf32>
    %129 = vector.broadcast %14 : vector<1x32xf32> to vector<8x32xf32>
    %130 = arith.addf %128, %129 : vector<8x32xf32>
    %131 = arith.addf %94, %130 : vector<8x32xf32>
    %c0_56 = arith.constant 0 : index
    %c0_57 = arith.constant 0 : index
    %c0_58 = arith.constant 0 : index
    %132 = vector.load %arg15[%c0_56, %c0_57, %c0_58] : memref<1x8x32xf32, #tpu.memory_space<vmem>>, vector<1x8x32xf32>
    %133 = vector.shape_cast %132 : vector<1x8x32xf32> to vector<8x32xf32>
    %134 = vector.shape_cast %131 : vector<8x32xf32> to vector<1x8x32xf32>
    tpu.vector_store %arg15[%c0_56, %c0_57, %c0_58], %134 {strides = array<i32>} : memref<1x8x32xf32, #tpu.memory_space<vmem>>, vector<1x8x32xf32>,
    return
  }
  func.func @transform_0(%arg0: i32, %arg1: i32) -> (i32, i32, i32) {
    %c0_i32 = arith.constant 0 : i32
    %c0_i32_0 = arith.constant 0 : i32
    return %arg0, %arg1, %c0_i32 : i32, i32, i32
  }
  func.func @transform_1(%arg0: i32, %arg1: i32) -> (i32, i32, i32) {
    %c0_i32 = arith.constant 0 : i32
    %c0_i32_0 = arith.constant 0 : i32
    %c0_i32_1 = arith.constant 0 : i32
    return %arg0, %c0_i32, %c0_i32_0 : i32, i32, i32
  }
  func.func @transform_2(%arg0: i32, %arg1: i32) -> (i32, i32) {
    %c0_i32 = arith.constant 0 : i32
    %c0_i32_0 = arith.constant 0 : i32
    %c0_i32_1 = arith.constant 0 : i32
    return %c0_i32, %c0_i32_0 : i32, i32
  }
  func.func @transform_3(%arg0: i32, %arg1: i32) -> (i32, i32) {
    %c0_i32 = arith.constant 0 : i32
    %c0_i32_0 = arith.constant 0 : i32
    %c0_i32_1 = arith.constant 0 : i32
    return %c0_i32, %c0_i32_0 : i32, i32
  }
  func.func @transform_4(%arg0: i32, %arg1: i32) -> (i32, i32) {
    %c0_i32 = arith.constant 0 : i32
    %c0_i32_0 = arith.constant 0 : i32
    %c0_i32_1 = arith.constant 0 : i32
    return %c0_i32, %c0_i32_0 : i32, i32
  }
  func.func @transform_5(%arg0: i32, %arg1: i32) -> (i32, i32) {
    %c0_i32 = arith.constant 0 : i32
    %c0_i32_0 = arith.constant 0 : i32
    %c0_i32_1 = arith.constant 0 : i32
    return %c0_i32, %c0_i32_0 : i32, i32
  }
  func.func @transform_6(%arg0: i32, %arg1: i32) -> (i32, i32) {
    %c0_i32 = arith.constant 0 : i32
    %c0_i32_0 = arith.constant 0 : i32
    %c0_i32_1 = arith.constant 0 : i32
    return %c0_i32, %c0_i32_0 : i32, i32
  }
  func.func @transform_7(%arg0: i32, %arg1: i32) -> (i32, i32) {
    %c0_i32 = arith.constant 0 : i32
    %c0_i32_0 = arith.constant 0 : i32
    %c0_i32_1 = arith.constant 0 : i32
    return %c0_i32, %c0_i32_0 : i32, i32
  }
  func.func @transform_8(%arg0: i32, %arg1: i32) -> (i32, i32) {
    %c0_i32 = arith.constant 0 : i32
    %c0_i32_0 = arith.constant 0 : i32
    %c0_i32_1 = arith.constant 0 : i32
    return %c0_i32, %c0_i32_0 : i32, i32
  }
  func.func @transform_9(%arg0: i32, %arg1: i32) -> (i32, i32) {
    %c0_i32 = arith.constant 0 : i32
    %c0_i32_0 = arith.constant 0 : i32
    %c0_i32_1 = arith.constant 0 : i32
    return %c0_i32, %c0_i32_0 : i32, i32
  }
  func.func @transform_10(%arg0: i32, %arg1: i32) -> (i32, i32) {
    %c0_i32 = arith.constant 0 : i32
    %c0_i32_0 = arith.constant 0 : i32
    %c0_i32_1 = arith.constant 0 : i32
    return %c0_i32, %c0_i32_0 : i32, i32
  }
  func.func @transform_11(%arg0: i32, %arg1: i32) -> (i32, i32) {
    %c0_i32 = arith.constant 0 : i32
    %c0_i32_0 = arith.constant 0 : i32
    %c0_i32_1 = arith.constant 0 : i32
    return %c0_i32, %c0_i32_0 : i32, i32
  }
  func.func @transform_12(%arg0: i32, %arg1: i32) -> (i32, i32) {
    %c0_i32 = arith.constant 0 : i32
    %c0_i32_0 = arith.constant 0 : i32
    %c0_i32_1 = arith.constant 0 : i32
    return %c0_i32, %c0_i32_0 : i32, i32
  }
  func.func @transform_13(%arg0: i32, %arg1: i32) -> (i32, i32, i32) {
    %c0_i32 = arith.constant 0 : i32
    %c0_i32_0 = arith.constant 0 : i32
    return %arg0, %arg1, %c0_i32 : i32, i32, i32
  }
}

module attributes {stable_mosaic.version = 11 : i64} {
  func.func @cross_attn_layer_kernel(%arg0: i32, %arg1: i32, %arg2: memref<1x8x32xf32, #tpu.memory_space<vmem>>, %arg3: memref<1x8x32xf32, #tpu.memory_space<vmem>>, %arg4: memref<32x32xbf16, #tpu.memory_space<vmem>>, %arg5: memref<32x32xbf16, #tpu.memory_space<vmem>>, %arg6: memref<32x32xbf16, #tpu.memory_space<vmem>>, %arg7: memref<32x32xbf16, #tpu.memory_space<vmem>>, %arg8: memref<1x32xf32, #tpu.memory_space<vmem>>, %arg9: memref<1x32xf32, #tpu.memory_space<vmem>>, %arg10: memref<1x32xf32, #tpu.memory_space<vmem>>, %arg11: memref<32x64xbf16, #tpu.memory_space<vmem>>, %arg12: memref<1x64xf32, #tpu.memory_space<vmem>>, %arg13: memref<64x32xbf16, #tpu.memory_space<vmem>>, %arg14: memref<1x32xf32, #tpu.memory_space<vmem>>, %arg15: memref<1x8x32xf32, #tpu.memory_space<vmem>>) attributes {dimension_semantics = [#tpu.dimension_semantics<parallel>, #tpu.dimension_semantics<parallel>], iteration_bounds = array<i64: 2, 1>, scalar_prefetch = 0 : i64, scratch_operands = 0 : i64, tpu.core_type = #tpu.core_type<tc>, window_params = [{transform_indices = @transform_0, window_bounds = array<i64: 1, 8, 32>}, {transform_indices = @transform_1, window_bounds = array<i64: 1, 8, 32>}, {pipeline_mode = #tpu.pipeline_mode<synchronous>, transform_indices = @transform_2, window_bounds = array<i64: 32, 32>}, {pipeline_mode = #tpu.pipeline_mode<synchronous>, transform_indices = @transform_3, window_bounds = array<i64: 32, 32>}, {pipeline_mode = #tpu.pipeline_mode<synchronous>, transform_indices = @transform_4, window_bounds = array<i64: 32, 32>}, {pipeline_mode = #tpu.pipeline_mode<synchronous>, transform_indices = @transform_5, window_bounds = array<i64: 32, 32>}, {pipeline_mode = #tpu.pipeline_mode<synchronous>, transform_indices = @transform_6, window_bounds = array<i64: 1, 32>}, {pipeline_mode = #tpu.pipeline_mode<synchronous>, transform_indices = @transform_7, window_bounds = array<i64: 1, 32>}, {pipeline_mode = #tpu.pipeline_mode<synchronous>, transform_indices = @transform_8, window_bounds = array<i64: 1, 32>}, {pipeline_mode = #tpu.pipeline_mode<synchronous>, transform_indices = @transform_9, window_bounds = array<i64: 32, 64>}, {pipeline_mode = #tpu.pipeline_mode<synchronous>, transform_indices = @transform_10, window_bounds = array<i64: 1, 64>}, {pipeline_mode = #tpu.pipeline_mode<synchronous>, transform_indices = @transform_11, window_bounds = array<i64: 64, 32>}, {pipeline_mode = #tpu.pipeline_mode<synchronous>, transform_indices = @transform_12, window_bounds = array<i64: 1, 32>}, {transform_indices = @transform_13, window_bounds = array<i64: 1, 8, 32>}]} {
    %c0 = arith.constant 0 : index
    %c0_0 = arith.constant 0 : index
    %c0_1 = arith.constant 0 : index
    %0 = vector.load %arg2[%c0, %c0_0, %c0_1] : memref<1x8x32xf32, #tpu.memory_space<vmem>>, vector<1x8x32xf32>
    %1 = vector.shape_cast %0 : vector<1x8x32xf32> to vector<8x32xf32>
    %c0_2 = arith.constant 0 : index
    %c0_3 = arith.constant 0 : index
    %c0_4 = arith.constant 0 : index
    %2 = vector.load %arg3[%c0_2, %c0_3, %c0_4] : memref<1x8x32xf32, #tpu.memory_space<vmem>>, vector<1x8x32xf32>
    %3 = vector.shape_cast %2 : vector<1x8x32xf32> to vector<8x32xf32>
    %c0_5 = arith.constant 0 : index
    %c0_6 = arith.constant 0 : index
    %4 = vector.load %arg4[%c0_5, %c0_6] : memref<32x32xbf16, #tpu.memory_space<vmem>>, vector<32x32xbf16>
    %c0_7 = arith.constant 0 : index
    %c0_8 = arith.constant 0 : index
    %5 = vector.load %arg5[%c0_7, %c0_8] : memref<32x32xbf16, #tpu.memory_space<vmem>>, vector<32x32xbf16>
    %c0_9 = arith.constant 0 : index
    %c0_10 = arith.constant 0 : index
    %6 = vector.load %arg6[%c0_9, %c0_10] : memref<32x32xbf16, #tpu.memory_space<vmem>>, vector<32x32xbf16>
    %c0_11 = arith.constant 0 : index
    %c0_12 = arith.constant 0 : index
    %7 = vector.load %arg7[%c0_11, %c0_12] : memref<32x32xbf16, #tpu.memory_space<vmem>>, vector<32x32xbf16>
    %c0_13 = arith.constant 0 : index
    %c0_14 = arith.constant 0 : index
    %8 = vector.load %arg11[%c0_13, %c0_14] : memref<32x64xbf16, #tpu.memory_space<vmem>>, vector<32x64xbf16>
    %c0_15 = arith.constant 0 : index
    %c0_16 = arith.constant 0 : index
    %9 = vector.load %arg13[%c0_15, %c0_16] : memref<64x32xbf16, #tpu.memory_space<vmem>>, vector<64x32xbf16>
    %c0_17 = arith.constant 0 : index
    %c0_18 = arith.constant 0 : index
    %10 = vector.load %arg8[%c0_17, %c0_18] : memref<1x32xf32, #tpu.memory_space<vmem>>, vector<1x32xf32>
    %c0_19 = arith.constant 0 : index
    %c0_20 = arith.constant 0 : index
    %11 = vector.load %arg9[%c0_19, %c0_20] : memref<1x32xf32, #tpu.memory_space<vmem>>, vector<1x32xf32>
    %c0_21 = arith.constant 0 : index
    %c0_22 = arith.constant 0 : index
    %12 = vector.load %arg10[%c0_21, %c0_22] : memref<1x32xf32, #tpu.memory_space<vmem>>, vector<1x32xf32>
    %c0_23 = arith.constant 0 : index
    %c0_24 = arith.constant 0 : index
    %13 = vector.load %arg12[%c0_23, %c0_24] : memref<1x64xf32, #tpu.memory_space<vmem>>, vector<1x64xf32>
    %c0_25 = arith.constant 0 : index
    %c0_26 = arith.constant 0 : index
    %14 = vector.load %arg14[%c0_25, %c0_26] : memref<1x32xf32, #tpu.memory_space<vmem>>, vector<1x32xf32>
    %15 = arith.truncf %1 : vector<8x32xf32> to vector<8x32xbf16>
    %16 = arith.truncf %3 : vector<8x32xf32> to vector<8x32xbf16>
    %cst = arith.constant dense<0.000000e+00> : vector<8x32xf32>
    %17 = tpu.matmul %15, %4, %cst {dimension_numbers = #tpu.dot_dimension_numbers<[1], [0], [0], [1], [0, 0, 1, 1], [], []>} : vector<8x32xbf16>, vector<32x32xbf16>, vector<8x32xf32> -> vector<8x32xf32>
    %cst_27 = arith.constant 0.353553385 : f32
    %18 = vector.broadcast %cst_27 : f32 to vector<8x32xf32>
    %19 = arith.mulf %17, %18 : vector<8x32xf32>
    %cst_28 = arith.constant dense<0.000000e+00> : vector<8x32xf32>
    %20 = tpu.matmul %16, %5, %cst_28 {dimension_numbers = #tpu.dot_dimension_numbers<[1], [0], [0], [1], [0, 0, 1, 1], [], []>} : vector<8x32xbf16>, vector<32x32xbf16>, vector<8x32xf32> -> vector<8x32xf32>
    %cst_29 = arith.constant dense<0.000000e+00> : vector<8x32xf32>
    %21 = tpu.matmul %16, %6, %cst_29 {dimension_numbers = #tpu.dot_dimension_numbers<[1], [0], [0], [1], [0, 0, 1, 1], [], []>} : vector<8x32xbf16>, vector<32x32xbf16>, vector<8x32xf32> -> vector<8x32xf32>
    %22 = arith.truncf %19 : vector<8x32xf32> to vector<8x32xbf16>
    %23 = arith.truncf %20 : vector<8x32xf32> to vector<8x32xbf16>
    %24 = arith.truncf %21 : vector<8x32xf32> to vector<8x32xbf16>
    %25 = vector.extract_strided_slice %22 {offsets = [0, 0], sizes = [8, 8], strides = [1, 1]} : vector<8x32xbf16> to vector<8x8xbf16>
    %26 = vector.extract_strided_slice %23 {offsets = [0, 0], sizes = [8, 8], strides = [1, 1]} : vector<8x32xbf16> to vector<8x8xbf16>
    %27 = vector.extract_strided_slice %24 {offsets = [0, 0], sizes = [8, 8], strides = [1, 1]} : vector<8x32xbf16> to vector<8x8xbf16>
    %cst_30 = arith.constant dense<0.000000e+00> : vector<8x8xf32>
    %28 = tpu.matmul %25, %26, %cst_30 {dimension_numbers = #tpu.dot_dimension_numbers<[1], [1], [0], [0], [0, 0, 1, 0], [], []>} : vector<8x8xbf16>, vector<8x8xbf16>, vector<8x8xf32> -> vector<8x8xf32>
    %cst_31 = arith.constant dense<0xFF800000> : vector<8xf32>
    %29 = vector.multi_reduction <maximumf>, %28, %cst_31 [1] : vector<8x8xf32> to vector<8xf32>
    %30 = vector.shape_cast %29 : vector<8xf32> to vector<8x1xf32>
    %31 = vector.broadcast %30 : vector<8x1xf32> to vector<8x8xf32>
    %32 = arith.subf %28, %31 : vector<8x8xf32>
    %33 = math.exp %32 : vector<8x8xf32>
    %cst_32 = arith.constant dense<0.000000e+00> : vector<8xf32>
    %34 = vector.multi_reduction <add>, %33, %cst_32 [1] : vector<8x8xf32> to vector<8xf32>
    %35 = vector.shape_cast %34 : vector<8xf32> to vector<8x1xf32>
    %36 = tpu.reciprocal %35 {approx = true} : vector<8x1xf32> -> vector<8x1xf32>
    %37 = vector.broadcast %36 : vector<8x1xf32> to vector<8x8xf32>
    %38 = arith.mulf %33, %37 : vector<8x8xf32>
    %39 = arith.truncf %38 : vector<8x8xf32> to vector<8x8xbf16>
    %cst_33 = arith.constant dense<0.000000e+00> : vector<8x8xf32>
    %40 = tpu.matmul %39, %27, %cst_33 {dimension_numbers = #tpu.dot_dimension_numbers<[1], [0], [0], [1], [0, 0, 1, 1], [], []>} : vector<8x8xbf16>, vector<8x8xbf16>, vector<8x8xf32> -> vector<8x8xf32>
    %41 = vector.extract_strided_slice %22 {offsets = [0, 8], sizes = [8, 8], strides = [1, 1]} : vector<8x32xbf16> to vector<8x8xbf16>
    %42 = vector.extract_strided_slice %23 {offsets = [0, 8], sizes = [8, 8], strides = [1, 1]} : vector<8x32xbf16> to vector<8x8xbf16>
    %43 = vector.extract_strided_slice %24 {offsets = [0, 8], sizes = [8, 8], strides = [1, 1]} : vector<8x32xbf16> to vector<8x8xbf16>
    %cst_34 = arith.constant dense<0.000000e+00> : vector<8x8xf32>
    %44 = tpu.matmul %41, %42, %cst_34 {dimension_numbers = #tpu.dot_dimension_numbers<[1], [1], [0], [0], [0, 0, 1, 0], [], []>} : vector<8x8xbf16>, vector<8x8xbf16>, vector<8x8xf32> -> vector<8x8xf32>
    %cst_35 = arith.constant dense<0xFF800000> : vector<8xf32>
    %45 = vector.multi_reduction <maximumf>, %44, %cst_35 [1] : vector<8x8xf32> to vector<8xf32>
    %46 = vector.shape_cast %45 : vector<8xf32> to vector<8x1xf32>
    %47 = vector.broadcast %46 : vector<8x1xf32> to vector<8x8xf32>
    %48 = arith.subf %44, %47 : vector<8x8xf32>
    %49 = math.exp %48 : vector<8x8xf32>
    %cst_36 = arith.constant dense<0.000000e+00> : vector<8xf32>
    %50 = vector.multi_reduction <add>, %49, %cst_36 [1] : vector<8x8xf32> to vector<8xf32>
    %51 = vector.shape_cast %50 : vector<8xf32> to vector<8x1xf32>
    %52 = tpu.reciprocal %51 {approx = true} : vector<8x1xf32> -> vector<8x1xf32>
    %53 = vector.broadcast %52 : vector<8x1xf32> to vector<8x8xf32>
    %54 = arith.mulf %49, %53 : vector<8x8xf32>
    %55 = arith.truncf %54 : vector<8x8xf32> to vector<8x8xbf16>
    %cst_37 = arith.constant dense<0.000000e+00> : vector<8x8xf32>
    %56 = tpu.matmul %55, %43, %cst_37 {dimension_numbers = #tpu.dot_dimension_numbers<[1], [0], [0], [1], [0, 0, 1, 1], [], []>} : vector<8x8xbf16>, vector<8x8xbf16>, vector<8x8xf32> -> vector<8x8xf32>
    %57 = vector.extract_strided_slice %22 {offsets = [0, 16], sizes = [8, 8], strides = [1, 1]} : vector<8x32xbf16> to vector<8x8xbf16>
    %58 = vector.extract_strided_slice %23 {offsets = [0, 16], sizes = [8, 8], strides = [1, 1]} : vector<8x32xbf16> to vector<8x8xbf16>
    %59 = vector.extract_strided_slice %24 {offsets = [0, 16], sizes = [8, 8], strides = [1, 1]} : vector<8x32xbf16> to vector<8x8xbf16>
    %cst_38 = arith.constant dense<0.000000e+00> : vector<8x8xf32>
    %60 = tpu.matmul %57, %58, %cst_38 {dimension_numbers = #tpu.dot_dimension_numbers<[1], [1], [0], [0], [0, 0, 1, 0], [], []>} : vector<8x8xbf16>, vector<8x8xbf16>, vector<8x8xf32> -> vector<8x8xf32>
    %cst_39 = arith.constant dense<0xFF800000> : vector<8xf32>
    %61 = vector.multi_reduction <maximumf>, %60, %cst_39 [1] : vector<8x8xf32> to vector<8xf32>
    %62 = vector.shape_cast %61 : vector<8xf32> to vector<8x1xf32>
    %63 = vector.broadcast %62 : vector<8x1xf32> to vector<8x8xf32>
    %64 = arith.subf %60, %63 : vector<8x8xf32>
    %65 = math.exp %64 : vector<8x8xf32>
    %cst_40 = arith.constant dense<0.000000e+00> : vector<8xf32>
    %66 = vector.multi_reduction <add>, %65, %cst_40 [1] : vector<8x8xf32> to vector<8xf32>
    %67 = vector.shape_cast %66 : vector<8xf32> to vector<8x1xf32>
    %68 = tpu.reciprocal %67 {approx = true} : vector<8x1xf32> -> vector<8x1xf32>
    %69 = vector.broadcast %68 : vector<8x1xf32> to vector<8x8xf32>
    %70 = arith.mulf %65, %69 : vector<8x8xf32>
    %71 = arith.truncf %70 : vector<8x8xf32> to vector<8x8xbf16>
    %cst_41 = arith.constant dense<0.000000e+00> : vector<8x8xf32>
    %72 = tpu.matmul %71, %59, %cst_41 {dimension_numbers = #tpu.dot_dimension_numbers<[1], [0], [0], [1], [0, 0, 1, 1], [], []>} : vector<8x8xbf16>, vector<8x8xbf16>, vector<8x8xf32> -> vector<8x8xf32>
    %73 = vector.extract_strided_slice %22 {offsets = [0, 24], sizes = [8, 8], strides = [1, 1]} : vector<8x32xbf16> to vector<8x8xbf16>
    %74 = vector.extract_strided_slice %23 {offsets = [0, 24], sizes = [8, 8], strides = [1, 1]} : vector<8x32xbf16> to vector<8x8xbf16>
    %75 = vector.extract_strided_slice %24 {offsets = [0, 24], sizes = [8, 8], strides = [1, 1]} : vector<8x32xbf16> to vector<8x8xbf16>
    %cst_42 = arith.constant dense<0.000000e+00> : vector<8x8xf32>
    %76 = tpu.matmul %73, %74, %cst_42 {dimension_numbers = #tpu.dot_dimension_numbers<[1], [1], [0], [0], [0, 0, 1, 0], [], []>} : vector<8x8xbf16>, vector<8x8xbf16>, vector<8x8xf32> -> vector<8x8xf32>
    %cst_43 = arith.constant dense<0xFF800000> : vector<8xf32>
    %77 = vector.multi_reduction <maximumf>, %76, %cst_43 [1] : vector<8x8xf32> to vector<8xf32>
    %78 = vector.shape_cast %77 : vector<8xf32> to vector<8x1xf32>
    %79 = vector.broadcast %78 : vector<8x1xf32> to vector<8x8xf32>
    %80 = arith.subf %76, %79 : vector<8x8xf32>
    %81 = math.exp %80 : vector<8x8xf32>
    %cst_44 = arith.constant dense<0.000000e+00> : vector<8xf32>
    %82 = vector.multi_reduction <add>, %81, %cst_44 [1] : vector<8x8xf32> to vector<8xf32>
    %83 = vector.shape_cast %82 : vector<8xf32> to vector<8x1xf32>
    %84 = tpu.reciprocal %83 {approx = true} : vector<8x1xf32> -> vector<8x1xf32>
    %85 = vector.broadcast %84 : vector<8x1xf32> to vector<8x8xf32>
    %86 = arith.mulf %81, %85 : vector<8x8xf32>
    %87 = arith.truncf %86 : vector<8x8xf32> to vector<8x8xbf16>
    %cst_45 = arith.constant dense<0.000000e+00> : vector<8x8xf32>
    %88 = tpu.matmul %87, %75, %cst_45 {dimension_numbers = #tpu.dot_dimension_numbers<[1], [0], [0], [1], [0, 0, 1, 1], [], []>} : vector<8x8xbf16>, vector<8x8xbf16>, vector<8x8xf32> -> vector<8x8xf32>
    %89 = tpu.concatenate %40, %56, %72, %88 in 1 : vector<8x8xf32>, vector<8x8xf32>, vector<8x8xf32>, vector<8x8xf32> -> vector<8x32xf32>
    %90 = arith.truncf %89 : vector<8x32xf32> to vector<8x32xbf16>
    %cst_46 = arith.constant dense<0.000000e+00> : vector<8x32xf32>
    %91 = tpu.matmul %90, %7, %cst_46 {dimension_numbers = #tpu.dot_dimension_numbers<[1], [0], [0], [1], [0, 0, 1, 1], [], []>} : vector<8x32xbf16>, vector<32x32xbf16>, vector<8x32xf32> -> vector<8x32xf32>
    %92 = vector.broadcast %10 : vector<1x32xf32> to vector<8x32xf32>
    %93 = arith.addf %91, %92 : vector<8x32xf32>
    %94 = arith.addf %1, %93 : vector<8x32xf32>
    %cst_47 = arith.constant dense<0.000000e+00> : vector<8xf32>
    %95 = vector.multi_reduction <add>, %94, %cst_47 [1] : vector<8x32xf32> to vector<8xf32>
    %96 = vector.shape_cast %95 : vector<8xf32> to vector<8x1xf32>
    %cst_48 = arith.constant 3.200000e+01 : f32
    %97 = vector.broadcast %cst_48 : f32 to vector<8x1xf32>
    %98 = arith.divf %96, %97 : vector<8x1xf32>
    %99 = vector.broadcast %98 : vector<8x1xf32> to vector<8x32xf32>
    %100 = arith.subf %94, %99 : vector<8x32xf32>
    %101 = arith.mulf %100, %100 : vector<8x32xf32>
    %cst_49 = arith.constant dense<0.000000e+00> : vector<8xf32>
    %102 = vector.multi_reduction <add>, %101, %cst_49 [1] : vector<8x32xf32> to vector<8xf32>
    %103 = vector.shape_cast %102 : vector<8xf32> to vector<8x1xf32>
    %cst_50 = arith.constant 3.200000e+01 : f32
    %104 = vector.broadcast %cst_50 : f32 to vector<8x1xf32>
    %105 = arith.divf %103, %104 : vector<8x1xf32>
    %cst_51 = arith.constant 9.99999974E-6 : f32
    %106 = vector.broadcast %cst_51 : f32 to vector<8x1xf32>
    %107 = arith.addf %105, %106 : vector<8x1xf32>
    %108 = math.rsqrt %107 : vector<8x1xf32>
    %109 = vector.broadcast %108 : vector<8x1xf32> to vector<8x32xf32>
    %110 = arith.mulf %100, %109 : vector<8x32xf32>
    %111 = vector.broadcast %11 : vector<1x32xf32> to vector<8x32xf32>
    %112 = arith.mulf %110, %111 : vector<8x32xf32>
    %113 = vector.broadcast %12 : vector<1x32xf32> to vector<8x32xf32>
    %114 = arith.addf %112, %113 : vector<8x32xf32>
    %115 = arith.truncf %114 : vector<8x32xf32> to vector<8x32xbf16>
    %cst_52 = arith.constant dense<0.000000e+00> : vector<8x64xf32>
    %116 = tpu.matmul %115, %8, %cst_52 {dimension_numbers = #tpu.dot_dimension_numbers<[1], [0], [0], [1], [0, 0, 1, 1], [], []>} : vector<8x32xbf16>, vector<32x64xbf16>, vector<8x64xf32> -> vector<8x64xf32>
    %117 = vector.broadcast %13 : vector<1x64xf32> to vector<8x64xf32>
    %118 = arith.addf %116, %117 : vector<8x64xf32>
    %cst_53 = arith.constant 1.702000e+00 : f32
    %119 = vector.broadcast %cst_53 : f32 to vector<8x64xf32>
    %120 = arith.mulf %119, %118 : vector<8x64xf32>
    %121 = arith.negf %120 : vector<8x64xf32>
    %122 = math.exp %121 : vector<8x64xf32>
    %cst_54 = arith.constant 1.000000e+00 : f32
    %123 = vector.broadcast %cst_54 : f32 to vector<8x64xf32>
    %124 = arith.addf %123, %122 : vector<8x64xf32>
    %125 = arith.divf %123, %124 : vector<8x64xf32>
    %126 = arith.mulf %118, %125 : vector<8x64xf32>
    %127 = arith.truncf %126 : vector<8x64xf32> to vector<8x64xbf16>
    %cst_55 = arith.constant dense<0.000000e+00> : vector<8x32xf32>
    %128 = tpu.matmul %127, %9, %cst_55 {dimension_numbers = #tpu.dot_dimension_numbers<[1], [0], [0], [1], [0, 0, 1, 1], [], []>} : vector<8x64xbf16>, vector<64x32xbf16>, vector<8x32xf32> -> vector<8x32xf32>
    %129 = vector.broadcast %14 : vector<1x32xf32> to vector<8x32xf32>
    %130 = arith.addf %128, %129 : vector<8x32xf32>
    %131 = arith.addf %94, %130 : vector<8x32xf32>
    %c0_56 = arith.constant 0 : index
    %c0_57 = arith.constant 0 : index
    %c0_58 = arith.constant 0 : index
    %132 = vector.load %arg15[%c0_56, %c0_57, %c0_58] : memref<1x8x32xf32, #tpu.memory_space<vmem>>, vector<1x8x32xf32>
    %133 = vector.shape_cast %132 : vector<1x8x32xf32> to vector<8x32xf32>
    %134 = vector.shape_cast %131 : vector<8x32xf32> to vector<1x8x32xf32>
    tpu.vector_store %arg15[%c0_56, %c0_57, %c0_58], %134 {strides = array<i32>} : memref<1x8x32xf32, #tpu.memory_space<vmem>>, vector<1x8x32xf32>,
    return
  }
  func.func @transform_0(%arg0: i32, %arg1: i32) -> (i32, i32, i32) {
    %c0_i32 = arith.constant 0 : i32
    %c0_i32_0 = arith.constant 0 : i32
    return %arg0, %arg1, %c0_i32 : i32, i32, i32
  }
  func.func @transform_1(%arg0: i32, %arg1: i32) -> (i32, i32, i32) {
    %c0_i32 = arith.constant 0 : i32
    %c0_i32_0 = arith.constant 0 : i32
    %c0_i32_1 = arith.constant 0 : i32
    return %arg0, %c0_i32, %c0_i32_0 : i32, i32, i32
  }
  func.func @transform_2(%arg0: i32, %arg1: i32) -> (i32, i32) {
    %c0_i32 = arith.constant 0 : i32
    %c0_i32_0 = arith.constant 0 : i32
    %c0_i32_1 = arith.constant 0 : i32
    return %c0_i32, %c0_i32_0 : i32, i32
  }
  func.func @transform_3(%arg0: i32, %arg1: i32) -> (i32, i32) {
    %c0_i32 = arith.constant 0 : i32
    %c0_i32_0 = arith.constant 0 : i32
    %c0_i32_1 = arith.constant 0 : i32
    return %c0_i32, %c0_i32_0 : i32, i32
  }
  func.func @transform_4(%arg0: i32, %arg1: i32) -> (i32, i32) {
    %c0_i32 = arith.constant 0 : i32
    %c0_i32_0 = arith.constant 0 : i32
    %c0_i32_1 = arith.constant 0 : i32
    return %c0_i32, %c0_i32_0 : i32, i32
  }
  func.func @transform_5(%arg0: i32, %arg1: i32) -> (i32, i32) {
    %c0_i32 = arith.constant 0 : i32
    %c0_i32_0 = arith.constant 0 : i32
    %c0_i32_1 = arith.constant 0 : i32
    return %c0_i32, %c0_i32_0 : i32, i32
  }
  func.func @transform_6(%arg0: i32, %arg1: i32) -> (i32, i32) {
    %c0_i32 = arith.constant 0 : i32
    %c0_i32_0 = arith.constant 0 : i32
    %c0_i32_1 = arith.constant 0 : i32
    return %c0_i32, %c0_i32_0 : i32, i32
  }
  func.func @transform_7(%arg0: i32, %arg1: i32) -> (i32, i32) {
    %c0_i32 = arith.constant 0 : i32
    %c0_i32_0 = arith.constant 0 : i32
    %c0_i32_1 = arith.constant 0 : i32
    return %c0_i32, %c0_i32_0 : i32, i32
  }
  func.func @transform_8(%arg0: i32, %arg1: i32) -> (i32, i32) {
    %c0_i32 = arith.constant 0 : i32
    %c0_i32_0 = arith.constant 0 : i32
    %c0_i32_1 = arith.constant 0 : i32
    return %c0_i32, %c0_i32_0 : i32, i32
  }
  func.func @transform_9(%arg0: i32, %arg1: i32) -> (i32, i32) {
    %c0_i32 = arith.constant 0 : i32
    %c0_i32_0 = arith.constant 0 : i32
    %c0_i32_1 = arith.constant 0 : i32
    return %c0_i32, %c0_i32_0 : i32, i32
  }
  func.func @transform_10(%arg0: i32, %arg1: i32) -> (i32, i32) {
    %c0_i32 = arith.constant 0 : i32
    %c0_i32_0 = arith.constant 0 : i32
    %c0_i32_1 = arith.constant 0 : i32
    return %c0_i32, %c0_i32_0 : i32, i32
  }
  func.func @transform_11(%arg0: i32, %arg1: i32) -> (i32, i32) {
    %c0_i32 = arith.constant 0 : i32
    %c0_i32_0 = arith.constant 0 : i32
    %c0_i32_1 = arith.constant 0 : i32
    return %c0_i32, %c0_i32_0 : i32, i32
  }
  func.func @transform_12(%arg0: i32, %arg1: i32) -> (i32, i32) {
    %c0_i32 = arith.constant 0 : i32
    %c0_i32_0 = arith.constant 0 : i32
    %c0_i32_1 = arith.constant 0 : i32
    return %c0_i32, %c0_i32_0 : i32, i32
  }
  func.func @transform_13(%arg0: i32, %arg1: i32) -> (i32, i32, i32) {
    %c0_i32 = arith.constant 0 : i32
    %c0_i32_0 = arith.constant 0 : i32
    return %arg0, %arg1, %c0_i32 : i32, i32, i32
  }
}

</mosaic_0001>

<llo_original>
// kernel: tpu_custom_call.1
$region0: #{tpu_custom_call.1}
  #allocation0 [shape = 'u32[]', space=smem, size = 0x4, offset = 0x4, fixed_abs, tag = 'smem constant byte address 0x4 - core index']
  #allocation1 [shape = 'u32[144,128]{1,0:T(1,128)}', space=vmem, size = 0x12000, scoped, tag = 'internal scratch']
  %s0 = inlined_call_operand.vmem [shape: f32[2,8,32], index: 0, kind: input, shape index: {}]
  %s1 = inlined_call_operand.vmem [shape: f32[2,8,32], index: 1, kind: input, shape index: {}]
  %s2 = inlined_call_operand.vmem [shape: bf16[32,32], index: 2, kind: input, shape index: {}]
  %s3 = inlined_call_operand.hbm [shape: bf16[32,32], index: 3, kind: input, shape index: {}]
  %s4 = inlined_call_operand.hbm [shape: bf16[32,32], index: 4, kind: input, shape index: {}]
  %s5 = inlined_call_operand.hbm [shape: bf16[32,32], index: 5, kind: input, shape index: {}]
  %s6 = inlined_call_operand.vmem [shape: f32[1,32], index: 6, kind: input, shape index: {}]
  %s7 = inlined_call_operand.vmem [shape: f32[1,32], index: 7, kind: input, shape index: {}]
  %s8 = inlined_call_operand.hbm [shape: f32[1,32], index: 8, kind: input, shape index: {}]
  %s9 = inlined_call_operand.vmem [shape: bf16[32,64], index: 9, kind: input, shape index: {}]
  %s10 = inlined_call_operand.vmem [shape: f32[1,64], index: 10, kind: input, shape index: {}]
  %s11 = inlined_call_operand.vmem [shape: bf16[64,32], index: 11, kind: input, shape index: {}]
  %s12 = inlined_call_operand.vmem [shape: f32[1,32], index: 12, kind: input, shape index: {}]
  %s13 = inlined_call_operand.hbm [shape: f32[2,8,32], index: 13, kind: output, shape index: {}]
  %s14 = sld [smem:[#allocation0]]
  $region101: #{tpu_custom_call.1} parent=0
    _
  %s16 = ssub.s32 1, %s14
  %s17 = scalar_select 0, %s16, %s14
  $region1: #{tpu_custom_call.1} parent=0
    #allocation2 [shape = 'u8[8192]{0}', space=vmem, size = 0x2000, scoped, tag = 'input window, operand 3, single buffered']
    #allocation3 [shape = 's32[2]{0}', space=sflag, size = 0x8, scoped, tag = 'scoped memory for tpu_custom_call.1']
    #allocation4 [shape = 's32[2]{0}', space=sflag, size = 0x8, scoped, tag = 'scoped memory for tpu_custom_call.1']
    #allocation5 [shape = 'u8[8192]{0}', space=vmem, size = 0x2000, scoped, tag = 'input window, operand 4, single buffered']
    #allocation6 [shape = 's32[1]{0}', space=sflag, size = 0x4, scoped, tag = 'scoped memory for tpu_custom_call.1']
    #allocation7 [shape = 'u8[8192]{0}', space=vmem, size = 0x2000, scoped, tag = 'input window, operand 5, single buffered']
    #allocation8 [shape = 'u8[512]{0}', space=vmem, size = 0x400, scoped, tag = 'input window, operand 8, single buffered']
    #allocation9 [shape = 's32[1]{0}', space=sflag, size = 0x4, scoped, tag = 'scoped memory for tpu_custom_call.1']
    #allocation10 [shape = 'u8[8192]{0}', space=vmem, size = 0x2000, scoped, tag = 'output window, operand 0']
    %18 = vsyncpa [#allocation3], 0
    %19 = vsyncpa [#allocation6], 0
    %20 = vsyncpa [#allocation9], 0
    %21 = vsyncpa [#allocation4], 0
    %s22 = scalar_lea.sflag [#allocation4], 1
    %23 = vsyncpa %s22, 0
    loop: start=0, step=1, limit=4
    $region2: #{tpu_custom_call.1} parent=1 // loop_pre_header
      _
    $region3: #{tpu_custom_call.1} parent=1 // loop_header
      %s25 = sphi 0, %s29
      %p26 = scmp.ge.s32.totalorder %s25, 4
      %s32 = sphi 0, %s44
      %s33 = sphi 0, %s40
      %s34 = sphi 0, %s32
      %s35 = sphi 0, %s33
      %s36 = sphi 0, %s34
      %s37 = sphi 0, %s35
      %s49 = sphi 0, %s51
      %s52 = sphi 0, %s49
      %s53 = sphi 0, %s52
      %s69 = sphi 0, %s53
      %s75 = sphi 0, %s77
      %s78 = sphi 0, %s75
      %s79 = sphi 0, %s78
      %s95 = sphi 0, %s79
      %s99 = sphi 0, %s99
      %s101 = sphi 0, %s99
      %s102 = sphi 0, %s101
      %s116 = sphi 0, %s102
      %s120 = sphi 0, %s120
      %s122 = sphi 0, %s120
      %s123 = sphi 0, %s122
      %s137 = sphi 0, %s123
      %s141 = sphi 0, %s141
      %s143 = sphi 0, %s141
      %s144 = sphi 0, %s143
      %s158 = sphi 0, %s144
      %s162 = sphi 0, %s162
      %s164 = sphi 0, %s162
      %s165 = sphi 0, %s164
      %s179 = sphi 0, %s165
      %s183 = sphi 0, %s183
      %s185 = sphi 0, %s183
      %s186 = sphi 0, %s185
      %s200 = sphi 0, %s186
      %s204 = sphi 0, %s204
      %s206 = sphi 0, %s204
      %s207 = sphi 0, %s206
      %s221 = sphi 0, %s207
      %s225 = sphi 0, %s225
      %s227 = sphi 0, %s225
      %s228 = sphi 0, %s227
      %s242 = sphi 0, %s228
      %s246 = sphi 0, %s246
      %s248 = sphi 0, %s246
      %s249 = sphi 0, %s248
      %s263 = sphi 0, %s249
      %s267 = sphi 0, %s267
      %s269 = sphi 0, %s267
      %s270 = sphi 0, %s269
      %s284 = sphi 0, %s270
      %s288 = sphi 0, %s288
      %s290 = sphi 0, %s288
      %s291 = sphi 0, %s290
      %s305 = sphi 0, %s291
      %s309 = sphi 0, %s309
      %s311 = sphi 0, %s309
      %s312 = sphi 0, %s311
      %s326 = sphi 0, %s312
      %s334 = sphi 0, %s336
      %s337 = sphi 0, %s334
      %s338 = sphi 0, %s337
      %s354 = sphi 0, %s338
    $region4: #{tpu_custom_call.1} parent=1 // loop_header_branch
      %28 = sbr.rel (%p26) target = $region8
    $region5: #{tpu_custom_call.1} parent=1 // loop_body
      %s30 = ssub.s32 %s25, 1
      %s31 = ssub.s32 %s25, 2
      %s38 = sadd.s32 1, %s33
      %p39 = scmp.ge.s32.totalorder %s38, 1
      %s40 = scalar_select %p39, 0, %s38
      %s41 = sadd.s32 1, %s32
      %s42 = scalar_select %p39, %s41, %s32
      %p43 = scmp.ge.s32.totalorder %s42, 2
      %s44 = scalar_select %p43, 0, %s42
      %s45 = ssub.s32 %s32, %s44
      %s46 = ssub.s32 %s33, %s40
      %s47 = sor.u32 %s45, %s46
      %p48 = scmp.eq.s32.totalorder %s47, 0
      %s50 = sadd.s32 %s49, 1
      %s51 = scalar_select %p48, %s49, %s50
      %p54 = pneg %p48
      %p55 = scmp.eq.s32.totalorder %s25, 1
      %p56 = por %p54, %p55
      %p57 = scmp.ne.s32.totalorder %s49, %s52
      %p58 = scmp.eq.s32.totalorder %s25, 0
      %p59 = por %p57, %p58
      %p60 = scmp.ne.s32.totalorder %s49, %s52
      %p61 = scmp.eq.s32.totalorder %s30, 1
      %p62 = por %p60, %p61
      %p63 = scmp.ne.s32.totalorder %s52, %s53
      %p64 = scmp.eq.s32.totalorder %s30, 0
      %p65 = por %p63, %p64
      %p66 = scmp.ne.s32.totalorder %s52, %s53
      %p67 = scmp.eq.s32.totalorder %s31, 1
      %p68 = por %p66, %p67
      %p70 = scmp.ne.s32.totalorder %s53, %s69
      %p71 = scmp.eq.s32.totalorder %s31, 0
      %p72 = por %p70, %p71
      %s73 = ssub.s32 %s32, %s44
      %p74 = scmp.eq.s32.totalorder %s73, 0
      %s76 = sadd.s32 %s75, 1
      %s77 = scalar_select %p74, %s75, %s76
      %p80 = pneg %p74
      %p81 = scmp.eq.s32.totalorder %s25, 1
      %p82 = por %p80, %p81
      %p83 = scmp.ne.s32.totalorder %s75, %s78
      %p84 = scmp.eq.s32.totalorder %s25, 0
      %p85 = por %p83, %p84
      %p86 = scmp.ne.s32.totalorder %s75, %s78
      %p87 = scmp.eq.s32.totalorder %s30, 1
      %p88 = por %p86, %p87
      %p89 = scmp.ne.s32.totalorder %s78, %s79
      %p90 = scmp.eq.s32.totalorder %s30, 0
      %p91 = por %p89, %p90
      %p92 = scmp.ne.s32.totalorder %s78, %s79
      %p93 = scmp.eq.s32.totalorder %s31, 1
      %p94 = por %p92, %p93
      %p96 = scmp.ne.s32.totalorder %s79, %s95
      %p97 = scmp.eq.s32.totalorder %s31, 0
      %p98 = por %p96, %p97
      %s100 = sadd.s32 %s99, 1
      %p103 = scmp.eq.s32.totalorder %s25, 1
      %p104 = scmp.ne.s32.totalorder %s99, %s101
      %p105 = scmp.eq.s32.totalorder %s25, 0
      %p106 = por %p104, %p105
      %p107 = scmp.ne.s32.totalorder %s99, %s101
      %p108 = scmp.eq.s32.totalorder %s30, 1
      %p109 = por %p107, %p108
      %p110 = scmp.ne.s32.totalorder %s101, %s102
      %p111 = scmp.eq.s32.totalorder %s30, 0
      %p112 = por %p110, %p111
      %p113 = scmp.ne.s32.totalorder %s101, %s102
      %p114 = scmp.eq.s32.totalorder %s31, 1
      %p115 = por %p113, %p114
      %p117 = scmp.ne.s32.totalorder %s102, %s116
      %p118 = scmp.eq.s32.totalorder %s31, 0
      %p119 = por %p117, %p118
      %s121 = sadd.s32 %s120, 1
      %p124 = scmp.eq.s32.totalorder %s25, 1
      %p125 = scmp.ne.s32.totalorder %s120, %s122
      %p126 = scmp.eq.s32.totalorder %s25, 0
      %p127 = por %p125, %p126
      %p128 = scmp.ne.s32.totalorder %s120, %s122
      %p129 = scmp.eq.s32.totalorder %s30, 1
      %p130 = por %p128, %p129
      %p131 = scmp.ne.s32.totalorder %s122, %s123
      %p132 = scmp.eq.s32.totalorder %s30, 0
      %p133 = por %p131, %p132
      %p134 = scmp.ne.s32.totalorder %s122, %s123
      %p135 = scmp.eq.s32.totalorder %s31, 1
      %p136 = por %p134, %p135
      %p138 = scmp.ne.s32.totalorder %s123, %s137
      %p139 = scmp.eq.s32.totalorder %s31, 0
      %p140 = por %p138, %p139
      %s142 = sadd.s32 %s141, 1
      %p145 = scmp.eq.s32.totalorder %s25, 1
      %p146 = scmp.ne.s32.totalorder %s141, %s143
      %p147 = scmp.eq.s32.totalorder %s25, 0
      %p148 = por %p146, %p147
      %p149 = scmp.ne.s32.totalorder %s141, %s143
      %p150 = scmp.eq.s32.totalorder %s30, 1
      %p151 = por %p149, %p150
      %p152 = scmp.ne.s32.totalorder %s143, %s144
      %p153 = scmp.eq.s32.totalorder %s30, 0
      %p154 = por %p152, %p153
      %p155 = scmp.ne.s32.totalorder %s143, %s144
      %p156 = scmp.eq.s32.totalorder %s31, 1
      %p157 = por %p155, %p156
      %p159 = scmp.ne.s32.totalorder %s144, %s158
      %p160 = scmp.eq.s32.totalorder %s31, 0
      %p161 = por %p159, %p160
      %s163 = sadd.s32 %s162, 1
      %p166 = scmp.eq.s32.totalorder %s25, 1
      %p167 = scmp.ne.s32.totalorder %s162, %s164
      %p168 = scmp.eq.s32.totalorder %s25, 0
      %p169 = por %p167, %p168
      %p170 = scmp.ne.s32.totalorder %s162, %s164
      %p171 = scmp.eq.s32.totalorder %s30, 1
      %p172 = por %p170, %p171
      %p173 = scmp.ne.s32.totalorder %s164, %s165
      %p174 = scmp.eq.s32.totalorder %s30, 0
      %p175 = por %p173, %p174
      %p176 = scmp.ne.s32.totalorder %s164, %s165
      %p177 = scmp.eq.s32.totalorder %s31, 1
      %p178 = por %p176, %p177
      %p180 = scmp.ne.s32.totalorder %s165, %s179
      %p181 = scmp.eq.s32.totalorder %s31, 0
      %p182 = por %p180, %p181
      %s184 = sadd.s32 %s183, 1
      %p187 = scmp.eq.s32.totalorder %s25, 1
      %p188 = scmp.ne.s32.totalorder %s183, %s185
      %p189 = scmp.eq.s32.totalorder %s25, 0
      %p190 = por %p188, %p189
      %p191 = scmp.ne.s32.totalorder %s183, %s185
      %p192 = scmp.eq.s32.totalorder %s30, 1
      %p193 = por %p191, %p192
      %p194 = scmp.ne.s32.totalorder %s185, %s186
      %p195 = scmp.eq.s32.totalorder %s30, 0
      %p196 = por %p194, %p195
      %p197 = scmp.ne.s32.totalorder %s185, %s186
      %p198 = scmp.eq.s32.totalorder %s31, 1
      %p199 = por %p197, %p198
      %p201 = scmp.ne.s32.totalorder %s186, %s200
      %p202 = scmp.eq.s32.totalorder %s31, 0
      %p203 = por %p201, %p202
      %s205 = sadd.s32 %s204, 1
      %p208 = scmp.eq.s32.totalorder %s25, 1
      %p209 = scmp.ne.s32.totalorder %s204, %s206
      %p210 = scmp.eq.s32.totalorder %s25, 0
      %p211 = por %p209, %p210
      %p212 = scmp.ne.s32.totalorder %s204, %s206
      %p213 = scmp.eq.s32.totalorder %s30, 1
      %p214 = por %p212, %p213
      %p215 = scmp.ne.s32.totalorder %s206, %s207
      %p216 = scmp.eq.s32.totalorder %s30, 0
      %p217 = por %p215, %p216
      %p218 = scmp.ne.s32.totalorder %s206, %s207
      %p219 = scmp.eq.s32.totalorder %s31, 1
      %p220 = por %p218, %p219
      %p222 = scmp.ne.s32.totalorder %s207, %s221
      %p223 = scmp.eq.s32.totalorder %s31, 0
      %p224 = por %p222, %p223
      %s226 = sadd.s32 %s225, 1
      %p229 = scmp.eq.s32.totalorder %s25, 1
      %p230 = scmp.ne.s32.totalorder %s225, %s227
      %p231 = scmp.eq.s32.totalorder %s25, 0
      %p232 = por %p230, %p231
      %p233 = scmp.ne.s32.totalorder %s225, %s227
      %p234 = scmp.eq.s32.totalorder %s30, 1
      %p235 = por %p233, %p234
      %p236 = scmp.ne.s32.totalorder %s227, %s228
      %p237 = scmp.eq.s32.totalorder %s30, 0
      %p238 = por %p236, %p237
      %p239 = scmp.ne.s32.totalorder %s227, %s228
      %p240 = scmp.eq.s32.totalorder %s31, 1
      %p241 = por %p239, %p240
      %p243 = scmp.ne.s32.totalorder %s228, %s242
      %p244 = scmp.eq.s32.totalorder %s31, 0
      %p245 = por %p243, %p244
      %s247 = sadd.s32 %s246, 1
      %p250 = scmp.eq.s32.totalorder %s25, 1
      %p251 = scmp.ne.s32.totalorder %s246, %s248
      %p252 = scmp.eq.s32.totalorder %s25, 0
      %p253 = por %p251, %p252
      %p254 = scmp.ne.s32.totalorder %s246, %s248
      %p255 = scmp.eq.s32.totalorder %s30, 1
      %p256 = por %p254, %p255
      %p257 = scmp.ne.s32.totalorder %s248, %s249
      %p258 = scmp.eq.s32.totalorder %s30, 0
      %p259 = por %p257, %p258
      %p260 = scmp.ne.s32.totalorder %s248, %s249
      %p261 = scmp.eq.s32.totalorder %s31, 1
      %p262 = por %p260, %p261
      %p264 = scmp.ne.s32.totalorder %s249, %s263
      %p265 = scmp.eq.s32.totalorder %s31, 0
      %p266 = por %p264, %p265
      %s268 = sadd.s32 %s267, 1
      %p271 = scmp.eq.s32.totalorder %s25, 1
      %p272 = scmp.ne.s32.totalorder %s267, %s269
      %p273 = scmp.eq.s32.totalorder %s25, 0
      %p274 = por %p272, %p273
      %p275 = scmp.ne.s32.totalorder %s267, %s269
      %p276 = scmp.eq.s32.totalorder %s30, 1
      %p277 = por %p275, %p276
      %p278 = scmp.ne.s32.totalorder %s269, %s270
      %p279 = scmp.eq.s32.totalorder %s30, 0
      %p280 = por %p278, %p279
      %p281 = scmp.ne.s32.totalorder %s269, %s270
      %p282 = scmp.eq.s32.totalorder %s31, 1
      %p283 = por %p281, %p282
      %p285 = scmp.ne.s32.totalorder %s270, %s284
      %p286 = scmp.eq.s32.totalorder %s31, 0
      %p287 = por %p285, %p286
      %s289 = sadd.s32 %s288, 1
      %p292 = scmp.eq.s32.totalorder %s25, 1
      %p293 = scmp.ne.s32.totalorder %s288, %s290
      %p294 = scmp.eq.s32.totalorder %s25, 0
      %p295 = por %p293, %p294
      %p296 = scmp.ne.s32.totalorder %s288, %s290
      %p297 = scmp.eq.s32.totalorder %s30, 1
      %p298 = por %p296, %p297
      %p299 = scmp.ne.s32.totalorder %s290, %s291
      %p300 = scmp.eq.s32.totalorder %s30, 0
      %p301 = por %p299, %p300
      %p302 = scmp.ne.s32.totalorder %s290, %s291
      %p303 = scmp.eq.s32.totalorder %s31, 1
      %p304 = por %p302, %p303
      %p306 = scmp.ne.s32.totalorder %s291, %s305
      %p307 = scmp.eq.s32.totalorder %s31, 0
      %p308 = por %p306, %p307
      %s310 = sadd.s32 %s309, 1
      %p313 = scmp.eq.s32.totalorder %s25, 1
      %p314 = scmp.ne.s32.totalorder %s309, %s311
      %p315 = scmp.eq.s32.totalorder %s25, 0
      %p316 = por %p314, %p315
      %p317 = scmp.ne.s32.totalorder %s309, %s311
      %p318 = scmp.eq.s32.totalorder %s30, 1
      %p319 = por %p317, %p318
      %p320 = scmp.ne.s32.totalorder %s311, %s312
      %p321 = scmp.eq.s32.totalorder %s30, 0
      %p322 = por %p320, %p321
      %p323 = scmp.ne.s32.totalorder %s311, %s312
      %p324 = scmp.eq.s32.totalorder %s31, 1
      %p325 = por %p323, %p324
      %p327 = scmp.ne.s32.totalorder %s312, %s326
      %p328 = scmp.eq.s32.totalorder %s31, 0
      %p329 = por %p327, %p328
      %s330 = ssub.s32 %s32, %s44
      %s331 = ssub.s32 %s33, %s40
      %s332 = sor.u32 %s330, %s331
      %p333 = scmp.eq.s32.totalorder %s332, 0
      %s335 = sadd.s32 %s334, 1
      %s336 = scalar_select %p333, %s334, %s335
      %p339 = pneg %p333
      %p340 = scmp.eq.s32.totalorder %s25, 1
      %p341 = por %p339, %p340
      %p342 = scmp.ne.s32.totalorder %s334, %s337
      %p343 = scmp.eq.s32.totalorder %s25, 0
      %p344 = por %p342, %p343
      %p345 = scmp.ne.s32.totalorder %s334, %s337
      %p346 = scmp.eq.s32.totalorder %s30, 1
      %p347 = por %p345, %p346
      %p348 = scmp.ne.s32.totalorder %s337, %s338
      %p349 = scmp.eq.s32.totalorder %s30, 0
      %p350 = por %p348, %p349
      %p351 = scmp.ne.s32.totalorder %s337, %s338
      %p352 = scmp.eq.s32.totalorder %s31, 1
      %p353 = por %p351, %p352
      %p355 = scmp.ne.s32.totalorder %s338, %s354
      %p356 = scmp.eq.s32.totalorder %s31, 0
      %p357 = por %p355, %p356
      %p358 = scmp.le.s32.totalorder 1, %s25
      %p359 = scmp.lt.s32.totalorder %s25, 3
      %p360 = pnand %p358, %p359
      %p361 = pneg %p360
      // Predicated region
      $region9: #{tpu_custom_call.1} parent=5 // pred_check
        _
      $region10: #{tpu_custom_call.1} parent=5 // pred_check_branch
        %363 = sbr.rel (%p360) target = $region12
      $region11: #{tpu_custom_call.1} parent=5 // pred_region
        %s364 = ssub.s32 %s25, 1
        // Predicated region
        $region13: #{tpu_custom_call.1} parent=11 // pred_check
          %p365 = pneg %p112
        $region14: #{tpu_custom_call.1} parent=11 // pred_check_branch
          %367 = sbr.rel (%p365) target = $region16
        $region15: #{tpu_custom_call.1} parent=11 // pred_region
          _
        $region16: #{tpu_custom_call.1} parent=11 // pred_fallthru
          _
        // Predicated region
        $region17: #{tpu_custom_call.1} parent=11 // pred_check
          %p368 = pneg %p133
        $region18: #{tpu_custom_call.1} parent=11 // pred_check_branch
          %370 = sbr.rel (%p368) target = $region20
        $region19: #{tpu_custom_call.1} parent=11 // pred_region
          %s372 = ssub.s32 256, 256
          %373 = vsyncadd [#allocation3], %s372
          %s374 = sshll.u32 [#allocation2], 4
          %s375 = int_to_ptr.vmem [resolvable:$true] %s374
          %380 = dma.hbm_to_vmem [thread:$0]  %s3, 256, %s375, [#allocation3], 64, 64, 4
        $region20: #{tpu_custom_call.1} parent=11 // pred_fallthru
          _
        // Predicated region
        $region21: #{tpu_custom_call.1} parent=11 // pred_check
          %p381 = pneg %p154
        $region22: #{tpu_custom_call.1} parent=11 // pred_check_branch
          %383 = sbr.rel (%p381) target = $region24
        $region23: #{tpu_custom_call.1} parent=11 // pred_region
          %s385 = ssub.s32 256, 256
          %386 = vsyncadd [#allocation6], %s385
          %s387 = sshll.u32 [#allocation5], 4
          %s388 = int_to_ptr.vmem [resolvable:$true] %s387
          %393 = dma.hbm_to_vmem [thread:$0]  %s4, 256, %s388, [#allocation6], 64, 64, 4
        $region24: #{tpu_custom_call.1} parent=11 // pred_fallthru
          _
        // Predicated region
        $region25: #{tpu_custom_call.1} parent=11 // pred_check
          %p394 = pneg %p175
        $region26: #{tpu_custom_call.1} parent=11 // pred_check_branch
          %396 = sbr.rel (%p394) target = $region28
        $region27: #{tpu_custom_call.1} parent=11 // pred_region
          %s398 = ssub.s32 256, 256
          %399 = vsyncadd [#allocation6], %s398
          %s400 = sshll.u32 [#allocation7], 4
          %s401 = int_to_ptr.vmem [resolvable:$true] %s400
          %406 = dma.hbm_to_vmem [thread:$0]  %s5, 256, %s401, [#allocation6], 64, 64, 4
        $region28: #{tpu_custom_call.1} parent=11 // pred_fallthru
          _
        // Predicated region
        $region29: #{tpu_custom_call.1} parent=11 // pred_check
          %p407 = pneg %p196
        $region30: #{tpu_custom_call.1} parent=11 // pred_check_branch
          %409 = sbr.rel (%p407) target = $region32
        $region31: #{tpu_custom_call.1} parent=11 // pred_region
          _
        $region32: #{tpu_custom_call.1} parent=11 // pred_fallthru
          _
        // Predicated region
        $region33: #{tpu_custom_call.1} parent=11 // pred_check
          %p410 = pneg %p217
        $region34: #{tpu_custom_call.1} parent=11 // pred_check_branch
          %412 = sbr.rel (%p410) target = $region36
        $region35: #{tpu_custom_call.1} parent=11 // pred_region
          _
        $region36: #{tpu_custom_call.1} parent=11 // pred_fallthru
          _
        // Predicated region
        $region37: #{tpu_custom_call.1} parent=11 // pred_check
          %p413 = pneg %p238
        $region38: #{tpu_custom_call.1} parent=11 // pred_check_branch
          %415 = sbr.rel (%p413) target = $region40
        $region39: #{tpu_custom_call.1} parent=11 // pred_region
          %s417 = ssub.s32 16, 16
          %418 = vsyncadd [#allocation9], %s417
          %s420 = sshll.u32 [#allocation8], 4
          %s421 = int_to_ptr.vmem [resolvable:$true] %s420
          %423 = dma.hbm_to_vmem [thread:$0]  %s8, 16, %s421, [#allocation9]
        $region40: #{tpu_custom_call.1} parent=11 // pred_fallthru
          _
        // Predicated region
        $region41: #{tpu_custom_call.1} parent=11 // pred_check
          %p424 = pneg %p259
        $region42: #{tpu_custom_call.1} parent=11 // pred_check_branch
          %426 = sbr.rel (%p424) target = $region44
        $region43: #{tpu_custom_call.1} parent=11 // pred_region
          _
        $region44: #{tpu_custom_call.1} parent=11 // pred_fallthru
          _
        // Predicated region
        $region45: #{tpu_custom_call.1} parent=11 // pred_check
          %p427 = pneg %p280
        $region46: #{tpu_custom_call.1} parent=11 // pred_check_branch
          %429 = sbr.rel (%p427) target = $region48
        $region47: #{tpu_custom_call.1} parent=11 // pred_region
          _
        $region48: #{tpu_custom_call.1} parent=11 // pred_fallthru
          _
        // Predicated region
        $region49: #{tpu_custom_call.1} parent=11 // pred_check
          %p430 = pneg %p301
        $region50: #{tpu_custom_call.1} parent=11 // pred_check_branch
          %432 = sbr.rel (%p430) target = $region52
        $region51: #{tpu_custom_call.1} parent=11 // pred_region
          _
        $region52: #{tpu_custom_call.1} parent=11 // pred_fallthru
          _
        // Predicated region
        $region53: #{tpu_custom_call.1} parent=11 // pred_check
          %p433 = pneg %p322
        $region54: #{tpu_custom_call.1} parent=11 // pred_check_branch
          %435 = sbr.rel (%p433) target = $region56
        $region55: #{tpu_custom_call.1} parent=11 // pred_region
          _
        $region56: #{tpu_custom_call.1} parent=11 // pred_fallthru
          _
      $region12: #{tpu_custom_call.1} parent=5 // pred_fallthru
        _
      %p436 = scmp.lt.s32.totalorder %s25, 2
      // Predicated region
      $region57: #{tpu_custom_call.1} parent=5 // pred_check
        %p437 = pneg %p436
      $region58: #{tpu_custom_call.1} parent=5 // pred_check_branch
        %439 = sbr.rel (%p437) target = $region60
      $region59: #{tpu_custom_call.1} parent=5 // pred_region
        // Predicated region
        $region61: #{tpu_custom_call.1} parent=59 // pred_check
          %p440 = pneg %p59
        $region62: #{tpu_custom_call.1} parent=59 // pred_check_branch
          %442 = sbr.rel (%p440) target = $region64
        $region63: #{tpu_custom_call.1} parent=59 // pred_region
          %p443 = scmp.lt.s32.totalorder %s32, 1
          %s444 = scalar_select %p443, %s32, 1
          %p445 = scmp.lt.s32.totalorder %s33, 0
          %s446 = scalar_select %p445, %s33, 0
          %s447 = sadd.s32 %s446, %s444
          %s448 = smul.addr %s447, 8
          %s449 = scalar_lea.vmem %s0, %s448
        $region64: #{tpu_custom_call.1} parent=59 // pred_fallthru
          _
        // Predicated region
        $region65: #{tpu_custom_call.1} parent=59 // pred_check
          %p450 = pneg %p85
        $region66: #{tpu_custom_call.1} parent=59 // pred_check_branch
          %452 = sbr.rel (%p450) target = $region68
        $region67: #{tpu_custom_call.1} parent=59 // pred_region
          %p453 = scmp.lt.s32.totalorder %s32, 1
          %s454 = scalar_select %p453, %s32, 1
          %s455 = smul.addr %s454, 8
          %s456 = scalar_lea.vmem %s1, %s455
        $region68: #{tpu_custom_call.1} parent=59 // pred_fallthru
          _
      $region60: #{tpu_custom_call.1} parent=5 // pred_fallthru
        _
      %p457 = scmp.le.s32.totalorder 1, %s25
      %p458 = scmp.lt.s32.totalorder %s25, 3
      %p459 = pnand %p457, %p458
      %p460 = pneg %p459
      // Predicated region
      $region69: #{tpu_custom_call.1} parent=5 // pred_check
        _
      $region70: #{tpu_custom_call.1} parent=5 // pred_check_branch
        %462 = sbr.rel (%p459) target = $region72
      $region71: #{tpu_custom_call.1} parent=5 // pred_region
        %s463 = ssub.s32 %s25, 1
        // Predicated region
        $region73: #{tpu_custom_call.1} parent=71 // pred_check
          %p464 = pneg %p133
        $region74: #{tpu_custom_call.1} parent=71 // pred_check_branch
          %466 = sbr.rel (%p464) target = $region76
        $region75: #{tpu_custom_call.1} parent=71 // pred_region
          %467 = dma.done [#allocation3], 256
        $region76: #{tpu_custom_call.1} parent=71 // pred_fallthru
          _
        // Predicated region
        $region77: #{tpu_custom_call.1} parent=71 // pred_check
          %p468 = pneg %p154
        $region78: #{tpu_custom_call.1} parent=71 // pred_check_branch
          %470 = sbr.rel (%p468) target = $region80
        $region79: #{tpu_custom_call.1} parent=71 // pred_region
          %471 = dma.done [#allocation6], 256
        $region80: #{tpu_custom_call.1} parent=71 // pred_fallthru
          _
        // Predicated region
        $region81: #{tpu_custom_call.1} parent=71 // pred_check
          %p472 = pneg %p175
        $region82: #{tpu_custom_call.1} parent=71 // pred_check_branch
          %474 = sbr.rel (%p472) target = $region84
        $region83: #{tpu_custom_call.1} parent=71 // pred_region
          %475 = dma.done [#allocation6], 256
        $region84: #{tpu_custom_call.1} parent=71 // pred_fallthru
          _
        // Predicated region
        $region85: #{tpu_custom_call.1} parent=71 // pred_check
          %p476 = pneg %p238
        $region86: #{tpu_custom_call.1} parent=71 // pred_check_branch
          %478 = sbr.rel (%p476) target = $region88
        $region87: #{tpu_custom_call.1} parent=71 // pred_region
          %479 = dma.done [#allocation9], 16
        $region88: #{tpu_custom_call.1} parent=71 // pred_fallthru
          _
        %p480 = scmp.lt.s32.totalorder %s34, 1
        %s481 = scalar_select %p480, %s34, 1
        %p482 = scmp.lt.s32.totalorder %s35, 0
        %s483 = scalar_select %p482, %s35, 0
        %s484 = sadd.s32 %s483, %s481
        %s485 = smul.addr %s484, 8
        %s486 = scalar_lea.vmem %s0, %s485
        %p487 = pneg %p65
        %p488 = pneg %p62
        %p489 = scmp.lt.s32.totalorder %s34, 1
        %s490 = scalar_select %p489, %s34, 1
        %s491 = smul.addr %s490, 8
        %s492 = scalar_lea.vmem %s1, %s491
        %p493 = pneg %p91
        %p494 = pneg %p88
        %p495 = pneg %p112
        %p496 = pneg %p109
        %p497 = pneg %p133
        %p498 = pneg %p130
        %p499 = pneg %p154
        %p500 = pneg %p151
        %p501 = pneg %p175
        %p502 = pneg %p172
        %p503 = pneg %p196
        %p504 = pneg %p193
        %p505 = pneg %p217
        %p506 = pneg %p214
        %p507 = pneg %p238
        %p508 = pneg %p235
        %p509 = pneg %p259
        %p510 = pneg %p256
        %p511 = pneg %p280
        %p512 = pneg %p277
        %p513 = pneg %p301
        %p514 = pneg %p298
        %p515 = pneg %p322
        %p516 = pneg %p319
        %p517 = pneg %p350
        %p518 = pneg %p347
        %s519 = sand.u32 %s337, 1
        %s520 = scalar_lea.sflag [#allocation4], %s519
        %s521 = sand.u32 %s337, 1
        %s522 = smul.addr %s521, 8
        %s523 = scalar_lea.vmem [#allocation10], %s522
        %p524 = scmp.lt.s32.totalorder %s34, 1
        %s525 = scalar_select %p524, %s34, 1
        %p526 = scmp.lt.s32.totalorder %s35, 0
        %s527 = scalar_select %p526, %s35, 0
        %s528 = sadd.s32 %s527, %s525
        %s529 = smul.addr %s528, 8
        %s530 = scalar_lea.vmem %s0, %s529
        %p531 = scmp.lt.s32.totalorder %s34, 1
        %s532 = scalar_select %p531, %s34, 1
        %s533 = smul.addr %s532, 8
        %s534 = scalar_lea.vmem %s1, %s533
        %v536 = vld [vmem:[%s530] sm:$0xff]
        %v537 = vld [vmem:[%s534] sm:$0xff]
        %v538 = vld [vmem:[%s2] sm:$0xf]
        %v539 = vld [vmem:[%s2 + $0x4] sm:$0xf]
        %v540 = vld [vmem:[%s2 + $0x8] sm:$0xf]
        %v541 = vld [vmem:[%s2 + $0xc] sm:$0xf]
        %v542 = vld [vmem:[#allocation2] sm:$0xf]
        %v543 = vld [vmem:[#allocation2 + $0x4] sm:$0xf]
        %v544 = vld [vmem:[#allocation2 + $0x8] sm:$0xf]
        %v545 = vld [vmem:[#allocation2 + $0xc] sm:$0xf]
        %v546 = vld [vmem:[#allocation5] sm:$0xf]
        %v547 = vld [vmem:[#allocation5 + $0x4] sm:$0xf]
        %v548 = vld [vmem:[#allocation5 + $0x8] sm:$0xf]
        %v549 = vld [vmem:[#allocation5 + $0xc] sm:$0xf]
        %v550 = vld [vmem:[#allocation7] sm:$0xf]
        %v551 = vld [vmem:[#allocation7 + $0x4] sm:$0xf]
        %v552 = vld [vmem:[#allocation7 + $0x8] sm:$0xf]
        %v553 = vld [vmem:[#allocation7 + $0xc] sm:$0xf]
        %v554 = vld [vmem:[%s9] sm:$0xf]
        %v555 = vld [vmem:[%s9 + $0x4] sm:$0xf]
        %v556 = vld [vmem:[%s9 + $0x8] sm:$0xf]
        %v557 = vld [vmem:[%s9 + $0xc] sm:$0xf]
        %v558 = vld [vmem:[%s11] sm:$0xf]
        %v559 = vld [vmem:[%s11 + $0x4] sm:$0xf]
        %v560 = vld [vmem:[%s11 + $0x8] sm:$0xf]
        %v561 = vld [vmem:[%s11 + $0xc] sm:$0xf]
        %v562 = vld [vmem:[%s11 + $0x10] sm:$0xf]
        %v563 = vld [vmem:[%s11 + $0x14] sm:$0xf]
        %v564 = vld [vmem:[%s11 + $0x18] sm:$0xf]
        %v565 = vld [vmem:[%s11 + $0x1c] sm:$0xf]
        %v566 = vld [vmem:[%s6] sm:$0x1]
        %v567 = vld [vmem:[%s7] sm:$0x1]
        %v568 = vld [vmem:[#allocation8] sm:$0x1]
        %v569 = vld [vmem:[%s10] sm:$0x1]
        %v570 = vld [vmem:[%s12] sm:$0x1]
        %v571 = vpack.c.bf16 %v536, %v536
        %v572 = vpack.c.bf16 %v537, %v537
        %v577 = vunpack.c.l.b16 %v538
        %v578 = vunpack.c.l.b16 %v539
        %v579 = vunpack.c.l.b16 %v540
        %v580 = vunpack.c.l.b16 %v541
        %v581 = vpack.c.b16 %v578, %v577
        %v582 = vpack.c.b16 %v580, %v579
        %vm585 = vcmask 261120
        %v587 = vsel %vm585, %v571, 0
        %589 = vmatprep.subr.bf16.mxu0 0
        %590 = vmatpush1.bf16.msra.mxu0 %v581
        %591 = vmatprep.subr.bf16.mxu0 0
        %592 = vmatpush1.bf16.msra.mxu0 %v582
        %593 = vmatprep.subr.bf16.mxu0 0
        %594 = vmatpush1.bf16.msra.mxu0 0
        %595 = vmatprep.subr.bf16.mxu0 0
        %596 = vmatpush1.bf16.msra.mxu0 0
        %597 = vmatprep.subr.bf16.mxu0 0
        %598 = vmatpush1.bf16.msra.mxu0 0
        %599 = vmatprep.subr.bf16.mxu0 0
        %600 = vmatpush1.bf16.msra.mxu0 0
        %601 = vmatprep.subr.bf16.mxu0 0
        %602 = vmatpush1.bf16.msra.mxu0 0
        %603 = vmatprep.subr.bf16.mxu0 0
        %604 = vmatpush1.bf16.msra.mxu0 0
        %605 = vmatprep.subr.bf16.mxu0 0
        %606 = vmatpush1.bf16.msra.mxu0 0
        %607 = vmatprep.subr.bf16.mxu0 0
        %608 = vmatpush1.bf16.msra.mxu0 0
        %609 = vmatprep.subr.bf16.mxu0 0
        %610 = vmatpush1.bf16.msra.mxu0 0
        %611 = vmatprep.subr.bf16.mxu0 0
        %612 = vmatpush1.bf16.msra.mxu0 0
        %613 = vmatprep.subr.bf16.mxu0 0
        %614 = vmatpush1.bf16.msra.mxu0 0
        %615 = vmatprep.subr.bf16.mxu0 0
        %616 = vmatpush1.bf16.msra.mxu0 0
        %617 = vmatprep.subr.bf16.mxu0 0
        %618 = vmatpush1.bf16.msra.mxu0 0
        %619 = vmatprep.subr.bf16.mxu0 0
        %620 = vmatpush1.bf16.msra.mxu0 0
        %621 = vmatprep.mubr.bf16.mxu0 0
        %622 = vmatmul.mubr.bf16.gmra.mrb[0].mxu0 %v587
        %v623 = vpop.f32.mrb[0].mxu0
        %v624 = vadd.f32 0.0, %v623
        %v625 = vpop.f32.mrb[0].mxu0
        %v626 = vpop.f32.mrb[0].mxu0
        %v627 = vpop.f32.mrb[0].mxu0
        %628 = vdwg.mxu0
        %v629 = vmul.f32 %v624, 0.35355338
        %v634 = vunpack.c.l.b16 %v542
        %v635 = vunpack.c.l.b16 %v543
        %v636 = vunpack.c.l.b16 %v544
        %v637 = vunpack.c.l.b16 %v545
        %v638 = vpack.c.b16 %v635, %v634
        %v639 = vpack.c.b16 %v637, %v636
        %v643 = vsel %vm585, %v572, 0
        %645 = vmatprep.subr.bf16.mxu0 0
        %646 = vmatpush1.bf16.msra.mxu0 %v638
        %647 = vmatprep.subr.bf16.mxu0 0
        %648 = vmatpush1.bf16.msra.mxu0 %v639
        %649 = vmatprep.subr.bf16.mxu0 0
        %650 = vmatpush1.bf16.msra.mxu0 0
        %651 = vmatprep.subr.bf16.mxu0 0
        %652 = vmatpush1.bf16.msra.mxu0 0
        %653 = vmatprep.subr.bf16.mxu0 0
        %654 = vmatpush1.bf16.msra.mxu0 0
        %655 = vmatprep.subr.bf16.mxu0 0
        %656 = vmatpush1.bf16.msra.mxu0 0
        %657 = vmatprep.subr.bf16.mxu0 0
        %658 = vmatpush1.bf16.msra.mxu0 0
        %659 = vmatprep.subr.bf16.mxu0 0
        %660 = vmatpush1.bf16.msra.mxu0 0
        %661 = vmatprep.subr.bf16.mxu0 0
        %662 = vmatpush1.bf16.msra.mxu0 0
        %663 = vmatprep.subr.bf16.mxu0 0
        %664 = vmatpush1.bf16.msra.mxu0 0
        %665 = vmatprep.subr.bf16.mxu0 0
        %666 = vmatpush1.bf16.msra.mxu0 0
        %667 = vmatprep.subr.bf16.mxu0 0
        %668 = vmatpush1.bf16.msra.mxu0 0
        %669 = vmatprep.subr.bf16.mxu0 0
        %670 = vmatpush1.bf16.msra.mxu0 0
        %671 = vmatprep.subr.bf16.mxu0 0
        %672 = vmatpush1.bf16.msra.mxu0 0
        %673 = vmatprep.subr.bf16.mxu0 0
        %674 = vmatpush1.bf16.msra.mxu0 0
        %675 = vmatprep.subr.bf16.mxu0 0
        %676 = vmatpush1.bf16.msra.mxu0 0
        %677 = vmatprep.mubr.bf16.mxu0 0
        %678 = vmatmul.mubr.bf16.gmra.mrb[0].mxu0 %v643
        %v679 = vpop.f32.mrb[0].mxu0
        %v680 = vadd.f32 0.0, %v679
        %v681 = vpop.f32.mrb[0].mxu0
        %v682 = vpop.f32.mrb[0].mxu0
        %v683 = vpop.f32.mrb[0].mxu0
        %684 = vdwg.mxu0
        %v689 = vunpack.c.l.b16 %v546
        %v690 = vunpack.c.l.b16 %v547
        %v691 = vunpack.c.l.b16 %v548
        %v692 = vunpack.c.l.b16 %v549
        %v693 = vpack.c.b16 %v690, %v689
        %v694 = vpack.c.b16 %v692, %v691
        %697 = vmatprep.subr.bf16.mxu0 0
        %698 = vmatpush1.bf16.msra.mxu0 %v693
        %699 = vmatprep.subr.bf16.mxu0 0
        %700 = vmatpush1.bf16.msra.mxu0 %v694
        %701 = vmatprep.subr.bf16.mxu0 0
        %702 = vmatpush1.bf16.msra.mxu0 0
        %703 = vmatprep.subr.bf16.mxu0 0
        %704 = vmatpush1.bf16.msra.mxu0 0
        %705 = vmatprep.subr.bf16.mxu0 0
        %706 = vmatpush1.bf16.msra.mxu0 0
        %707 = vmatprep.subr.bf16.mxu0 0
        %708 = vmatpush1.bf16.msra.mxu0 0
        %709 = vmatprep.subr.bf16.mxu0 0
        %710 = vmatpush1.bf16.msra.mxu0 0
        %711 = vmatprep.subr.bf16.mxu0 0
        %712 = vmatpush1.bf16.msra.mxu0 0
        %713 = vmatprep.subr.bf16.mxu0 0
        %714 = vmatpush1.bf16.msra.mxu0 0
        %715 = vmatprep.subr.bf16.mxu0 0
        %716 = vmatpush1.bf16.msra.mxu0 0
        %717 = vmatprep.subr.bf16.mxu0 0
        %718 = vmatpush1.bf16.msra.mxu0 0
        %719 = vmatprep.subr.bf16.mxu0 0
        %720 = vmatpush1.bf16.msra.mxu0 0
        %721 = vmatprep.subr.bf16.mxu0 0
        %722 = vmatpush1.bf16.msra.mxu0 0
        %723 = vmatprep.subr.bf16.mxu0 0
        %724 = vmatpush1.bf16.msra.mxu0 0
        %725 = vmatprep.subr.bf16.mxu0 0
        %726 = vmatpush1.bf16.msra.mxu0 0
        %727 = vmatprep.subr.bf16.mxu0 0
        %728 = vmatpush1.bf16.msra.mxu0 0
        %729 = vmatprep.mubr.bf16.mxu0 0
        %730 = vmatmul.mubr.bf16.gmra.mrb[0].mxu0 %v643
        %v731 = vpop.f32.mrb[0].mxu0
        %v732 = vadd.f32 0.0, %v731
        %v733 = vpop.f32.mrb[0].mxu0
        %v734 = vpop.f32.mrb[0].mxu0
        %v735 = vpop.f32.mrb[0].mxu0
        %736 = vdwg.mxu0
        %v737 = vpack.c.bf16 %v629, %v629
        %v738 = vpack.c.bf16 %v680, %v680
        %v739 = vpack.c.bf16 %v732, %v732
        %vm740 = vcmask 64512
        %v742 = vsel %vm740, %v737, 0
        %v745 = vsel %vm740, %v738, 0
        %747 = vmatprep.subr.bf16.mxu0 0
        %748 = vmatpush1.bf16.xpose.msra.mxu0 %v745
        %749 = vmatprep.subr.bf16.mxu0 0
        %750 = vmatpush1.bf16.xpose.msra.mxu0 0
        %751 = vmatprep.subr.bf16.mxu0 0
        %752 = vmatpush1.bf16.xpose.msra.mxu0 0
        %753 = vmatprep.subr.bf16.mxu0 0
        %754 = vmatpush1.bf16.xpose.msra.mxu0 0
        %755 = vmatprep.subr.bf16.mxu0 0
        %756 = vmatpush1.bf16.xpose.msra.mxu0 0
        %757 = vmatprep.subr.bf16.mxu0 0
        %758 = vmatpush1.bf16.xpose.msra.mxu0 0
        %759 = vmatprep.subr.bf16.mxu0 0
        %760 = vmatpush1.bf16.xpose.msra.mxu0 0
        %761 = vmatprep.subr.bf16.mxu0 0
        %762 = vmatpush1.bf16.xpose.msra.mxu0 0
        %763 = vmatprep.subr.bf16.mxu0 0
        %764 = vmatpush1.bf16.xpose.msra.mxu0 0
        %765 = vmatprep.subr.bf16.mxu0 0
        %766 = vmatpush1.bf16.xpose.msra.mxu0 0
        %767 = vmatprep.subr.bf16.mxu0 0
        %768 = vmatpush1.bf16.xpose.msra.mxu0 0
        %769 = vmatprep.subr.bf16.mxu0 0
        %770 = vmatpush1.bf16.xpose.msra.mxu0 0
        %771 = vmatprep.subr.bf16.mxu0 0
        %772 = vmatpush1.bf16.xpose.msra.mxu0 0
        %773 = vmatprep.subr.bf16.mxu0 0
        %774 = vmatpush1.bf16.xpose.msra.mxu0 0
        %775 = vmatprep.subr.bf16.mxu0 0
        %776 = vmatpush1.bf16.xpose.msra.mxu0 0
        %777 = vmatprep.subr.bf16.mxu0 0
        %778 = vmatpush1.bf16.xpose.msra.mxu0 0
        %779 = vmatprep.mubr.bf16.mxu0 0
        %780 = vmatmul.mubr.bf16.gmra.mrb[0].mxu0 %v742
        %v781 = vpop.f32.mrb[0].mxu0
        %v782 = vadd.f32 0.0, %v781
        %v783 = vpop.f32.mrb[0].mxu0
        %v784 = vpop.f32.mrb[0].mxu0
        %v785 = vpop.f32.mrb[0].mxu0
        %786 = vdwg.mxu0
        %v787 = vsel %vm740, %v782, -inf
        %788 = vmax.xlane.f32.xlu0 %v787
        %v789 = vpop.xlane.xlu0 %788
        %v790 = vsub.f32 %v782, %v789
        %v791 = vmul.f32 %v790, 1.442695
        %v792 = vpow.pop %v791
        %v793 = vsel %vm740, %v792, 0.0
        %794 = vadd.xlane.f32.xlu0 %v793
        %v795 = vpop.xlane.xlu0 %794
        %v796 = vrcp.pop %v795
        %v797 = vmul.f32 %v792, %v796
        %v798 = vpack.c.bf16 %v797, %v797
        %v800 = vsel %vm740, %v798, 0
        %vm802 = vcmask 1043456
        %v804 = vsel %vm802, %v739, 0
        %806 = vmatprep.subr.bf16.mxu0 0
        %807 = vmatpush1.bf16.msra.mxu0 %v804
        %808 = vmatprep.subr.bf16.mxu0 0
        %809 = vmatpush1.bf16.msra.mxu0 0
        %810 = vmatprep.subr.bf16.mxu0 0
        %811 = vmatpush1.bf16.msra.mxu0 0
        %812 = vmatprep.subr.bf16.mxu0 0
        %813 = vmatpush1.bf16.msra.mxu0 0
        %814 = vmatprep.subr.bf16.mxu0 0
        %815 = vmatpush1.bf16.msra.mxu0 0
        %816 = vmatprep.subr.bf16.mxu0 0
        %817 = vmatpush1.bf16.msra.mxu0 0
        %818 = vmatprep.subr.bf16.mxu0 0
        %819 = vmatpush1.bf16.msra.mxu0 0
        %820 = vmatprep.subr.bf16.mxu0 0
        %821 = vmatpush1.bf16.msra.mxu0 0
        %822 = vmatprep.subr.bf16.mxu0 0
        %823 = vmatpush1.bf16.msra.mxu0 0
        %824 = vmatprep.subr.bf16.mxu0 0
        %825 = vmatpush1.bf16.msra.mxu0 0
        %826 = vmatprep.subr.bf16.mxu0 0
        %827 = vmatpush1.bf16.msra.mxu0 0
        %828 = vmatprep.subr.bf16.mxu0 0
        %829 = vmatpush1.bf16.msra.mxu0 0
        %830 = vmatprep.subr.bf16.mxu0 0
        %831 = vmatpush1.bf16.msra.mxu0 0
        %832 = vmatprep.subr.bf16.mxu0 0
        %833 = vmatpush1.bf16.msra.mxu0 0
        %834 = vmatprep.subr.bf16.mxu0 0
        %835 = vmatpush1.bf16.msra.mxu0 0
        %836 = vmatprep.subr.bf16.mxu0 0
        %837 = vmatpush1.bf16.msra.mxu0 0
        %838 = vmatprep.mubr.bf16.mxu0 0
        %839 = vmatmul.mubr.bf16.gmra.mrb[0].mxu0 %v800
        %v840 = vpop.f32.mrb[0].mxu0
        %v841 = vadd.f32 0.0, %v840
        %v842 = vpop.f32.mrb[0].mxu0
        %v843 = vpop.f32.mrb[0].mxu0
        %v844 = vpop.f32.mrb[0].mxu0
        %845 = vdwg.mxu0
        %847 = vrot.lane.b32.xlu0 %v737, 120
        %v848 = vpop.permute.xlu0 %847
        %850 = vrot.lane.b32.xlu0 %v738, 120
        %v851 = vpop.permute.xlu0 %850
        %v853 = vsel %vm740, %v848, 0
        %v856 = vsel %vm740, %v851, 0
        %858 = vmatprep.subr.bf16.mxu0 0
        %859 = vmatpush1.bf16.xpose.msra.mxu0 %v856
        %860 = vmatprep.subr.bf16.mxu0 0
        %861 = vmatpush1.bf16.xpose.msra.mxu0 0
        %862 = vmatprep.subr.bf16.mxu0 0
        %863 = vmatpush1.bf16.xpose.msra.mxu0 0
        %864 = vmatprep.subr.bf16.mxu0 0
        %865 = vmatpush1.bf16.xpose.msra.mxu0 0
        %866 = vmatprep.subr.bf16.mxu0 0
        %867 = vmatpush1.bf16.xpose.msra.mxu0 0
        %868 = vmatprep.subr.bf16.mxu0 0
        %869 = vmatpush1.bf16.xpose.msra.mxu0 0
        %870 = vmatprep.subr.bf16.mxu0 0
        %871 = vmatpush1.bf16.xpose.msra.mxu0 0
        %872 = vmatprep.subr.bf16.mxu0 0
        %873 = vmatpush1.bf16.xpose.msra.mxu0 0
        %874 = vmatprep.subr.bf16.mxu0 0
        %875 = vmatpush1.bf16.xpose.msra.mxu0 0
        %876 = vmatprep.subr.bf16.mxu0 0
        %877 = vmatpush1.bf16.xpose.msra.mxu0 0
        %878 = vmatprep.subr.bf16.mxu0 0
        %879 = vmatpush1.bf16.xpose.msra.mxu0 0
        %880 = vmatprep.subr.bf16.mxu0 0
        %881 = vmatpush1.bf16.xpose.msra.mxu0 0
        %882 = vmatprep.subr.bf16.mxu0 0
        %883 = vmatpush1.bf16.xpose.msra.mxu0 0
        %884 = vmatprep.subr.bf16.mxu0 0
        %885 = vmatpush1.bf16.xpose.msra.mxu0 0
        %886 = vmatprep.subr.bf16.mxu0 0
        %887 = vmatpush1.bf16.xpose.msra.mxu0 0
        %888 = vmatprep.subr.bf16.mxu0 0
        %889 = vmatpush1.bf16.xpose.msra.mxu0 0
        %890 = vmatprep.mubr.bf16.mxu0 0
        %891 = vmatmul.mubr.bf16.gmra.mrb[0].mxu0 %v853
        %v892 = vpop.f32.mrb[0].mxu0
        %v893 = vadd.f32 0.0, %v892
        %v894 = vpop.f32.mrb[0].mxu0
        %v895 = vpop.f32.mrb[0].mxu0
        %v896 = vpop.f32.mrb[0].mxu0
        %897 = vdwg.mxu0
        %v898 = vsel %vm740, %v893, -inf
        %899 = vmax.xlane.f32.xlu0 %v898
        %v900 = vpop.xlane.xlu0 %899
        %v901 = vsub.f32 %v893, %v900
        %v902 = vmul.f32 %v901, 1.442695
        %v903 = vpow.pop %v902
        %v904 = vsel %vm740, %v903, 0.0
        %905 = vadd.xlane.f32.xlu0 %v904
        %v906 = vpop.xlane.xlu0 %905
        %v907 = vrcp.pop %v906
        %v908 = vmul.f32 %v903, %v907
        %v909 = vpack.c.bf16 %v908, %v908
        %911 = vrot.lane.b32.xlu0 %v739, 120
        %v912 = vpop.permute.xlu0 %911
        %v914 = vsel %vm740, %v909, 0
        %v917 = vsel %vm802, %v912, 0
        %919 = vmatprep.subr.bf16.mxu0 0
        %920 = vmatpush1.bf16.msra.mxu0 %v917
        %921 = vmatprep.subr.bf16.mxu0 0
        %922 = vmatpush1.bf16.msra.mxu0 0
        %923 = vmatprep.subr.bf16.mxu0 0
        %924 = vmatpush1.bf16.msra.mxu0 0
        %925 = vmatprep.subr.bf16.mxu0 0
        %926 = vmatpush1.bf16.msra.mxu0 0
        %927 = vmatprep.subr.bf16.mxu0 0
        %928 = vmatpush1.bf16.msra.mxu0 0
        %929 = vmatprep.subr.bf16.mxu0 0
        %930 = vmatpush1.bf16.msra.mxu0 0
        %931 = vmatprep.subr.bf16.mxu0 0
        %932 = vmatpush1.bf16.msra.mxu0 0
        %933 = vmatprep.subr.bf16.mxu0 0
        %934 = vmatpush1.bf16.msra.mxu0 0
        %935 = vmatprep.subr.bf16.mxu0 0
        %936 = vmatpush1.bf16.msra.mxu0 0
        %937 = vmatprep.subr.bf16.mxu0 0
        %938 = vmatpush1.bf16.msra.mxu0 0
        %939 = vmatprep.subr.bf16.mxu0 0
        %940 = vmatpush1.bf16.msra.mxu0 0
        %941 = vmatprep.subr.bf16.mxu0 0
        %942 = vmatpush1.bf16.msra.mxu0 0
        %943 = vmatprep.subr.bf16.mxu0 0
        %944 = vmatpush1.bf16.msra.mxu0 0
        %945 = vmatprep.subr.bf16.mxu0 0
        %946 = vmatpush1.bf16.msra.mxu0 0
        %947 = vmatprep.subr.bf16.mxu0 0
        %948 = vmatpush1.bf16.msra.mxu0 0
        %949 = vmatprep.subr.bf16.mxu0 0
        %950 = vmatpush1.bf16.msra.mxu0 0
        %951 = vmatprep.mubr.bf16.mxu0 0
        %952 = vmatmul.mubr.bf16.gmra.mrb[0].mxu0 %v914
        %v953 = vpop.f32.mrb[0].mxu0
        %v954 = vadd.f32 0.0, %v953
        %v955 = vpop.f32.mrb[0].mxu0
        %v956 = vpop.f32.mrb[0].mxu0
        %v957 = vpop.f32.mrb[0].mxu0
        %958 = vdwg.mxu0
        %959 = vrot.lane.b32.xlu0 %v737, 112
        %v960 = vpop.permute.xlu0 %959
        %961 = vrot.lane.b32.xlu0 %v738, 112
        %v962 = vpop.permute.xlu0 %961
        %v964 = vsel %vm740, %v960, 0
        %v967 = vsel %vm740, %v962, 0
        %969 = vmatprep.subr.bf16.mxu0 0
        %970 = vmatpush1.bf16.xpose.msra.mxu0 %v967
        %971 = vmatprep.subr.bf16.mxu0 0
        %972 = vmatpush1.bf16.xpose.msra.mxu0 0
        %973 = vmatprep.subr.bf16.mxu0 0
        %974 = vmatpush1.bf16.xpose.msra.mxu0 0
        %975 = vmatprep.subr.bf16.mxu0 0
        %976 = vmatpush1.bf16.xpose.msra.mxu0 0
        %977 = vmatprep.subr.bf16.mxu0 0
        %978 = vmatpush1.bf16.xpose.msra.mxu0 0
        %979 = vmatprep.subr.bf16.mxu0 0
        %980 = vmatpush1.bf16.xpose.msra.mxu0 0
        %981 = vmatprep.subr.bf16.mxu0 0
        %982 = vmatpush1.bf16.xpose.msra.mxu0 0
        %983 = vmatprep.subr.bf16.mxu0 0
        %984 = vmatpush1.bf16.xpose.msra.mxu0 0
        %985 = vmatprep.subr.bf16.mxu0 0
        %986 = vmatpush1.bf16.xpose.msra.mxu0 0
        %987 = vmatprep.subr.bf16.mxu0 0
        %988 = vmatpush1.bf16.xpose.msra.mxu0 0
        %989 = vmatprep.subr.bf16.mxu0 0
        %990 = vmatpush1.bf16.xpose.msra.mxu0 0
        %991 = vmatprep.subr.bf16.mxu0 0
        %992 = vmatpush1.bf16.xpose.msra.mxu0 0
        %993 = vmatprep.subr.bf16.mxu0 0
        %994 = vmatpush1.bf16.xpose.msra.mxu0 0
        %995 = vmatprep.subr.bf16.mxu0 0
        %996 = vmatpush1.bf16.xpose.msra.mxu0 0
        %997 = vmatprep.subr.bf16.mxu0 0
        %998 = vmatpush1.bf16.xpose.msra.mxu0 0
        %999 = vmatprep.subr.bf16.mxu0 0
        %1000 = vmatpush1.bf16.xpose.msra.mxu0 0
        %1001 = vmatprep.mubr.bf16.mxu0 0
        %1002 = vmatmul.mubr.bf16.gmra.mrb[0].mxu0 %v964
        %v1003 = vpop.f32.mrb[0].mxu0
        %v1004 = vadd.f32 0.0, %v1003
        %v1005 = vpop.f32.mrb[0].mxu0
        %v1006 = vpop.f32.mrb[0].mxu0
        %v1007 = vpop.f32.mrb[0].mxu0
        %1008 = vdwg.mxu0
        %v1009 = vsel %vm740, %v1004, -inf
        %1010 = vmax.xlane.f32.xlu0 %v1009
        %v1011 = vpop.xlane.xlu0 %1010
        %v1012 = vsub.f32 %v1004, %v1011
        %v1013 = vmul.f32 %v1012, 1.442695
        %v1014 = vpow.pop %v1013
        %v1015 = vsel %vm740, %v1014, 0.0
        %1016 = vadd.xlane.f32.xlu0 %v1015
        %v1017 = vpop.xlane.xlu0 %1016
        %v1018 = vrcp.pop %v1017
        %v1019 = vmul.f32 %v1014, %v1018
        %v1020 = vpack.c.bf16 %v1019, %v1019
        %1021 = vrot.lane.b32.xlu0 %v739, 112
        %v1022 = vpop.permute.xlu0 %1021
        %v1024 = vsel %vm740, %v1020, 0
        %v1027 = vsel %vm802, %v1022, 0
        %1029 = vmatprep.subr.bf16.mxu0 0
        %1030 = vmatpush1.bf16.msra.mxu0 %v1027
        %1031 = vmatprep.subr.bf16.mxu0 0
        %1032 = vmatpush1.bf16.msra.mxu0 0
        %1033 = vmatprep.subr.bf16.mxu0 0
        %1034 = vmatpush1.bf16.msra.mxu0 0
        %1035 = vmatprep.subr.bf16.mxu0 0
        %1036 = vmatpush1.bf16.msra.mxu0 0
        %1037 = vmatprep.subr.bf16.mxu0 0
        %1038 = vmatpush1.bf16.msra.mxu0 0
        %1039 = vmatprep.subr.bf16.mxu0 0
        %1040 = vmatpush1.bf16.msra.mxu0 0
        %1041 = vmatprep.subr.bf16.mxu0 0
        %1042 = vmatpush1.bf16.msra.mxu0 0
        %1043 = vmatprep.subr.bf16.mxu0 0
        %1044 = vmatpush1.bf16.msra.mxu0 0
        %1045 = vmatprep.subr.bf16.mxu0 0
        %1046 = vmatpush1.bf16.msra.mxu0 0
        %1047 = vmatprep.subr.bf16.mxu0 0
        %1048 = vmatpush1.bf16.msra.mxu0 0
        %1049 = vmatprep.subr.bf16.mxu0 0
        %1050 = vmatpush1.bf16.msra.mxu0 0
        %1051 = vmatprep.subr.bf16.mxu0 0
        %1052 = vmatpush1.bf16.msra.mxu0 0
        %1053 = vmatprep.subr.bf16.mxu0 0
        %1054 = vmatpush1.bf16.msra.mxu0 0
        %1055 = vmatprep.subr.bf16.mxu0 0
        %1056 = vmatpush1.bf16.msra.mxu0 0
        %1057 = vmatprep.subr.bf16.mxu0 0
        %1058 = vmatpush1.bf16.msra.mxu0 0
        %1059 = vmatprep.subr.bf16.mxu0 0
        %1060 = vmatpush1.bf16.msra.mxu0 0
        %1061 = vmatprep.mubr.bf16.mxu0 0
        %1062 = vmatmul.mubr.bf16.gmra.mrb[0].mxu0 %v1024
        %v1063 = vpop.f32.mrb[0].mxu0
        %v1064 = vadd.f32 0.0, %v1063
        %v1065 = vpop.f32.mrb[0].mxu0
        %v1066 = vpop.f32.mrb[0].mxu0
        %v1067 = vpop.f32.mrb[0].mxu0
        %1068 = vdwg.mxu0
        %1069 = vrot.lane.b32.xlu0 %v737, 104
        %v1070 = vpop.permute.xlu0 %1069
        %1071 = vrot.lane.b32.xlu0 %v738, 104
        %v1072 = vpop.permute.xlu0 %1071
        %v1074 = vsel %vm740, %v1070, 0
        %v1077 = vsel %vm740, %v1072, 0
        %1079 = vmatprep.subr.bf16.mxu0 0
        %1080 = vmatpush1.bf16.xpose.msra.mxu0 %v1077
        %1081 = vmatprep.subr.bf16.mxu0 0
        %1082 = vmatpush1.bf16.xpose.msra.mxu0 0
        %1083 = vmatprep.subr.bf16.mxu0 0
        %1084 = vmatpush1.bf16.xpose.msra.mxu0 0
        %1085 = vmatprep.subr.bf16.mxu0 0
        %1086 = vmatpush1.bf16.xpose.msra.mxu0 0
        %1087 = vmatprep.subr.bf16.mxu0 0
        %1088 = vmatpush1.bf16.xpose.msra.mxu0 0
        %1089 = vmatprep.subr.bf16.mxu0 0
        %1090 = vmatpush1.bf16.xpose.msra.mxu0 0
        %1091 = vmatprep.subr.bf16.mxu0 0
        %1092 = vmatpush1.bf16.xpose.msra.mxu0 0
        %1093 = vmatprep.subr.bf16.mxu0 0
        %1094 = vmatpush1.bf16.xpose.msra.mxu0 0
        %1095 = vmatprep.subr.bf16.mxu0 0
        %1096 = vmatpush1.bf16.xpose.msra.mxu0 0
        %1097 = vmatprep.subr.bf16.mxu0 0
        %1098 = vmatpush1.bf16.xpose.msra.mxu0 0
        %1099 = vmatprep.subr.bf16.mxu0 0
        %1100 = vmatpush1.bf16.xpose.msra.mxu0 0
        %1101 = vmatprep.subr.bf16.mxu0 0
        %1102 = vmatpush1.bf16.xpose.msra.mxu0 0
        %1103 = vmatprep.subr.bf16.mxu0 0
        %1104 = vmatpush1.bf16.xpose.msra.mxu0 0
        %1105 = vmatprep.subr.bf16.mxu0 0
        %1106 = vmatpush1.bf16.xpose.msra.mxu0 0
        %1107 = vmatprep.subr.bf16.mxu0 0
        %1108 = vmatpush1.bf16.xpose.msra.mxu0 0
        %1109 = vmatprep.subr.bf16.mxu0 0
        %1110 = vmatpush1.bf16.xpose.msra.mxu0 0
        %1111 = vmatprep.mubr.bf16.mxu0 0
        %1112 = vmatmul.mubr.bf16.gmra.mrb[0].mxu0 %v1074
        %v1113 = vpop.f32.mrb[0].mxu0
        %v1114 = vadd.f32 0.0, %v1113
        %v1115 = vpop.f32.mrb[0].mxu0
        %v1116 = vpop.f32.mrb[0].mxu0
        %v1117 = vpop.f32.mrb[0].mxu0
        %1118 = vdwg.mxu0
        %v1119 = vsel %vm740, %v1114, -inf
        %1120 = vmax.xlane.f32.xlu0 %v1119
        %v1121 = vpop.xlane.xlu0 %1120
        %v1122 = vsub.f32 %v1114, %v1121
        %v1123 = vmul.f32 %v1122, 1.442695
        %v1124 = vpow.pop %v1123
        %v1125 = vsel %vm740, %v1124, 0.0
        %1126 = vadd.xlane.f32.xlu0 %v1125
        %v1127 = vpop.xlane.xlu0 %1126
        %v1128 = vrcp.pop %v1127
        %v1129 = vmul.f32 %v1124, %v1128
        %v1130 = vpack.c.bf16 %v1129, %v1129
        %1131 = vrot.lane.b32.xlu0 %v739, 104
        %v1132 = vpop.permute.xlu0 %1131
        %v1134 = vsel %vm740, %v1130, 0
        %v1137 = vsel %vm802, %v1132, 0
        %1139 = vmatprep.subr.bf16.mxu0 0
        %1140 = vmatpush1.bf16.msra.mxu0 %v1137
        %1141 = vmatprep.subr.bf16.mxu0 0
        %1142 = vmatpush1.bf16.msra.mxu0 0
        %1143 = vmatprep.subr.bf16.mxu0 0
        %1144 = vmatpush1.bf16.msra.mxu0 0
        %1145 = vmatprep.subr.bf16.mxu0 0
        %1146 = vmatpush1.bf16.msra.mxu0 0
        %1147 = vmatprep.subr.bf16.mxu0 0
        %1148 = vmatpush1.bf16.msra.mxu0 0
        %1149 = vmatprep.subr.bf16.mxu0 0
        %1150 = vmatpush1.bf16.msra.mxu0 0
        %1151 = vmatprep.subr.bf16.mxu0 0
        %1152 = vmatpush1.bf16.msra.mxu0 0
        %1153 = vmatprep.subr.bf16.mxu0 0
        %1154 = vmatpush1.bf16.msra.mxu0 0
        %1155 = vmatprep.subr.bf16.mxu0 0
        %1156 = vmatpush1.bf16.msra.mxu0 0
        %1157 = vmatprep.subr.bf16.mxu0 0
        %1158 = vmatpush1.bf16.msra.mxu0 0
        %1159 = vmatprep.subr.bf16.mxu0 0
        %1160 = vmatpush1.bf16.msra.mxu0 0
        %1161 = vmatprep.subr.bf16.mxu0 0
        %1162 = vmatpush1.bf16.msra.mxu0 0
        %1163 = vmatprep.subr.bf16.mxu0 0
        %1164 = vmatpush1.bf16.msra.mxu0 0
        %1165 = vmatprep.subr.bf16.mxu0 0
        %1166 = vmatpush1.bf16.msra.mxu0 0
        %1167 = vmatprep.subr.bf16.mxu0 0
        %1168 = vmatpush1.bf16.msra.mxu0 0
        %1169 = vmatprep.subr.bf16.mxu0 0
        %1170 = vmatpush1.bf16.msra.mxu0 0
        %1171 = vmatprep.mubr.bf16.mxu0 0
        %1172 = vmatmul.mubr.bf16.gmra.mrb[0].mxu0 %v1134
        %v1173 = vpop.f32.mrb[0].mxu0
        %v1174 = vadd.f32 0.0, %v1173
        %v1175 = vpop.f32.mrb[0].mxu0
        %v1176 = vpop.f32.mrb[0].mxu0
        %v1177 = vpop.f32.mrb[0].mxu0
        %1178 = vdwg.mxu0
        %1180 = vrot.lane.b32.xlu0 %v954, 8
        %v1181 = vpop.permute.xlu0 %1180
        %1184 = vrot.lane.b32.xlu0 %v1064, 16
        %v1185 = vpop.permute.xlu0 %1184
        %1188 = vrot.lane.b32.xlu0 %v1174, 24
        %v1189 = vpop.permute.xlu0 %1188
        %v1191 = vsel %vm740, %v841, %v1181
        %vm1192 = vcmask 130048
        %v1193 = vsel %vm1192, %v1191, %v1185
        %vm1194 = vcmask 195584
        %v1195 = vsel %vm1194, %v1193, %v1189
        %v1196 = vpack.c.bf16 %v1195, %v1195
        %v1198 = vlaneseq
        %v1199 = vshrl.u32 %v1198, 7
        %v1200 = vsub.s32 0, %v1199
        %v1201 = vrot.slane %v566, %v1200
        %v1207 = vunpack.c.l.b16 %v550
        %v1208 = vunpack.c.l.b16 %v551
        %v1209 = vunpack.c.l.b16 %v552
        %v1210 = vunpack.c.l.b16 %v553
        %v1211 = vpack.c.b16 %v1208, %v1207
        %v1212 = vpack.c.b16 %v1210, %v1209
        %v1216 = vsel %vm585, %v1196, 0
        %1218 = vmatprep.subr.bf16.mxu0 0
        %1219 = vmatpush1.bf16.msra.mxu0 %v1211
        %1220 = vmatprep.subr.bf16.mxu0 0
        %1221 = vmatpush1.bf16.msra.mxu0 %v1212
        %1222 = vmatprep.subr.bf16.mxu0 0
        %1223 = vmatpush1.bf16.msra.mxu0 0
        %1224 = vmatprep.subr.bf16.mxu0 0
        %1225 = vmatpush1.bf16.msra.mxu0 0
        %1226 = vmatprep.subr.bf16.mxu0 0
        %1227 = vmatpush1.bf16.msra.mxu0 0
        %1228 = vmatprep.subr.bf16.mxu0 0
        %1229 = vmatpush1.bf16.msra.mxu0 0
        %1230 = vmatprep.subr.bf16.mxu0 0
        %1231 = vmatpush1.bf16.msra.mxu0 0
        %1232 = vmatprep.subr.bf16.mxu0 0
        %1233 = vmatpush1.bf16.msra.mxu0 0
        %1234 = vmatprep.subr.bf16.mxu0 0
        %1235 = vmatpush1.bf16.msra.mxu0 0
        %1236 = vmatprep.subr.bf16.mxu0 0
        %1237 = vmatpush1.bf16.msra.mxu0 0
        %1238 = vmatprep.subr.bf16.mxu0 0
        %1239 = vmatpush1.bf16.msra.mxu0 0
        %1240 = vmatprep.subr.bf16.mxu0 0
        %1241 = vmatpush1.bf16.msra.mxu0 0
        %1242 = vmatprep.subr.bf16.mxu0 0
        %1243 = vmatpush1.bf16.msra.mxu0 0
        %1244 = vmatprep.subr.bf16.mxu0 0
        %1245 = vmatpush1.bf16.msra.mxu0 0
        %1246 = vmatprep.subr.bf16.mxu0 0
        %1247 = vmatpush1.bf16.msra.mxu0 0
        %1248 = vmatprep.subr.bf16.mxu0 0
        %1249 = vmatpush1.bf16.msra.mxu0 0
        %1250 = vmatprep.mubr.bf16.mxu0 0
        %1251 = vmatmul.mubr.bf16.gmra.mrb[0].mxu0 %v1216
        %v1252 = vpop.f32.mrb[0].mxu0
        %v1253 = vadd.f32 %v1201, %v1252
        %v1254 = vpop.f32.mrb[0].mxu0
        %v1255 = vpop.f32.mrb[0].mxu0
        %v1256 = vpop.f32.mrb[0].mxu0
        %1257 = vdwg.mxu0
        %v1258 = vadd.f32 %v536, %v1253
        %v1259 = vsel %vm585, %v1258, 0.0
        %1260 = vadd.xlane.f32.xlu0 %v1259
        %v1261 = vpop.xlane.xlu0 %1260
        %v1262 = vrcp.pop 32.0
        %v1263 = vmul.f32 %v1261, %v1262
        %v1264 = vsub.f32 %v1258, %v1263
        %v1265 = vmul.f32 %v1264, %v1264
        %v1266 = vsel %vm585, %v1265, 0.0
        %1267 = vadd.xlane.f32.xlu0 %v1266
        %v1268 = vpop.xlane.xlu0 %1267
        %v1269 = vmul.f32 %v1268, %v1262
        %v1270 = vadd.f32 %v1269, 1e-05
        %v1271 = vrsqrt.pop %v1270
        %v1272 = vmul.f32 %v1264, %v1271
        %v1274 = vlaneseq
        %v1275 = vshrl.u32 %v1274, 7
        %v1276 = vsub.s32 0, %v1275
        %v1277 = vrot.slane %v567, %v1276
        %v1279 = vmul.f32 %v1272, %v1277
        %v1281 = vlaneseq
        %v1282 = vshrl.u32 %v1281, 7
        %v1283 = vsub.s32 0, %v1282
        %v1284 = vrot.slane %v568, %v1283
        %v1286 = vadd.f32 %v1279, %v1284
        %v1287 = vpack.c.bf16 %v1286, %v1286
        %v1289 = vlaneseq
        %v1290 = vshrl.u32 %v1289, 7
        %v1291 = vsub.s32 0, %v1290
        %v1292 = vrot.slane %v569, %v1291
        %v1298 = vunpack.c.l.b16 %v554
        %v1299 = vunpack.c.l.b16 %v555
        %v1300 = vunpack.c.l.b16 %v556
        %v1301 = vunpack.c.l.b16 %v557
        %v1302 = vpack.c.b16 %v1299, %v1298
        %v1303 = vpack.c.b16 %v1301, %v1300
        %v1307 = vsel %vm585, %v1287, 0
        %1309 = vmatprep.subr.bf16.mxu0 0
        %1310 = vmatpush1.bf16.msra.mxu0 %v1302
        %1311 = vmatprep.subr.bf16.mxu0 0
        %1312 = vmatpush1.bf16.msra.mxu0 %v1303
        %1313 = vmatprep.subr.bf16.mxu0 0
        %1314 = vmatpush1.bf16.msra.mxu0 0
        %1315 = vmatprep.subr.bf16.mxu0 0
        %1316 = vmatpush1.bf16.msra.mxu0 0
        %1317 = vmatprep.subr.bf16.mxu0 0
        %1318 = vmatpush1.bf16.msra.mxu0 0
        %1319 = vmatprep.subr.bf16.mxu0 0
        %1320 = vmatpush1.bf16.msra.mxu0 0
        %1321 = vmatprep.subr.bf16.mxu0 0
        %1322 = vmatpush1.bf16.msra.mxu0 0
        %1323 = vmatprep.subr.bf16.mxu0 0
        %1324 = vmatpush1.bf16.msra.mxu0 0
        %1325 = vmatprep.subr.bf16.mxu0 0
        %1326 = vmatpush1.bf16.msra.mxu0 0
        %1327 = vmatprep.subr.bf16.mxu0 0
        %1328 = vmatpush1.bf16.msra.mxu0 0
        %1329 = vmatprep.subr.bf16.mxu0 0
        %1330 = vmatpush1.bf16.msra.mxu0 0
        %1331 = vmatprep.subr.bf16.mxu0 0
        %1332 = vmatpush1.bf16.msra.mxu0 0
        %1333 = vmatprep.subr.bf16.mxu0 0
        %1334 = vmatpush1.bf16.msra.mxu0 0
        %1335 = vmatprep.subr.bf16.mxu0 0
        %1336 = vmatpush1.bf16.msra.mxu0 0
        %1337 = vmatprep.subr.bf16.mxu0 0
        %1338 = vmatpush1.bf16.msra.mxu0 0
        %1339 = vmatprep.subr.bf16.mxu0 0
        %1340 = vmatpush1.bf16.msra.mxu0 0
        %1341 = vmatprep.mubr.bf16.mxu0 0
        %1342 = vmatmul.mubr.bf16.gmra.mrb[0].mxu0 %v1307
        %v1343 = vpop.f32.mrb[0].mxu0
        %v1344 = vadd.f32 %v1292, %v1343
        %v1345 = vpop.f32.mrb[0].mxu0
        %v1346 = vpop.f32.mrb[0].mxu0
        %v1347 = vpop.f32.mrb[0].mxu0
        %1348 = vdwg.mxu0
        %v1349 = vmul.f32 %v1344, 1.702
        %v1350 = vxor.u32 %v1349, 2147483648
        %v1351 = vmul.f32 %v1350, 1.442695
        %v1352 = vpow.pop %v1351
        %v1353 = vadd.f32 %v1352, 1.0
        %v1354 = vrcp.pop %v1353
        %v1355 = vmul.f32 1.0, %v1354
        %v1356 = vmul.f32 %v1344, %v1355
        %v1357 = vpack.c.bf16 %v1356, %v1356
        %v1359 = vlaneseq
        %v1360 = vshrl.u32 %v1359, 7
        %v1361 = vsub.s32 0, %v1360
        %v1362 = vrot.slane %v570, %v1361
        %v1372 = vunpack.c.l.b16 %v558
        %v1373 = vunpack.c.l.b16 %v559
        %v1374 = vunpack.c.l.b16 %v560
        %v1375 = vunpack.c.l.b16 %v561
        %v1376 = vunpack.c.l.b16 %v562
        %v1377 = vunpack.c.l.b16 %v563
        %v1378 = vunpack.c.l.b16 %v564
        %v1379 = vunpack.c.l.b16 %v565
        %v1380 = vpack.c.b16 %v1373, %v1372
        %v1381 = vpack.c.b16 %v1375, %v1374
        %v1382 = vpack.c.b16 %v1377, %v1376
        %v1383 = vpack.c.b16 %v1379, %v1378
        %vm1388 = vcmask 523264
        %v1390 = vsel %vm1388, %v1357, 0
        %1392 = vmatprep.subr.bf16.mxu0 0
        %1393 = vmatpush1.bf16.msra.mxu0 %v1380
        %1394 = vmatprep.subr.bf16.mxu0 0
        %1395 = vmatpush1.bf16.msra.mxu0 %v1381
        %1396 = vmatprep.subr.bf16.mxu0 0
        %1397 = vmatpush1.bf16.msra.mxu0 %v1382
        %1398 = vmatprep.subr.bf16.mxu0 0
        %1399 = vmatpush1.bf16.msra.mxu0 %v1383
        %1400 = vmatprep.subr.bf16.mxu0 0
        %1401 = vmatpush1.bf16.msra.mxu0 0
        %1402 = vmatprep.subr.bf16.mxu0 0
        %1403 = vmatpush1.bf16.msra.mxu0 0
        %1404 = vmatprep.subr.bf16.mxu0 0
        %1405 = vmatpush1.bf16.msra.mxu0 0
        %1406 = vmatprep.subr.bf16.mxu0 0
        %1407 = vmatpush1.bf16.msra.mxu0 0
        %1408 = vmatprep.subr.bf16.mxu0 0
        %1409 = vmatpush1.bf16.msra.mxu0 0
        %1410 = vmatprep.subr.bf16.mxu0 0
        %1411 = vmatpush1.bf16.msra.mxu0 0
        %1412 = vmatprep.subr.bf16.mxu0 0
        %1413 = vmatpush1.bf16.msra.mxu0 0
        %1414 = vmatprep.subr.bf16.mxu0 0
        %1415 = vmatpush1.bf16.msra.mxu0 0
        %1416 = vmatprep.subr.bf16.mxu0 0
        %1417 = vmatpush1.bf16.msra.mxu0 0
        %1418 = vmatprep.subr.bf16.mxu0 0
        %1419 = vmatpush1.bf16.msra.mxu0 0
        %1420 = vmatprep.subr.bf16.mxu0 0
        %1421 = vmatpush1.bf16.msra.mxu0 0
        %1422 = vmatprep.subr.bf16.mxu0 0
        %1423 = vmatpush1.bf16.msra.mxu0 0
        %1424 = vmatprep.mubr.bf16.mxu0 0
        %1425 = vmatmul.mubr.bf16.gmra.mrb[0].mxu0 %v1390
        %v1426 = vpop.f32.mrb[0].mxu0
        %v1427 = vadd.f32 %v1362, %v1426
        %v1428 = vpop.f32.mrb[0].mxu0
        %v1429 = vpop.f32.mrb[0].mxu0
        %v1430 = vpop.f32.mrb[0].mxu0
        %1431 = vdwg.mxu0
        %v1432 = vadd.f32 %v1258, %v1427
        %1433 = vst.msk [vmem:[%s523] sm:$0xff] %vm585, %v1432
        %s1434 = sand.u32 %s337, 1
        %s1435 = scalar_lea.sflag [#allocation4], %s1434
        %s1436 = sand.u32 %s337, 1
        %s1437 = smul.addr %s1436, 8
        %s1438 = scalar_lea.vmem [#allocation10], %s1437
        // Predicated region
        $region89: #{tpu_custom_call.1} parent=71 // pred_check
          %p1439 = pneg %p347
        $region90: #{tpu_custom_call.1} parent=71 // pred_check_branch
          %1441 = sbr.rel (%p1439) target = $region92
        $region91: #{tpu_custom_call.1} parent=71 // pred_region
          %s1443 = ssub.s32 128, 128
          %1444 = vsyncadd %s1435, %s1443
          %s1445 = sadd.s32 %s35, %s34
          %s1446 = smul.addr %s1445, 128
          %s1447 = scalar_lea.hbm %s13, %s1446
          %s1449 = sshll.u32 %s1438, 4
          %s1450 = int_to_ptr.vmem [resolvable:$true] %s1449
          %1452 = dma.vmem_to_hbm [thread:$0]  %s1450, 128, %s1447, %s1435
        $region92: #{tpu_custom_call.1} parent=71 // pred_fallthru
          _
      $region72: #{tpu_custom_call.1} parent=5 // pred_fallthru
        _
      %p1453 = scmp.le.s32.totalorder 2, %s25
      // Predicated region
      $region93: #{tpu_custom_call.1} parent=5 // pred_check
        %p1454 = pneg %p1453
      $region94: #{tpu_custom_call.1} parent=5 // pred_check_branch
        %1456 = sbr.rel (%p1454) target = $region96
      $region95: #{tpu_custom_call.1} parent=5 // pred_region
        %s1457 = ssub.s32 %s25, 2
        // Predicated region
        $region97: #{tpu_custom_call.1} parent=95 // pred_check
          %p1458 = pneg %p353
        $region98: #{tpu_custom_call.1} parent=95 // pred_check_branch
          %1460 = sbr.rel (%p1458) target = $region100
        $region99: #{tpu_custom_call.1} parent=95 // pred_region
          %s1461 = sand.u32 %s338, 1
          %s1462 = scalar_lea.sflag [#allocation4], %s1461
          %s1463 = sand.u32 %s338, 1
          %s1464 = smul.addr %s1463, 8
          %s1465 = scalar_lea.vmem [#allocation10], %s1464
          %1466 = dma.done %s1462, 128
        $region100: #{tpu_custom_call.1} parent=95 // pred_fallthru
          _
      $region96: #{tpu_custom_call.1} parent=5 // pred_fallthru
        _
    $region6: #{tpu_custom_call.1} parent=1 // loop_footer
      %s29 = sadd.s32 1, %s25
    $region7: #{tpu_custom_call.1} parent=1 // loop_footer_branch
      %24 = sbr.rel target = $region3
    $region8: #{tpu_custom_call.1} parent=1 // loop_exit
      _
    %1467 = vsyncpa [#allocation3], 1
    %s1468 = scalar_lea.sflag [#allocation3], 1
    %1469 = vsyncpa %s1468, 1
    %1470 = vsyncpa [#allocation6], 1
    %1471 = vsyncpa [#allocation9], 1
    %1472 = vsyncpa [#allocation4], 1
    %s1473 = scalar_lea.sflag [#allocation4], 1
    %1474 = vsyncpa %s1473, 1

// kernel: tpu_custom_call.1
$region0: #{tpu_custom_call.1}
  #allocation0 [shape = 'u32[]', space=smem, size = 0x4, offset = 0x4, fixed_abs, tag = 'smem constant byte address 0x4 - core index']
  #allocation1 [shape = 'u32[144,128]{1,0:T(1,128)}', space=vmem, size = 0x12000, scoped, tag = 'internal scratch']
  %s0 = inlined_call_operand.vmem [shape: f32[2,8,32], index: 0, kind: input, shape index: {}]
  %s1 = inlined_call_operand.vmem [shape: f32[2,8,32], index: 1, kind: input, shape index: {}]
  %s2 = inlined_call_operand.vmem [shape: bf16[32,32], index: 2, kind: input, shape index: {}]
  %s3 = inlined_call_operand.hbm [shape: bf16[32,32], index: 3, kind: input, shape index: {}]
  %s4 = inlined_call_operand.hbm [shape: bf16[32,32], index: 4, kind: input, shape index: {}]
  %s5 = inlined_call_operand.hbm [shape: bf16[32,32], index: 5, kind: input, shape index: {}]
  %s6 = inlined_call_operand.vmem [shape: f32[1,32], index: 6, kind: input, shape index: {}]
  %s7 = inlined_call_operand.vmem [shape: f32[1,32], index: 7, kind: input, shape index: {}]
  %s8 = inlined_call_operand.hbm [shape: f32[1,32], index: 8, kind: input, shape index: {}]
  %s9 = inlined_call_operand.vmem [shape: bf16[32,64], index: 9, kind: input, shape index: {}]
  %s10 = inlined_call_operand.vmem [shape: f32[1,64], index: 10, kind: input, shape index: {}]
  %s11 = inlined_call_operand.vmem [shape: bf16[64,32], index: 11, kind: input, shape index: {}]
  %s12 = inlined_call_operand.vmem [shape: f32[1,32], index: 12, kind: input, shape index: {}]
  %s13 = inlined_call_operand.hbm [shape: f32[2,8,32], index: 13, kind: output, shape index: {}]
  %s14 = sld [smem:[#allocation0]]
  $region101: #{tpu_custom_call.1} parent=0
    _
  %s16 = ssub.s32 1, %s14
  %s17 = scalar_select 0, %s16, %s14
  $region1: #{tpu_custom_call.1} parent=0
    #allocation2 [shape = 'u8[8192]{0}', space=vmem, size = 0x2000, scoped, tag = 'input window, operand 3, single buffered']
    #allocation3 [shape = 's32[2]{0}', space=sflag, size = 0x8, scoped, tag = 'scoped memory for tpu_custom_call.1']
    #allocation4 [shape = 's32[2]{0}', space=sflag, size = 0x8, scoped, tag = 'scoped memory for tpu_custom_call.1']
    #allocation5 [shape = 'u8[8192]{0}', space=vmem, size = 0x2000, scoped, tag = 'input window, operand 4, single buffered']
    #allocation6 [shape = 's32[1]{0}', space=sflag, size = 0x4, scoped, tag = 'scoped memory for tpu_custom_call.1']
    #allocation7 [shape = 'u8[8192]{0}', space=vmem, size = 0x2000, scoped, tag = 'input window, operand 5, single buffered']
    #allocation8 [shape = 'u8[512]{0}', space=vmem, size = 0x400, scoped, tag = 'input window, operand 8, single buffered']
    #allocation9 [shape = 's32[1]{0}', space=sflag, size = 0x4, scoped, tag = 'scoped memory for tpu_custom_call.1']
    #allocation10 [shape = 'u8[8192]{0}', space=vmem, size = 0x2000, scoped, tag = 'output window, operand 0']
    %18 = vsyncpa [#allocation3], 0
    %19 = vsyncpa [#allocation6], 0
    %20 = vsyncpa [#allocation9], 0
    %21 = vsyncpa [#allocation4], 0
    %s22 = scalar_lea.sflag [#allocation4], 1
    %23 = vsyncpa %s22, 0
    loop: start=0, step=1, limit=4
    $region2: #{tpu_custom_call.1} parent=1 // loop_pre_header
      _
    $region3: #{tpu_custom_call.1} parent=1 // loop_header
      %s25 = sphi 0, %s29
      %p26 = scmp.ge.s32.totalorder %s25, 4
      %s32 = sphi 0, %s44
      %s33 = sphi 0, %s40
      %s34 = sphi 0, %s32
      %s35 = sphi 0, %s33
      %s36 = sphi 0, %s34
      %s37 = sphi 0, %s35
      %s49 = sphi 0, %s51
      %s52 = sphi 0, %s49
      %s53 = sphi 0, %s52
      %s69 = sphi 0, %s53
      %s75 = sphi 0, %s77
      %s78 = sphi 0, %s75
      %s79 = sphi 0, %s78
      %s95 = sphi 0, %s79
      %s99 = sphi 0, %s99
      %s101 = sphi 0, %s99
      %s102 = sphi 0, %s101
      %s116 = sphi 0, %s102
      %s120 = sphi 0, %s120
      %s122 = sphi 0, %s120
      %s123 = sphi 0, %s122
      %s137 = sphi 0, %s123
      %s141 = sphi 0, %s141
      %s143 = sphi 0, %s141
      %s144 = sphi 0, %s143
      %s158 = sphi 0, %s144
      %s162 = sphi 0, %s162
      %s164 = sphi 0, %s162
      %s165 = sphi 0, %s164
      %s179 = sphi 0, %s165
      %s183 = sphi 0, %s183
      %s185 = sphi 0, %s183
      %s186 = sphi 0, %s185
      %s200 = sphi 0, %s186
      %s204 = sphi 0, %s204
      %s206 = sphi 0, %s204
      %s207 = sphi 0, %s206
      %s221 = sphi 0, %s207
      %s225 = sphi 0, %s225
      %s227 = sphi 0, %s225
      %s228 = sphi 0, %s227
      %s242 = sphi 0, %s228
      %s246 = sphi 0, %s246
      %s248 = sphi 0, %s246
      %s249 = sphi 0, %s248
      %s263 = sphi 0, %s249
      %s267 = sphi 0, %s267
      %s269 = sphi 0, %s267
      %s270 = sphi 0, %s269
      %s284 = sphi 0, %s270
      %s288 = sphi 0, %s288
      %s290 = sphi 0, %s288
      %s291 = sphi 0, %s290
      %s305 = sphi 0, %s291
      %s309 = sphi 0, %s309
      %s311 = sphi 0, %s309
      %s312 = sphi 0, %s311
      %s326 = sphi 0, %s312
      %s334 = sphi 0, %s336
      %s337 = sphi 0, %s334
      %s338 = sphi 0, %s337
      %s354 = sphi 0, %s338
    $region4: #{tpu_custom_call.1} parent=1 // loop_header_branch
      %28 = sbr.rel (%p26) target = $region8
    $region5: #{tpu_custom_call.1} parent=1 // loop_body
      %s30 = ssub.s32 %s25, 1
      %s31 = ssub.s32 %s25, 2
      %s38 = sadd.s32 1, %s33
      %p39 = scmp.ge.s32.totalorder %s38, 1
      %s40 = scalar_select %p39, 0, %s38
      %s41 = sadd.s32 1, %s32
      %s42 = scalar_select %p39, %s41, %s32
      %p43 = scmp.ge.s32.totalorder %s42, 2
      %s44 = scalar_select %p43, 0, %s42
      %s45 = ssub.s32 %s32, %s44
      %s46 = ssub.s32 %s33, %s40
      %s47 = sor.u32 %s45, %s46
      %p48 = scmp.eq.s32.totalorder %s47, 0
      %s50 = sadd.s32 %s49, 1
      %s51 = scalar_select %p48, %s49, %s50
      %p54 = pneg %p48
      %p55 = scmp.eq.s32.totalorder %s25, 1
      %p56 = por %p54, %p55
      %p57 = scmp.ne.s32.totalorder %s49, %s52
      %p58 = scmp.eq.s32.totalorder %s25, 0
      %p59 = por %p57, %p58
      %p60 = scmp.ne.s32.totalorder %s49, %s52
      %p61 = scmp.eq.s32.totalorder %s30, 1
      %p62 = por %p60, %p61
      %p63 = scmp.ne.s32.totalorder %s52, %s53
      %p64 = scmp.eq.s32.totalorder %s30, 0
      %p65 = por %p63, %p64
      %p66 = scmp.ne.s32.totalorder %s52, %s53
      %p67 = scmp.eq.s32.totalorder %s31, 1
      %p68 = por %p66, %p67
      %p70 = scmp.ne.s32.totalorder %s53, %s69
      %p71 = scmp.eq.s32.totalorder %s31, 0
      %p72 = por %p70, %p71
      %s73 = ssub.s32 %s32, %s44
      %p74 = scmp.eq.s32.totalorder %s73, 0
      %s76 = sadd.s32 %s75, 1
      %s77 = scalar_select %p74, %s75, %s76
      %p80 = pneg %p74
      %p81 = scmp.eq.s32.totalorder %s25, 1
      %p82 = por %p80, %p81
      %p83 = scmp.ne.s32.totalorder %s75, %s78
      %p84 = scmp.eq.s32.totalorder %s25, 0
      %p85 = por %p83, %p84
      %p86 = scmp.ne.s32.totalorder %s75, %s78
      %p87 = scmp.eq.s32.totalorder %s30, 1
      %p88 = por %p86, %p87
      %p89 = scmp.ne.s32.totalorder %s78, %s79
      %p90 = scmp.eq.s32.totalorder %s30, 0
      %p91 = por %p89, %p90
      %p92 = scmp.ne.s32.totalorder %s78, %s79
      %p93 = scmp.eq.s32.totalorder %s31, 1
      %p94 = por %p92, %p93
      %p96 = scmp.ne.s32.totalorder %s79, %s95
      %p97 = scmp.eq.s32.totalorder %s31, 0
      %p98 = por %p96, %p97
      %s100 = sadd.s32 %s99, 1
      %p103 = scmp.eq.s32.totalorder %s25, 1
      %p104 = scmp.ne.s32.totalorder %s99, %s101
      %p105 = scmp.eq.s32.totalorder %s25, 0
      %p106 = por %p104, %p105
      %p107 = scmp.ne.s32.totalorder %s99, %s101
      %p108 = scmp.eq.s32.totalorder %s30, 1
      %p109 = por %p107, %p108
      %p110 = scmp.ne.s32.totalorder %s101, %s102
      %p111 = scmp.eq.s32.totalorder %s30, 0
      %p112 = por %p110, %p111
      %p113 = scmp.ne.s32.totalorder %s101, %s102
      %p114 = scmp.eq.s32.totalorder %s31, 1
      %p115 = por %p113, %p114
      %p117 = scmp.ne.s32.totalorder %s102, %s116
      %p118 = scmp.eq.s32.totalorder %s31, 0
      %p119 = por %p117, %p118
      %s121 = sadd.s32 %s120, 1
      %p124 = scmp.eq.s32.totalorder %s25, 1
      %p125 = scmp.ne.s32.totalorder %s120, %s122
      %p126 = scmp.eq.s32.totalorder %s25, 0
      %p127 = por %p125, %p126
      %p128 = scmp.ne.s32.totalorder %s120, %s122
      %p129 = scmp.eq.s32.totalorder %s30, 1
      %p130 = por %p128, %p129
      %p131 = scmp.ne.s32.totalorder %s122, %s123
      %p132 = scmp.eq.s32.totalorder %s30, 0
      %p133 = por %p131, %p132
      %p134 = scmp.ne.s32.totalorder %s122, %s123
      %p135 = scmp.eq.s32.totalorder %s31, 1
      %p136 = por %p134, %p135
      %p138 = scmp.ne.s32.totalorder %s123, %s137
      %p139 = scmp.eq.s32.totalorder %s31, 0
      %p140 = por %p138, %p139
      %s142 = sadd.s32 %s141, 1
      %p145 = scmp.eq.s32.totalorder %s25, 1
      %p146 = scmp.ne.s32.totalorder %s141, %s143
      %p147 = scmp.eq.s32.totalorder %s25, 0
      %p148 = por %p146, %p147
      %p149 = scmp.ne.s32.totalorder %s141, %s143
      %p150 = scmp.eq.s32.totalorder %s30, 1
      %p151 = por %p149, %p150
      %p152 = scmp.ne.s32.totalorder %s143, %s144
      %p153 = scmp.eq.s32.totalorder %s30, 0
      %p154 = por %p152, %p153
      %p155 = scmp.ne.s32.totalorder %s143, %s144
      %p156 = scmp.eq.s32.totalorder %s31, 1
      %p157 = por %p155, %p156
      %p159 = scmp.ne.s32.totalorder %s144, %s158
      %p160 = scmp.eq.s32.totalorder %s31, 0
      %p161 = por %p159, %p160
      %s163 = sadd.s32 %s162, 1
      %p166 = scmp.eq.s32.totalorder %s25, 1
      %p167 = scmp.ne.s32.totalorder %s162, %s164
      %p168 = scmp.eq.s32.totalorder %s25, 0
      %p169 = por %p167, %p168
      %p170 = scmp.ne.s32.totalorder %s162, %s164
      %p171 = scmp.eq.s32.totalorder %s30, 1
      %p172 = por %p170, %p171
      %p173 = scmp.ne.s32.totalorder %s164, %s165
      %p174 = scmp.eq.s32.totalorder %s30, 0
      %p175 = por %p173, %p174
      %p176 = scmp.ne.s32.totalorder %s164, %s165
      %p177 = scmp.eq.s32.totalorder %s31, 1
      %p178 = por %p176, %p177
      %p180 = scmp.ne.s32.totalorder %s165, %s179
      %p181 = scmp.eq.s32.totalorder %s31, 0
      %p182 = por %p180, %p181
      %s184 = sadd.s32 %s183, 1
      %p187 = scmp.eq.s32.totalorder %s25, 1
      %p188 = scmp.ne.s32.totalorder %s183, %s185
      %p189 = scmp.eq.s32.totalorder %s25, 0
      %p190 = por %p188, %p189
      %p191 = scmp.ne.s32.totalorder %s183, %s185
      %p192 = scmp.eq.s32.totalorder %s30, 1
      %p193 = por %p191, %p192
      %p194 = scmp.ne.s32.totalorder %s185, %s186
      %p195 = scmp.eq.s32.totalorder %s30, 0
      %p196 = por %p194, %p195
      %p197 = scmp.ne.s32.totalorder %s185, %s186
      %p198 = scmp.eq.s32.totalorder %s31, 1
      %p199 = por %p197, %p198
      %p201 = scmp.ne.s32.totalorder %s186, %s200
      %p202 = scmp.eq.s32.totalorder %s31, 0
      %p203 = por %p201, %p202
      %s205 = sadd.s32 %s204, 1
      %p208 = scmp.eq.s32.totalorder %s25, 1
      %p209 = scmp.ne.s32.totalorder %s204, %s206
      %p210 = scmp.eq.s32.totalorder %s25, 0
      %p211 = por %p209, %p210
      %p212 = scmp.ne.s32.totalorder %s204, %s206
      %p213 = scmp.eq.s32.totalorder %s30, 1
      %p214 = por %p212, %p213
      %p215 = scmp.ne.s32.totalorder %s206, %s207
      %p216 = scmp.eq.s32.totalorder %s30, 0
      %p217 = por %p215, %p216
      %p218 = scmp.ne.s32.totalorder %s206, %s207
      %p219 = scmp.eq.s32.totalorder %s31, 1
      %p220 = por %p218, %p219
      %p222 = scmp.ne.s32.totalorder %s207, %s221
      %p223 = scmp.eq.s32.totalorder %s31, 0
      %p224 = por %p222, %p223
      %s226 = sadd.s32 %s225, 1
      %p229 = scmp.eq.s32.totalorder %s25, 1
      %p230 = scmp.ne.s32.totalorder %s225, %s227
      %p231 = scmp.eq.s32.totalorder %s25, 0
      %p232 = por %p230, %p231
      %p233 = scmp.ne.s32.totalorder %s225, %s227
      %p234 = scmp.eq.s32.totalorder %s30, 1
      %p235 = por %p233, %p234
      %p236 = scmp.ne.s32.totalorder %s227, %s228
      %p237 = scmp.eq.s32.totalorder %s30, 0
      %p238 = por %p236, %p237
      %p239 = scmp.ne.s32.totalorder %s227, %s228
      %p240 = scmp.eq.s32.totalorder %s31, 1
      %p241 = por %p239, %p240
      %p243 = scmp.ne.s32.totalorder %s228, %s242
      %p244 = scmp.eq.s32.totalorder %s31, 0
      %p245 = por %p243, %p244
      %s247 = sadd.s32 %s246, 1
      %p250 = scmp.eq.s32.totalorder %s25, 1
      %p251 = scmp.ne.s32.totalorder %s246, %s248
      %p252 = scmp.eq.s32.totalorder %s25, 0
      %p253 = por %p251, %p252
      %p254 = scmp.ne.s32.totalorder %s246, %s248
      %p255 = scmp.eq.s32.totalorder %s30, 1
      %p256 = por %p254, %p255
      %p257 = scmp.ne.s32.totalorder %s248, %s249
      %p258 = scmp.eq.s32.totalorder %s30, 0
      %p259 = por %p257, %p258
      %p260 = scmp.ne.s32.totalorder %s248, %s249
      %p261 = scmp.eq.s32.totalorder %s31, 1
      %p262 = por %p260, %p261
      %p264 = scmp.ne.s32.totalorder %s249, %s263
      %p265 = scmp.eq.s32.totalorder %s31, 0
      %p266 = por %p264, %p265
      %s268 = sadd.s32 %s267, 1
      %p271 = scmp.eq.s32.totalorder %s25, 1
      %p272 = scmp.ne.s32.totalorder %s267, %s269
      %p273 = scmp.eq.s32.totalorder %s25, 0
      %p274 = por %p272, %p273
      %p275 = scmp.ne.s32.totalorder %s267, %s269
      %p276 = scmp.eq.s32.totalorder %s30, 1
      %p277 = por %p275, %p276
      %p278 = scmp.ne.s32.totalorder %s269, %s270
      %p279 = scmp.eq.s32.totalorder %s30, 0
      %p280 = por %p278, %p279
      %p281 = scmp.ne.s32.totalorder %s269, %s270
      %p282 = scmp.eq.s32.totalorder %s31, 1
      %p283 = por %p281, %p282
      %p285 = scmp.ne.s32.totalorder %s270, %s284
      %p286 = scmp.eq.s32.totalorder %s31, 0
      %p287 = por %p285, %p286
      %s289 = sadd.s32 %s288, 1
      %p292 = scmp.eq.s32.totalorder %s25, 1
      %p293 = scmp.ne.s32.totalorder %s288, %s290
      %p294 = scmp.eq.s32.totalorder %s25, 0
      %p295 = por %p293, %p294
      %p296 = scmp.ne.s32.totalorder %s288, %s290
      %p297 = scmp.eq.s32.totalorder %s30, 1
      %p298 = por %p296, %p297
      %p299 = scmp.ne.s32.totalorder %s290, %s291
      %p300 = scmp.eq.s32.totalorder %s30, 0
      %p301 = por %p299, %p300
      %p302 = scmp.ne.s32.totalorder %s290, %s291
      %p303 = scmp.eq.s32.totalorder %s31, 1
      %p304 = por %p302, %p303
      %p306 = scmp.ne.s32.totalorder %s291, %s305
      %p307 = scmp.eq.s32.totalorder %s31, 0
      %p308 = por %p306, %p307
      %s310 = sadd.s32 %s309, 1
      %p313 = scmp.eq.s32.totalorder %s25, 1
      %p314 = scmp.ne.s32.totalorder %s309, %s311
      %p315 = scmp.eq.s32.totalorder %s25, 0
      %p316 = por %p314, %p315
      %p317 = scmp.ne.s32.totalorder %s309, %s311
      %p318 = scmp.eq.s32.totalorder %s30, 1
      %p319 = por %p317, %p318
      %p320 = scmp.ne.s32.totalorder %s311, %s312
      %p321 = scmp.eq.s32.totalorder %s30, 0
      %p322 = por %p320, %p321
      %p323 = scmp.ne.s32.totalorder %s311, %s312
      %p324 = scmp.eq.s32.totalorder %s31, 1
      %p325 = por %p323, %p324
      %p327 = scmp.ne.s32.totalorder %s312, %s326
      %p328 = scmp.eq.s32.totalorder %s31, 0
      %p329 = por %p327, %p328
      %s330 = ssub.s32 %s32, %s44
      %s331 = ssub.s32 %s33, %s40
      %s332 = sor.u32 %s330, %s331
      %p333 = scmp.eq.s32.totalorder %s332, 0
      %s335 = sadd.s32 %s334, 1
      %s336 = scalar_select %p333, %s334, %s335
      %p339 = pneg %p333
      %p340 = scmp.eq.s32.totalorder %s25, 1
      %p341 = por %p339, %p340
      %p342 = scmp.ne.s32.totalorder %s334, %s337
      %p343 = scmp.eq.s32.totalorder %s25, 0
      %p344 = por %p342, %p343
      %p345 = scmp.ne.s32.totalorder %s334, %s337
      %p346 = scmp.eq.s32.totalorder %s30, 1
      %p347 = por %p345, %p346
      %p348 = scmp.ne.s32.totalorder %s337, %s338
      %p349 = scmp.eq.s32.totalorder %s30, 0
      %p350 = por %p348, %p349
      %p351 = scmp.ne.s32.totalorder %s337, %s338
      %p352 = scmp.eq.s32.totalorder %s31, 1
      %p353 = por %p351, %p352
      %p355 = scmp.ne.s32.totalorder %s338, %s354
      %p356 = scmp.eq.s32.totalorder %s31, 0
      %p357 = por %p355, %p356
      %p358 = scmp.le.s32.totalorder 1, %s25
      %p359 = scmp.lt.s32.totalorder %s25, 3
      %p360 = pnand %p358, %p359
      %p361 = pneg %p360
      // Predicated region
      $region9: #{tpu_custom_call.1} parent=5 // pred_check
        _
      $region10: #{tpu_custom_call.1} parent=5 // pred_check_branch
        %363 = sbr.rel (%p360) target = $region12
      $region11: #{tpu_custom_call.1} parent=5 // pred_region
        %s364 = ssub.s32 %s25, 1
        // Predicated region
        $region13: #{tpu_custom_call.1} parent=11 // pred_check
          %p365 = pneg %p112
        $region14: #{tpu_custom_call.1} parent=11 // pred_check_branch
          %367 = sbr.rel (%p365) target = $region16
        $region15: #{tpu_custom_call.1} parent=11 // pred_region
          _
        $region16: #{tpu_custom_call.1} parent=11 // pred_fallthru
          _
        // Predicated region
        $region17: #{tpu_custom_call.1} parent=11 // pred_check
          %p368 = pneg %p133
        $region18: #{tpu_custom_call.1} parent=11 // pred_check_branch
          %370 = sbr.rel (%p368) target = $region20
        $region19: #{tpu_custom_call.1} parent=11 // pred_region
          %s372 = ssub.s32 256, 256
          %373 = vsyncadd [#allocation3], %s372
          %s374 = sshll.u32 [#allocation2], 4
          %s375 = int_to_ptr.vmem [resolvable:$true] %s374
          %380 = dma.hbm_to_vmem [thread:$0]  %s3, 256, %s375, [#allocation3], 64, 64, 4
        $region20: #{tpu_custom_call.1} parent=11 // pred_fallthru
          _
        // Predicated region
        $region21: #{tpu_custom_call.1} parent=11 // pred_check
          %p381 = pneg %p154
        $region22: #{tpu_custom_call.1} parent=11 // pred_check_branch
          %383 = sbr.rel (%p381) target = $region24
        $region23: #{tpu_custom_call.1} parent=11 // pred_region
          %s385 = ssub.s32 256, 256
          %386 = vsyncadd [#allocation6], %s385
          %s387 = sshll.u32 [#allocation5], 4
          %s388 = int_to_ptr.vmem [resolvable:$true] %s387
          %393 = dma.hbm_to_vmem [thread:$0]  %s4, 256, %s388, [#allocation6], 64, 64, 4
        $region24: #{tpu_custom_call.1} parent=11 // pred_fallthru
          _
        // Predicated region
        $region25: #{tpu_custom_call.1} parent=11 // pred_check
          %p394 = pneg %p175
        $region26: #{tpu_custom_call.1} parent=11 // pred_check_branch
          %396 = sbr.rel (%p394) target = $region28
        $region27: #{tpu_custom_call.1} parent=11 // pred_region
          %s398 = ssub.s32 256, 256
          %399 = vsyncadd [#allocation6], %s398
          %s400 = sshll.u32 [#allocation7], 4
          %s401 = int_to_ptr.vmem [resolvable:$true] %s400
          %406 = dma.hbm_to_vmem [thread:$0]  %s5, 256, %s401, [#allocation6], 64, 64, 4
        $region28: #{tpu_custom_call.1} parent=11 // pred_fallthru
          _
        // Predicated region
        $region29: #{tpu_custom_call.1} parent=11 // pred_check
          %p407 = pneg %p196
        $region30: #{tpu_custom_call.1} parent=11 // pred_check_branch
          %409 = sbr.rel (%p407) target = $region32
        $region31: #{tpu_custom_call.1} parent=11 // pred_region
          _
        $region32: #{tpu_custom_call.1} parent=11 // pred_fallthru
          _
        // Predicated region
        $region33: #{tpu_custom_call.1} parent=11 // pred_check
          %p410 = pneg %p217
        $region34: #{tpu_custom_call.1} parent=11 // pred_check_branch
          %412 = sbr.rel (%p410) target = $region36
        $region35: #{tpu_custom_call.1} parent=11 // pred_region
          _
        $region36: #{tpu_custom_call.1} parent=11 // pred_fallthru
          _
        // Predicated region
        $region37: #{tpu_custom_call.1} parent=11 // pred_check
          %p413 = pneg %p238
        $region38: #{tpu_custom_call.1} parent=11 // pred_check_branch
          %415 = sbr.rel (%p413) target = $region40
        $region39: #{tpu_custom_call.1} parent=11 // pred_region
          %s417 = ssub.s32 16, 16
          %418 = vsyncadd [#allocation9], %s417
          %s420 = sshll.u32 [#allocation8], 4
          %s421 = int_to_ptr.vmem [resolvable:$true] %s420
          %423 = dma.hbm_to_vmem [thread:$0]  %s8, 16, %s421, [#allocation9]
        $region40: #{tpu_custom_call.1} parent=11 // pred_fallthru
          _
        // Predicated region
        $region41: #{tpu_custom_call.1} parent=11 // pred_check
          %p424 = pneg %p259
        $region42: #{tpu_custom_call.1} parent=11 // pred_check_branch
          %426 = sbr.rel (%p424) target = $region44
        $region43: #{tpu_custom_call.1} parent=11 // pred_region
          _
        $region44: #{tpu_custom_call.1} parent=11 // pred_fallthru
          _
        // Predicated region
        $region45: #{tpu_custom_call.1} parent=11 // pred_check
          %p427 = pneg %p280
        $region46: #{tpu_custom_call.1} parent=11 // pred_check_branch
          %429 = sbr.rel (%p427) target = $region48
        $region47: #{tpu_custom_call.1} parent=11 // pred_region
          _
        $region48: #{tpu_custom_call.1} parent=11 // pred_fallthru
          _
        // Predicated region
        $region49: #{tpu_custom_call.1} parent=11 // pred_check
          %p430 = pneg %p301
        $region50: #{tpu_custom_call.1} parent=11 // pred_check_branch
          %432 = sbr.rel (%p430) target = $region52
        $region51: #{tpu_custom_call.1} parent=11 // pred_region
          _
        $region52: #{tpu_custom_call.1} parent=11 // pred_fallthru
          _
        // Predicated region
        $region53: #{tpu_custom_call.1} parent=11 // pred_check
          %p433 = pneg %p322
        $region54: #{tpu_custom_call.1} parent=11 // pred_check_branch
          %435 = sbr.rel (%p433) target = $region56
        $region55: #{tpu_custom_call.1} parent=11 // pred_region
          _
        $region56: #{tpu_custom_call.1} parent=11 // pred_fallthru
          _
      $region12: #{tpu_custom_call.1} parent=5 // pred_fallthru
        _
      %p436 = scmp.lt.s32.totalorder %s25, 2
      // Predicated region
      $region57: #{tpu_custom_call.1} parent=5 // pred_check
        %p437 = pneg %p436
      $region58: #{tpu_custom_call.1} parent=5 // pred_check_branch
        %439 = sbr.rel (%p437) target = $region60
      $region59: #{tpu_custom_call.1} parent=5 // pred_region
        // Predicated region
        $region61: #{tpu_custom_call.1} parent=59 // pred_check
          %p440 = pneg %p59
        $region62: #{tpu_custom_call.1} parent=59 // pred_check_branch
          %442 = sbr.rel (%p440) target = $region64
        $region63: #{tpu_custom_call.1} parent=59 // pred_region
          %p443 = scmp.lt.s32.totalorder %s32, 1
          %s444 = scalar_select %p443, %s32, 1
          %p445 = scmp.lt.s32.totalorder %s33, 0
          %s446 = scalar_select %p445, %s33, 0
          %s447 = sadd.s32 %s446, %s444
          %s448 = smul.addr %s447, 8
          %s449 = scalar_lea.vmem %s0, %s448
        $region64: #{tpu_custom_call.1} parent=59 // pred_fallthru
          _
        // Predicated region
        $region65: #{tpu_custom_call.1} parent=59 // pred_check
          %p450 = pneg %p85
        $region66: #{tpu_custom_call.1} parent=59 // pred_check_branch
          %452 = sbr.rel (%p450) target = $region68
        $region67: #{tpu_custom_call.1} parent=59 // pred_region
          %p453 = scmp.lt.s32.totalorder %s32, 1
          %s454 = scalar_select %p453, %s32, 1
          %s455 = smul.addr %s454, 8
          %s456 = scalar_lea.vmem %s1, %s455
        $region68: #{tpu_custom_call.1} parent=59 // pred_fallthru
          _
      $region60: #{tpu_custom_call.1} parent=5 // pred_fallthru
        _
      %p457 = scmp.le.s32.totalorder 1, %s25
      %p458 = scmp.lt.s32.totalorder %s25, 3
      %p459 = pnand %p457, %p458
      %p460 = pneg %p459
      // Predicated region
      $region69: #{tpu_custom_call.1} parent=5 // pred_check
        _
      $region70: #{tpu_custom_call.1} parent=5 // pred_check_branch
        %462 = sbr.rel (%p459) target = $region72
      $region71: #{tpu_custom_call.1} parent=5 // pred_region
        %s463 = ssub.s32 %s25, 1
        // Predicated region
        $region73: #{tpu_custom_call.1} parent=71 // pred_check
          %p464 = pneg %p133
        $region74: #{tpu_custom_call.1} parent=71 // pred_check_branch
          %466 = sbr.rel (%p464) target = $region76
        $region75: #{tpu_custom_call.1} parent=71 // pred_region
          %467 = dma.done [#allocation3], 256
        $region76: #{tpu_custom_call.1} parent=71 // pred_fallthru
          _
        // Predicated region
        $region77: #{tpu_custom_call.1} parent=71 // pred_check
          %p468 = pneg %p154
        $region78: #{tpu_custom_call.1} parent=71 // pred_check_branch
          %470 = sbr.rel (%p468) target = $region80
        $region79: #{tpu_custom_call.1} parent=71 // pred_region
          %471 = dma.done [#allocation6], 256
        $region80: #{tpu_custom_call.1} parent=71 // pred_fallthru
          _
        // Predicated region
        $region81: #{tpu_custom_call.1} parent=71 // pred_check
          %p472 = pneg %p175
        $region82: #{tpu_custom_call.1} parent=71 // pred_check_branch
          %474 = sbr.rel (%p472) target = $region84
        $region83: #{tpu_custom_call.1} parent=71 // pred_region
          %475 = dma.done [#allocation6], 256
        $region84: #{tpu_custom_call.1} parent=71 // pred_fallthru
          _
        // Predicated region
        $region85: #{tpu_custom_call.1} parent=71 // pred_check
          %p476 = pneg %p238
        $region86: #{tpu_custom_call.1} parent=71 // pred_check_branch
          %478 = sbr.rel (%p476) target = $region88
        $region87: #{tpu_custom_call.1} parent=71 // pred_region
          %479 = dma.done [#allocation9], 16
        $region88: #{tpu_custom_call.1} parent=71 // pred_fallthru
          _
        %p480 = scmp.lt.s32.totalorder %s34, 1
        %s481 = scalar_select %p480, %s34, 1
        %p482 = scmp.lt.s32.totalorder %s35, 0
        %s483 = scalar_select %p482, %s35, 0
        %s484 = sadd.s32 %s483, %s481
        %s485 = smul.addr %s484, 8
        %s486 = scalar_lea.vmem %s0, %s485
        %p487 = pneg %p65
        %p488 = pneg %p62
        %p489 = scmp.lt.s32.totalorder %s34, 1
        %s490 = scalar_select %p489, %s34, 1
        %s491 = smul.addr %s490, 8
        %s492 = scalar_lea.vmem %s1, %s491
        %p493 = pneg %p91
        %p494 = pneg %p88
        %p495 = pneg %p112
        %p496 = pneg %p109
        %p497 = pneg %p133
        %p498 = pneg %p130
        %p499 = pneg %p154
        %p500 = pneg %p151
        %p501 = pneg %p175
        %p502 = pneg %p172
        %p503 = pneg %p196
        %p504 = pneg %p193
        %p505 = pneg %p217
        %p506 = pneg %p214
        %p507 = pneg %p238
        %p508 = pneg %p235
        %p509 = pneg %p259
        %p510 = pneg %p256
        %p511 = pneg %p280
        %p512 = pneg %p277
        %p513 = pneg %p301
        %p514 = pneg %p298
        %p515 = pneg %p322
        %p516 = pneg %p319
        %p517 = pneg %p350
        %p518 = pneg %p347
        %s519 = sand.u32 %s337, 1
        %s520 = scalar_lea.sflag [#allocation4], %s519
        %s521 = sand.u32 %s337, 1
        %s522 = smul.addr %s521, 8
        %s523 = scalar_lea.vmem [#allocation10], %s522
        %p524 = scmp.lt.s32.totalorder %s34, 1
        %s525 = scalar_select %p524, %s34, 1
        %p526 = scmp.lt.s32.totalorder %s35, 0
        %s527 = scalar_select %p526, %s35, 0
        %s528 = sadd.s32 %s527, %s525
        %s529 = smul.addr %s528, 8
        %s530 = scalar_lea.vmem %s0, %s529
        %p531 = scmp.lt.s32.totalorder %s34, 1
        %s532 = scalar_select %p531, %s34, 1
        %s533 = smul.addr %s532, 8
        %s534 = scalar_lea.vmem %s1, %s533
        %v536 = vld [vmem:[%s530] sm:$0xff]
        %v537 = vld [vmem:[%s534] sm:$0xff]
        %v538 = vld [vmem:[%s2] sm:$0xf]
        %v539 = vld [vmem:[%s2 + $0x4] sm:$0xf]
        %v540 = vld [vmem:[%s2 + $0x8] sm:$0xf]
        %v541 = vld [vmem:[%s2 + $0xc] sm:$0xf]
        %v542 = vld [vmem:[#allocation2] sm:$0xf]
        %v543 = vld [vmem:[#allocation2 + $0x4] sm:$0xf]
        %v544 = vld [vmem:[#allocation2 + $0x8] sm:$0xf]
        %v545 = vld [vmem:[#allocation2 + $0xc] sm:$0xf]
        %v546 = vld [vmem:[#allocation5] sm:$0xf]
        %v547 = vld [vmem:[#allocation5 + $0x4] sm:$0xf]
        %v548 = vld [vmem:[#allocation5 + $0x8] sm:$0xf]
        %v549 = vld [vmem:[#allocation5 + $0xc] sm:$0xf]
        %v550 = vld [vmem:[#allocation7] sm:$0xf]
        %v551 = vld [vmem:[#allocation7 + $0x4] sm:$0xf]
        %v552 = vld [vmem:[#allocation7 + $0x8] sm:$0xf]
        %v553 = vld [vmem:[#allocation7 + $0xc] sm:$0xf]
        %v554 = vld [vmem:[%s9] sm:$0xf]
        %v555 = vld [vmem:[%s9 + $0x4] sm:$0xf]
        %v556 = vld [vmem:[%s9 + $0x8] sm:$0xf]
        %v557 = vld [vmem:[%s9 + $0xc] sm:$0xf]
        %v558 = vld [vmem:[%s11] sm:$0xf]
        %v559 = vld [vmem:[%s11 + $0x4] sm:$0xf]
        %v560 = vld [vmem:[%s11 + $0x8] sm:$0xf]
        %v561 = vld [vmem:[%s11 + $0xc] sm:$0xf]
        %v562 = vld [vmem:[%s11 + $0x10] sm:$0xf]
        %v563 = vld [vmem:[%s11 + $0x14] sm:$0xf]
        %v564 = vld [vmem:[%s11 + $0x18] sm:$0xf]
        %v565 = vld [vmem:[%s11 + $0x1c] sm:$0xf]
        %v566 = vld [vmem:[%s6] sm:$0x1]
        %v567 = vld [vmem:[%s7] sm:$0x1]
        %v568 = vld [vmem:[#allocation8] sm:$0x1]
        %v569 = vld [vmem:[%s10] sm:$0x1]
        %v570 = vld [vmem:[%s12] sm:$0x1]
        %v571 = vpack.c.bf16 %v536, %v536
        %v572 = vpack.c.bf16 %v537, %v537
        %v577 = vunpack.c.l.b16 %v538
        %v578 = vunpack.c.l.b16 %v539
        %v579 = vunpack.c.l.b16 %v540
        %v580 = vunpack.c.l.b16 %v541
        %v581 = vpack.c.b16 %v578, %v577
        %v582 = vpack.c.b16 %v580, %v579
        %vm585 = vcmask 261120
        %v587 = vsel %vm585, %v571, 0
        %589 = vmatprep.subr.bf16.mxu0 0
        %590 = vmatpush1.bf16.msra.mxu0 %v581
        %591 = vmatprep.subr.bf16.mxu0 0
        %592 = vmatpush1.bf16.msra.mxu0 %v582
        %593 = vmatprep.subr.bf16.mxu0 0
        %594 = vmatpush1.bf16.msra.mxu0 0
        %595 = vmatprep.subr.bf16.mxu0 0
        %596 = vmatpush1.bf16.msra.mxu0 0
        %597 = vmatprep.subr.bf16.mxu0 0
        %598 = vmatpush1.bf16.msra.mxu0 0
        %599 = vmatprep.subr.bf16.mxu0 0
        %600 = vmatpush1.bf16.msra.mxu0 0
        %601 = vmatprep.subr.bf16.mxu0 0
        %602 = vmatpush1.bf16.msra.mxu0 0
        %603 = vmatprep.subr.bf16.mxu0 0
        %604 = vmatpush1.bf16.msra.mxu0 0
        %605 = vmatprep.subr.bf16.mxu0 0
        %606 = vmatpush1.bf16.msra.mxu0 0
        %607 = vmatprep.subr.bf16.mxu0 0
        %608 = vmatpush1.bf16.msra.mxu0 0
        %609 = vmatprep.subr.bf16.mxu0 0
        %610 = vmatpush1.bf16.msra.mxu0 0
        %611 = vmatprep.subr.bf16.mxu0 0
        %612 = vmatpush1.bf16.msra.mxu0 0
        %613 = vmatprep.subr.bf16.mxu0 0
        %614 = vmatpush1.bf16.msra.mxu0 0
        %615 = vmatprep.subr.bf16.mxu0 0
        %616 = vmatpush1.bf16.msra.mxu0 0
        %617 = vmatprep.subr.bf16.mxu0 0
        %618 = vmatpush1.bf16.msra.mxu0 0
        %619 = vmatprep.subr.bf16.mxu0 0
        %620 = vmatpush1.bf16.msra.mxu0 0
        %621 = vmatprep.mubr.bf16.mxu0 0
        %622 = vmatmul.mubr.bf16.gmra.mrb[0].mxu0 %v587
        %v623 = vpop.f32.mrb[0].mxu0
        %v624 = vadd.f32 0.0, %v623
        %v625 = vpop.f32.mrb[0].mxu0
        %v626 = vpop.f32.mrb[0].mxu0
        %v627 = vpop.f32.mrb[0].mxu0
        %628 = vdwg.mxu0
        %v629 = vmul.f32 %v624, 0.35355338
        %v634 = vunpack.c.l.b16 %v542
        %v635 = vunpack.c.l.b16 %v543
        %v636 = vunpack.c.l.b16 %v544
        %v637 = vunpack.c.l.b16 %v545
        %v638 = vpack.c.b16 %v635, %v634
        %v639 = vpack.c.b16 %v637, %v636
        %v643 = vsel %vm585, %v572, 0
        %645 = vmatprep.subr.bf16.mxu0 0
        %646 = vmatpush1.bf16.msra.mxu0 %v638
        %647 = vmatprep.subr.bf16.mxu0 0
        %648 = vmatpush1.bf16.msra.mxu0 %v639
        %649 = vmatprep.subr.bf16.mxu0 0
        %650 = vmatpush1.bf16.msra.mxu0 0
        %651 = vmatprep.subr.bf16.mxu0 0
        %652 = vmatpush1.bf16.msra.mxu0 0
        %653 = vmatprep.subr.bf16.mxu0 0
        %654 = vmatpush1.bf16.msra.mxu0 0
        %655 = vmatprep.subr.bf16.mxu0 0
        %656 = vmatpush1.bf16.msra.mxu0 0
        %657 = vmatprep.subr.bf16.mxu0 0
        %658 = vmatpush1.bf16.msra.mxu0 0
        %659 = vmatprep.subr.bf16.mxu0 0
        %660 = vmatpush1.bf16.msra.mxu0 0
        %661 = vmatprep.subr.bf16.mxu0 0
        %662 = vmatpush1.bf16.msra.mxu0 0
        %663 = vmatprep.subr.bf16.mxu0 0
        %664 = vmatpush1.bf16.msra.mxu0 0
        %665 = vmatprep.subr.bf16.mxu0 0
        %666 = vmatpush1.bf16.msra.mxu0 0
        %667 = vmatprep.subr.bf16.mxu0 0
        %668 = vmatpush1.bf16.msra.mxu0 0
        %669 = vmatprep.subr.bf16.mxu0 0
        %670 = vmatpush1.bf16.msra.mxu0 0
        %671 = vmatprep.subr.bf16.mxu0 0
        %672 = vmatpush1.bf16.msra.mxu0 0
        %673 = vmatprep.subr.bf16.mxu0 0
        %674 = vmatpush1.bf16.msra.mxu0 0
        %675 = vmatprep.subr.bf16.mxu0 0
        %676 = vmatpush1.bf16.msra.mxu0 0
        %677 = vmatprep.mubr.bf16.mxu0 0
        %678 = vmatmul.mubr.bf16.gmra.mrb[0].mxu0 %v643
        %v679 = vpop.f32.mrb[0].mxu0
        %v680 = vadd.f32 0.0, %v679
        %v681 = vpop.f32.mrb[0].mxu0
        %v682 = vpop.f32.mrb[0].mxu0
        %v683 = vpop.f32.mrb[0].mxu0
        %684 = vdwg.mxu0
        %v689 = vunpack.c.l.b16 %v546
        %v690 = vunpack.c.l.b16 %v547
        %v691 = vunpack.c.l.b16 %v548
        %v692 = vunpack.c.l.b16 %v549
        %v693 = vpack.c.b16 %v690, %v689
        %v694 = vpack.c.b16 %v692, %v691
        %697 = vmatprep.subr.bf16.mxu0 0
        %698 = vmatpush1.bf16.msra.mxu0 %v693
        %699 = vmatprep.subr.bf16.mxu0 0
        %700 = vmatpush1.bf16.msra.mxu0 %v694
        %701 = vmatprep.subr.bf16.mxu0 0
        %702 = vmatpush1.bf16.msra.mxu0 0
        %703 = vmatprep.subr.bf16.mxu0 0
        %704 = vmatpush1.bf16.msra.mxu0 0
        %705 = vmatprep.subr.bf16.mxu0 0
        %706 = vmatpush1.bf16.msra.mxu0 0
        %707 = vmatprep.subr.bf16.mxu0 0
        %708 = vmatpush1.bf16.msra.mxu0 0
        %709 = vmatprep.subr.bf16.mxu0 0
        %710 = vmatpush1.bf16.msra.mxu0 0
        %711 = vmatprep.subr.bf16.mxu0 0
        %712 = vmatpush1.bf16.msra.mxu0 0
        %713 = vmatprep.subr.bf16.mxu0 0
        %714 = vmatpush1.bf16.msra.mxu0 0
        %715 = vmatprep.subr.bf16.mxu0 0
        %716 = vmatpush1.bf16.msra.mxu0 0
        %717 = vmatprep.subr.bf16.mxu0 0
        %718 = vmatpush1.bf16.msra.mxu0 0
        %719 = vmatprep.subr.bf16.mxu0 0
        %720 = vmatpush1.bf16.msra.mxu0 0
        %721 = vmatprep.subr.bf16.mxu0 0
        %722 = vmatpush1.bf16.msra.mxu0 0
        %723 = vmatprep.subr.bf16.mxu0 0
        %724 = vmatpush1.bf16.msra.mxu0 0
        %725 = vmatprep.subr.bf16.mxu0 0
        %726 = vmatpush1.bf16.msra.mxu0 0
        %727 = vmatprep.subr.bf16.mxu0 0
        %728 = vmatpush1.bf16.msra.mxu0 0
        %729 = vmatprep.mubr.bf16.mxu0 0
        %730 = vmatmul.mubr.bf16.gmra.mrb[0].mxu0 %v643
        %v731 = vpop.f32.mrb[0].mxu0
        %v732 = vadd.f32 0.0, %v731
        %v733 = vpop.f32.mrb[0].mxu0
        %v734 = vpop.f32.mrb[0].mxu0
        %v735 = vpop.f32.mrb[0].mxu0
        %736 = vdwg.mxu0
        %v737 = vpack.c.bf16 %v629, %v629
        %v738 = vpack.c.bf16 %v680, %v680
        %v739 = vpack.c.bf16 %v732, %v732
        %vm740 = vcmask 64512
        %v742 = vsel %vm740, %v737, 0
        %v745 = vsel %vm740, %v738, 0
        %747 = vmatprep.subr.bf16.mxu0 0
        %748 = vmatpush1.bf16.xpose.msra.mxu0 %v745
        %749 = vmatprep.subr.bf16.mxu0 0
        %750 = vmatpush1.bf16.xpose.msra.mxu0 0
        %751 = vmatprep.subr.bf16.mxu0 0
        %752 = vmatpush1.bf16.xpose.msra.mxu0 0
        %753 = vmatprep.subr.bf16.mxu0 0
        %754 = vmatpush1.bf16.xpose.msra.mxu0 0
        %755 = vmatprep.subr.bf16.mxu0 0
        %756 = vmatpush1.bf16.xpose.msra.mxu0 0
        %757 = vmatprep.subr.bf16.mxu0 0
        %758 = vmatpush1.bf16.xpose.msra.mxu0 0
        %759 = vmatprep.subr.bf16.mxu0 0
        %760 = vmatpush1.bf16.xpose.msra.mxu0 0
        %761 = vmatprep.subr.bf16.mxu0 0
        %762 = vmatpush1.bf16.xpose.msra.mxu0 0
        %763 = vmatprep.subr.bf16.mxu0 0
        %764 = vmatpush1.bf16.xpose.msra.mxu0 0
        %765 = vmatprep.subr.bf16.mxu0 0
        %766 = vmatpush1.bf16.xpose.msra.mxu0 0
        %767 = vmatprep.subr.bf16.mxu0 0
        %768 = vmatpush1.bf16.xpose.msra.mxu0 0
        %769 = vmatprep.subr.bf16.mxu0 0
        %770 = vmatpush1.bf16.xpose.msra.mxu0 0
        %771 = vmatprep.subr.bf16.mxu0 0
        %772 = vmatpush1.bf16.xpose.msra.mxu0 0
        %773 = vmatprep.subr.bf16.mxu0 0
        %774 = vmatpush1.bf16.xpose.msra.mxu0 0
        %775 = vmatprep.subr.bf16.mxu0 0
        %776 = vmatpush1.bf16.xpose.msra.mxu0 0
        %777 = vmatprep.subr.bf16.mxu0 0
        %778 = vmatpush1.bf16.xpose.msra.mxu0 0
        %779 = vmatprep.mubr.bf16.mxu0 0
        %780 = vmatmul.mubr.bf16.gmra.mrb[0].mxu0 %v742
        %v781 = vpop.f32.mrb[0].mxu0
        %v782 = vadd.f32 0.0, %v781
        %v783 = vpop.f32.mrb[0].mxu0
        %v784 = vpop.f32.mrb[0].mxu0
        %v785 = vpop.f32.mrb[0].mxu0
        %786 = vdwg.mxu0
        %v787 = vsel %vm740, %v782, -inf
        %788 = vmax.xlane.f32.xlu0 %v787
        %v789 = vpop.xlane.xlu0 %788
        %v790 = vsub.f32 %v782, %v789
        %v791 = vmul.f32 %v790, 1.442695
        %v792 = vpow.pop %v791
        %v793 = vsel %vm740, %v792, 0.0
        %794 = vadd.xlane.f32.xlu0 %v793
        %v795 = vpop.xlane.xlu0 %794
        %v796 = vrcp.pop %v795
        %v797 = vmul.f32 %v792, %v796
        %v798 = vpack.c.bf16 %v797, %v797
        %v800 = vsel %vm740, %v798, 0
        %vm802 = vcmask 1043456
        %v804 = vsel %vm802, %v739, 0
        %806 = vmatprep.subr.bf16.mxu0 0
        %807 = vmatpush1.bf16.msra.mxu0 %v804
        %808 = vmatprep.subr.bf16.mxu0 0
        %809 = vmatpush1.bf16.msra.mxu0 0
        %810 = vmatprep.subr.bf16.mxu0 0
        %811 = vmatpush1.bf16.msra.mxu0 0
        %812 = vmatprep.subr.bf16.mxu0 0
        %813 = vmatpush1.bf16.msra.mxu0 0
        %814 = vmatprep.subr.bf16.mxu0 0
        %815 = vmatpush1.bf16.msra.mxu0 0
        %816 = vmatprep.subr.bf16.mxu0 0
        %817 = vmatpush1.bf16.msra.mxu0 0
        %818 = vmatprep.subr.bf16.mxu0 0
        %819 = vmatpush1.bf16.msra.mxu0 0
        %820 = vmatprep.subr.bf16.mxu0 0
        %821 = vmatpush1.bf16.msra.mxu0 0
        %822 = vmatprep.subr.bf16.mxu0 0
        %823 = vmatpush1.bf16.msra.mxu0 0
        %824 = vmatprep.subr.bf16.mxu0 0
        %825 = vmatpush1.bf16.msra.mxu0 0
        %826 = vmatprep.subr.bf16.mxu0 0
        %827 = vmatpush1.bf16.msra.mxu0 0
        %828 = vmatprep.subr.bf16.mxu0 0
        %829 = vmatpush1.bf16.msra.mxu0 0
        %830 = vmatprep.subr.bf16.mxu0 0
        %831 = vmatpush1.bf16.msra.mxu0 0
        %832 = vmatprep.subr.bf16.mxu0 0
        %833 = vmatpush1.bf16.msra.mxu0 0
        %834 = vmatprep.subr.bf16.mxu0 0
        %835 = vmatpush1.bf16.msra.mxu0 0
        %836 = vmatprep.subr.bf16.mxu0 0
        %837 = vmatpush1.bf16.msra.mxu0 0
        %838 = vmatprep.mubr.bf16.mxu0 0
        %839 = vmatmul.mubr.bf16.gmra.mrb[0].mxu0 %v800
        %v840 = vpop.f32.mrb[0].mxu0
        %v841 = vadd.f32 0.0, %v840
        %v842 = vpop.f32.mrb[0].mxu0
        %v843 = vpop.f32.mrb[0].mxu0
        %v844 = vpop.f32.mrb[0].mxu0
        %845 = vdwg.mxu0
        %847 = vrot.lane.b32.xlu0 %v737, 120
        %v848 = vpop.permute.xlu0 %847
        %850 = vrot.lane.b32.xlu0 %v738, 120
        %v851 = vpop.permute.xlu0 %850
        %v853 = vsel %vm740, %v848, 0
        %v856 = vsel %vm740, %v851, 0
        %858 = vmatprep.subr.bf16.mxu0 0
        %859 = vmatpush1.bf16.xpose.msra.mxu0 %v856
        %860 = vmatprep.subr.bf16.mxu0 0
        %861 = vmatpush1.bf16.xpose.msra.mxu0 0
        %862 = vmatprep.subr.bf16.mxu0 0
        %863 = vmatpush1.bf16.xpose.msra.mxu0 0
        %864 = vmatprep.subr.bf16.mxu0 0
        %865 = vmatpush1.bf16.xpose.msra.mxu0 0
        %866 = vmatprep.subr.bf16.mxu0 0
        %867 = vmatpush1.bf16.xpose.msra.mxu0 0
        %868 = vmatprep.subr.bf16.mxu0 0
        %869 = vmatpush1.bf16.xpose.msra.mxu0 0
        %870 = vmatprep.subr.bf16.mxu0 0
        %871 = vmatpush1.bf16.xpose.msra.mxu0 0
        %872 = vmatprep.subr.bf16.mxu0 0
        %873 = vmatpush1.bf16.xpose.msra.mxu0 0
        %874 = vmatprep.subr.bf16.mxu0 0
        %875 = vmatpush1.bf16.xpose.msra.mxu0 0
        %876 = vmatprep.subr.bf16.mxu0 0
        %877 = vmatpush1.bf16.xpose.msra.mxu0 0
        %878 = vmatprep.subr.bf16.mxu0 0
        %879 = vmatpush1.bf16.xpose.msra.mxu0 0
        %880 = vmatprep.subr.bf16.mxu0 0
        %881 = vmatpush1.bf16.xpose.msra.mxu0 0
        %882 = vmatprep.subr.bf16.mxu0 0
        %883 = vmatpush1.bf16.xpose.msra.mxu0 0
        %884 = vmatprep.subr.bf16.mxu0 0
        %885 = vmatpush1.bf16.xpose.msra.mxu0 0
        %886 = vmatprep.subr.bf16.mxu0 0
        %887 = vmatpush1.bf16.xpose.msra.mxu0 0
        %888 = vmatprep.subr.bf16.mxu0 0
        %889 = vmatpush1.bf16.xpose.msra.mxu0 0
        %890 = vmatprep.mubr.bf16.mxu0 0
        %891 = vmatmul.mubr.bf16.gmra.mrb[0].mxu0 %v853
        %v892 = vpop.f32.mrb[0].mxu0
        %v893 = vadd.f32 0.0, %v892
        %v894 = vpop.f32.mrb[0].mxu0
        %v895 = vpop.f32.mrb[0].mxu0
        %v896 = vpop.f32.mrb[0].mxu0
        %897 = vdwg.mxu0
        %v898 = vsel %vm740, %v893, -inf
        %899 = vmax.xlane.f32.xlu0 %v898
        %v900 = vpop.xlane.xlu0 %899
        %v901 = vsub.f32 %v893, %v900
        %v902 = vmul.f32 %v901, 1.442695
        %v903 = vpow.pop %v902
        %v904 = vsel %vm740, %v903, 0.0
        %905 = vadd.xlane.f32.xlu0 %v904
        %v906 = vpop.xlane.xlu0 %905
        %v907 = vrcp.pop %v906
        %v908 = vmul.f32 %v903, %v907
        %v909 = vpack.c.bf16 %v908, %v908
        %911 = vrot.lane.b32.xlu0 %v739, 120
        %v912 = vpop.permute.xlu0 %911
        %v914 = vsel %vm740, %v909, 0
        %v917 = vsel %vm802, %v912, 0
        %919 = vmatprep.subr.bf16.mxu0 0
        %920 = vmatpush1.bf16.msra.mxu0 %v917
        %921 = vmatprep.subr.bf16.mxu0 0
        %922 = vmatpush1.bf16.msra.mxu0 0
        %923 = vmatprep.subr.bf16.mxu0 0
        %924 = vmatpush1.bf16.msra.mxu0 0
        %925 = vmatprep.subr.bf16.mxu0 0
        %926 = vmatpush1.bf16.msra.mxu0 0
        %927 = vmatprep.subr.bf16.mxu0 0
        %928 = vmatpush1.bf16.msra.mxu0 0
        %929 = vmatprep.subr.bf16.mxu0 0
        %930 = vmatpush1.bf16.msra.mxu0 0
        %931 = vmatprep.subr.bf16.mxu0 0
        %932 = vmatpush1.bf16.msra.mxu0 0
        %933 = vmatprep.subr.bf16.mxu0 0
        %934 = vmatpush1.bf16.msra.mxu0 0
        %935 = vmatprep.subr.bf16.mxu0 0
        %936 = vmatpush1.bf16.msra.mxu0 0
        %937 = vmatprep.subr.bf16.mxu0 0
        %938 = vmatpush1.bf16.msra.mxu0 0
        %939 = vmatprep.subr.bf16.mxu0 0
        %940 = vmatpush1.bf16.msra.mxu0 0
        %941 = vmatprep.subr.bf16.mxu0 0
        %942 = vmatpush1.bf16.msra.mxu0 0
        %943 = vmatprep.subr.bf16.mxu0 0
        %944 = vmatpush1.bf16.msra.mxu0 0
        %945 = vmatprep.subr.bf16.mxu0 0
        %946 = vmatpush1.bf16.msra.mxu0 0
        %947 = vmatprep.subr.bf16.mxu0 0
        %948 = vmatpush1.bf16.msra.mxu0 0
        %949 = vmatprep.subr.bf16.mxu0 0
        %950 = vmatpush1.bf16.msra.mxu0 0
        %951 = vmatprep.mubr.bf16.mxu0 0
        %952 = vmatmul.mubr.bf16.gmra.mrb[0].mxu0 %v914
        %v953 = vpop.f32.mrb[0].mxu0
        %v954 = vadd.f32 0.0, %v953
        %v955 = vpop.f32.mrb[0].mxu0
        %v956 = vpop.f32.mrb[0].mxu0
        %v957 = vpop.f32.mrb[0].mxu0
        %958 = vdwg.mxu0
        %959 = vrot.lane.b32.xlu0 %v737, 112
        %v960 = vpop.permute.xlu0 %959
        %961 = vrot.lane.b32.xlu0 %v738, 112
        %v962 = vpop.permute.xlu0 %961
        %v964 = vsel %vm740, %v960, 0
        %v967 = vsel %vm740, %v962, 0
        %969 = vmatprep.subr.bf16.mxu0 0
        %970 = vmatpush1.bf16.xpose.msra.mxu0 %v967
        %971 = vmatprep.subr.bf16.mxu0 0
        %972 = vmatpush1.bf16.xpose.msra.mxu0 0
        %973 = vmatprep.subr.bf16.mxu0 0
        %974 = vmatpush1.bf16.xpose.msra.mxu0 0
        %975 = vmatprep.subr.bf16.mxu0 0
        %976 = vmatpush1.bf16.xpose.msra.mxu0 0
        %977 = vmatprep.subr.bf16.mxu0 0
        %978 = vmatpush1.bf16.xpose.msra.mxu0 0
        %979 = vmatprep.subr.bf16.mxu0 0
        %980 = vmatpush1.bf16.xpose.msra.mxu0 0
        %981 = vmatprep.subr.bf16.mxu0 0
        %982 = vmatpush1.bf16.xpose.msra.mxu0 0
        %983 = vmatprep.subr.bf16.mxu0 0
        %984 = vmatpush1.bf16.xpose.msra.mxu0 0
        %985 = vmatprep.subr.bf16.mxu0 0
        %986 = vmatpush1.bf16.xpose.msra.mxu0 0
        %987 = vmatprep.subr.bf16.mxu0 0
        %988 = vmatpush1.bf16.xpose.msra.mxu0 0
        %989 = vmatprep.subr.bf16.mxu0 0
        %990 = vmatpush1.bf16.xpose.msra.mxu0 0
        %991 = vmatprep.subr.bf16.mxu0 0
        %992 = vmatpush1.bf16.xpose.msra.mxu0 0
        %993 = vmatprep.subr.bf16.mxu0 0
        %994 = vmatpush1.bf16.xpose.msra.mxu0 0
        %995 = vmatprep.subr.bf16.mxu0 0
        %996 = vmatpush1.bf16.xpose.msra.mxu0 0
        %997 = vmatprep.subr.bf16.mxu0 0
        %998 = vmatpush1.bf16.xpose.msra.mxu0 0
        %999 = vmatprep.subr.bf16.mxu0 0
        %1000 = vmatpush1.bf16.xpose.msra.mxu0 0
        %1001 = vmatprep.mubr.bf16.mxu0 0
        %1002 = vmatmul.mubr.bf16.gmra.mrb[0].mxu0 %v964
        %v1003 = vpop.f32.mrb[0].mxu0
        %v1004 = vadd.f32 0.0, %v1003
        %v1005 = vpop.f32.mrb[0].mxu0
        %v1006 = vpop.f32.mrb[0].mxu0
        %v1007 = vpop.f32.mrb[0].mxu0
        %1008 = vdwg.mxu0
        %v1009 = vsel %vm740, %v1004, -inf
        %1010 = vmax.xlane.f32.xlu0 %v1009
        %v1011 = vpop.xlane.xlu0 %1010
        %v1012 = vsub.f32 %v1004, %v1011
        %v1013 = vmul.f32 %v1012, 1.442695
        %v1014 = vpow.pop %v1013
        %v1015 = vsel %vm740, %v1014, 0.0
        %1016 = vadd.xlane.f32.xlu0 %v1015
        %v1017 = vpop.xlane.xlu0 %1016
        %v1018 = vrcp.pop %v1017
        %v1019 = vmul.f32 %v1014, %v1018
        %v1020 = vpack.c.bf16 %v1019, %v1019
        %1021 = vrot.lane.b32.xlu0 %v739, 112
        %v1022 = vpop.permute.xlu0 %1021
        %v1024 = vsel %vm740, %v1020, 0
        %v1027 = vsel %vm802, %v1022, 0
        %1029 = vmatprep.subr.bf16.mxu0 0
        %1030 = vmatpush1.bf16.msra.mxu0 %v1027
        %1031 = vmatprep.subr.bf16.mxu0 0
        %1032 = vmatpush1.bf16.msra.mxu0 0
        %1033 = vmatprep.subr.bf16.mxu0 0
        %1034 = vmatpush1.bf16.msra.mxu0 0
        %1035 = vmatprep.subr.bf16.mxu0 0
        %1036 = vmatpush1.bf16.msra.mxu0 0
        %1037 = vmatprep.subr.bf16.mxu0 0
        %1038 = vmatpush1.bf16.msra.mxu0 0
        %1039 = vmatprep.subr.bf16.mxu0 0
        %1040 = vmatpush1.bf16.msra.mxu0 0
        %1041 = vmatprep.subr.bf16.mxu0 0
        %1042 = vmatpush1.bf16.msra.mxu0 0
        %1043 = vmatprep.subr.bf16.mxu0 0
        %1044 = vmatpush1.bf16.msra.mxu0 0
        %1045 = vmatprep.subr.bf16.mxu0 0
        %1046 = vmatpush1.bf16.msra.mxu0 0
        %1047 = vmatprep.subr.bf16.mxu0 0
        %1048 = vmatpush1.bf16.msra.mxu0 0
        %1049 = vmatprep.subr.bf16.mxu0 0
        %1050 = vmatpush1.bf16.msra.mxu0 0
        %1051 = vmatprep.subr.bf16.mxu0 0
        %1052 = vmatpush1.bf16.msra.mxu0 0
        %1053 = vmatprep.subr.bf16.mxu0 0
        %1054 = vmatpush1.bf16.msra.mxu0 0
        %1055 = vmatprep.subr.bf16.mxu0 0
        %1056 = vmatpush1.bf16.msra.mxu0 0
        %1057 = vmatprep.subr.bf16.mxu0 0
        %1058 = vmatpush1.bf16.msra.mxu0 0
        %1059 = vmatprep.subr.bf16.mxu0 0
        %1060 = vmatpush1.bf16.msra.mxu0 0
        %1061 = vmatprep.mubr.bf16.mxu0 0
        %1062 = vmatmul.mubr.bf16.gmra.mrb[0].mxu0 %v1024
        %v1063 = vpop.f32.mrb[0].mxu0
        %v1064 = vadd.f32 0.0, %v1063
        %v1065 = vpop.f32.mrb[0].mxu0
        %v1066 = vpop.f32.mrb[0].mxu0
        %v1067 = vpop.f32.mrb[0].mxu0
        %1068 = vdwg.mxu0
        %1069 = vrot.lane.b32.xlu0 %v737, 104
        %v1070 = vpop.permute.xlu0 %1069
        %1071 = vrot.lane.b32.xlu0 %v738, 104
        %v1072 = vpop.permute.xlu0 %1071
        %v1074 = vsel %vm740, %v1070, 0
        %v1077 = vsel %vm740, %v1072, 0
        %1079 = vmatprep.subr.bf16.mxu0 0
        %1080 = vmatpush1.bf16.xpose.msra.mxu0 %v1077
        %1081 = vmatprep.subr.bf16.mxu0 0
        %1082 = vmatpush1.bf16.xpose.msra.mxu0 0
        %1083 = vmatprep.subr.bf16.mxu0 0
        %1084 = vmatpush1.bf16.xpose.msra.mxu0 0
        %1085 = vmatprep.subr.bf16.mxu0 0
        %1086 = vmatpush1.bf16.xpose.msra.mxu0 0
        %1087 = vmatprep.subr.bf16.mxu0 0
        %1088 = vmatpush1.bf16.xpose.msra.mxu0 0
        %1089 = vmatprep.subr.bf16.mxu0 0
        %1090 = vmatpush1.bf16.xpose.msra.mxu0 0
        %1091 = vmatprep.subr.bf16.mxu0 0
        %1092 = vmatpush1.bf16.xpose.msra.mxu0 0
        %1093 = vmatprep.subr.bf16.mxu0 0
        %1094 = vmatpush1.bf16.xpose.msra.mxu0 0
        %1095 = vmatprep.subr.bf16.mxu0 0
        %1096 = vmatpush1.bf16.xpose.msra.mxu0 0
        %1097 = vmatprep.subr.bf16.mxu0 0
        %1098 = vmatpush1.bf16.xpose.msra.mxu0 0
        %1099 = vmatprep.subr.bf16.mxu0 0
        %1100 = vmatpush1.bf16.xpose.msra.mxu0 0
        %1101 = vmatprep.subr.bf16.mxu0 0
        %1102 = vmatpush1.bf16.xpose.msra.mxu0 0
        %1103 = vmatprep.subr.bf16.mxu0 0
        %1104 = vmatpush1.bf16.xpose.msra.mxu0 0
        %1105 = vmatprep.subr.bf16.mxu0 0
        %1106 = vmatpush1.bf16.xpose.msra.mxu0 0
        %1107 = vmatprep.subr.bf16.mxu0 0
        %1108 = vmatpush1.bf16.xpose.msra.mxu0 0
        %1109 = vmatprep.subr.bf16.mxu0 0
        %1110 = vmatpush1.bf16.xpose.msra.mxu0 0
        %1111 = vmatprep.mubr.bf16.mxu0 0
        %1112 = vmatmul.mubr.bf16.gmra.mrb[0].mxu0 %v1074
        %v1113 = vpop.f32.mrb[0].mxu0
        %v1114 = vadd.f32 0.0, %v1113
        %v1115 = vpop.f32.mrb[0].mxu0
        %v1116 = vpop.f32.mrb[0].mxu0
        %v1117 = vpop.f32.mrb[0].mxu0
        %1118 = vdwg.mxu0
        %v1119 = vsel %vm740, %v1114, -inf
        %1120 = vmax.xlane.f32.xlu0 %v1119
        %v1121 = vpop.xlane.xlu0 %1120
        %v1122 = vsub.f32 %v1114, %v1121
        %v1123 = vmul.f32 %v1122, 1.442695
        %v1124 = vpow.pop %v1123
        %v1125 = vsel %vm740, %v1124, 0.0
        %1126 = vadd.xlane.f32.xlu0 %v1125
        %v1127 = vpop.xlane.xlu0 %1126
        %v1128 = vrcp.pop %v1127
        %v1129 = vmul.f32 %v1124, %v1128
        %v1130 = vpack.c.bf16 %v1129, %v1129
        %1131 = vrot.lane.b32.xlu0 %v739, 104
        %v1132 = vpop.permute.xlu0 %1131
        %v1134 = vsel %vm740, %v1130, 0
        %v1137 = vsel %vm802, %v1132, 0
        %1139 = vmatprep.subr.bf16.mxu0 0
        %1140 = vmatpush1.bf16.msra.mxu0 %v1137
        %1141 = vmatprep.subr.bf16.mxu0 0
        %1142 = vmatpush1.bf16.msra.mxu0 0
        %1143 = vmatprep.subr.bf16.mxu0 0
        %1144 = vmatpush1.bf16.msra.mxu0 0
        %1145 = vmatprep.subr.bf16.mxu0 0
        %1146 = vmatpush1.bf16.msra.mxu0 0
        %1147 = vmatprep.subr.bf16.mxu0 0
        %1148 = vmatpush1.bf16.msra.mxu0 0
        %1149 = vmatprep.subr.bf16.mxu0 0
        %1150 = vmatpush1.bf16.msra.mxu0 0
        %1151 = vmatprep.subr.bf16.mxu0 0
        %1152 = vmatpush1.bf16.msra.mxu0 0
        %1153 = vmatprep.subr.bf16.mxu0 0
        %1154 = vmatpush1.bf16.msra.mxu0 0
        %1155 = vmatprep.subr.bf16.mxu0 0
        %1156 = vmatpush1.bf16.msra.mxu0 0
        %1157 = vmatprep.subr.bf16.mxu0 0
        %1158 = vmatpush1.bf16.msra.mxu0 0
        %1159 = vmatprep.subr.bf16.mxu0 0
        %1160 = vmatpush1.bf16.msra.mxu0 0
        %1161 = vmatprep.subr.bf16.mxu0 0
        %1162 = vmatpush1.bf16.msra.mxu0 0
        %1163 = vmatprep.subr.bf16.mxu0 0
        %1164 = vmatpush1.bf16.msra.mxu0 0
        %1165 = vmatprep.subr.bf16.mxu0 0
        %1166 = vmatpush1.bf16.msra.mxu0 0
        %1167 = vmatprep.subr.bf16.mxu0 0
        %1168 = vmatpush1.bf16.msra.mxu0 0
        %1169 = vmatprep.subr.bf16.mxu0 0
        %1170 = vmatpush1.bf16.msra.mxu0 0
        %1171 = vmatprep.mubr.bf16.mxu0 0
        %1172 = vmatmul.mubr.bf16.gmra.mrb[0].mxu0 %v1134
        %v1173 = vpop.f32.mrb[0].mxu0
        %v1174 = vadd.f32 0.0, %v1173
        %v1175 = vpop.f32.mrb[0].mxu0
        %v1176 = vpop.f32.mrb[0].mxu0
        %v1177 = vpop.f32.mrb[0].mxu0
        %1178 = vdwg.mxu0
        %1180 = vrot.lane.b32.xlu0 %v954, 8
        %v1181 = vpop.permute.xlu0 %1180
        %1184 = vrot.lane.b32.xlu0 %v1064, 16
        %v1185 = vpop.permute.xlu0 %1184
        %1188 = vrot.lane.b32.xlu0 %v1174, 24
        %v1189 = vpop.permute.xlu0 %1188
        %v1191 = vsel %vm740, %v841, %v1181
        %vm1192 = vcmask 130048
        %v1193 = vsel %vm1192, %v1191, %v1185
        %vm1194 = vcmask 195584
        %v1195 = vsel %vm1194, %v1193, %v1189
        %v1196 = vpack.c.bf16 %v1195, %v1195
        %v1198 = vlaneseq
        %v1199 = vshrl.u32 %v1198, 7
        %v1200 = vsub.s32 0, %v1199
        %v1201 = vrot.slane %v566, %v1200
        %v1207 = vunpack.c.l.b16 %v550
        %v1208 = vunpack.c.l.b16 %v551
        %v1209 = vunpack.c.l.b16 %v552
        %v1210 = vunpack.c.l.b16 %v553
        %v1211 = vpack.c.b16 %v1208, %v1207
        %v1212 = vpack.c.b16 %v1210, %v1209
        %v1216 = vsel %vm585, %v1196, 0
        %1218 = vmatprep.subr.bf16.mxu0 0
        %1219 = vmatpush1.bf16.msra.mxu0 %v1211
        %1220 = vmatprep.subr.bf16.mxu0 0
        %1221 = vmatpush1.bf16.msra.mxu0 %v1212
        %1222 = vmatprep.subr.bf16.mxu0 0
        %1223 = vmatpush1.bf16.msra.mxu0 0
        %1224 = vmatprep.subr.bf16.mxu0 0
        %1225 = vmatpush1.bf16.msra.mxu0 0
        %1226 = vmatprep.subr.bf16.mxu0 0
        %1227 = vmatpush1.bf16.msra.mxu0 0
        %1228 = vmatprep.subr.bf16.mxu0 0
        %1229 = vmatpush1.bf16.msra.mxu0 0
        %1230 = vmatprep.subr.bf16.mxu0 0
        %1231 = vmatpush1.bf16.msra.mxu0 0
        %1232 = vmatprep.subr.bf16.mxu0 0
        %1233 = vmatpush1.bf16.msra.mxu0 0
        %1234 = vmatprep.subr.bf16.mxu0 0
        %1235 = vmatpush1.bf16.msra.mxu0 0
        %1236 = vmatprep.subr.bf16.mxu0 0
        %1237 = vmatpush1.bf16.msra.mxu0 0
        %1238 = vmatprep.subr.bf16.mxu0 0
        %1239 = vmatpush1.bf16.msra.mxu0 0
        %1240 = vmatprep.subr.bf16.mxu0 0
        %1241 = vmatpush1.bf16.msra.mxu0 0
        %1242 = vmatprep.subr.bf16.mxu0 0
        %1243 = vmatpush1.bf16.msra.mxu0 0
        %1244 = vmatprep.subr.bf16.mxu0 0
        %1245 = vmatpush1.bf16.msra.mxu0 0
        %1246 = vmatprep.subr.bf16.mxu0 0
        %1247 = vmatpush1.bf16.msra.mxu0 0
        %1248 = vmatprep.subr.bf16.mxu0 0
        %1249 = vmatpush1.bf16.msra.mxu0 0
        %1250 = vmatprep.mubr.bf16.mxu0 0
        %1251 = vmatmul.mubr.bf16.gmra.mrb[0].mxu0 %v1216
        %v1252 = vpop.f32.mrb[0].mxu0
        %v1253 = vadd.f32 %v1201, %v1252
        %v1254 = vpop.f32.mrb[0].mxu0
        %v1255 = vpop.f32.mrb[0].mxu0
        %v1256 = vpop.f32.mrb[0].mxu0
        %1257 = vdwg.mxu0
        %v1258 = vadd.f32 %v536, %v1253
        %v1259 = vsel %vm585, %v1258, 0.0
        %1260 = vadd.xlane.f32.xlu0 %v1259
        %v1261 = vpop.xlane.xlu0 %1260
        %v1262 = vrcp.pop 32.0
        %v1263 = vmul.f32 %v1261, %v1262
        %v1264 = vsub.f32 %v1258, %v1263
        %v1265 = vmul.f32 %v1264, %v1264
        %v1266 = vsel %vm585, %v1265, 0.0
        %1267 = vadd.xlane.f32.xlu0 %v1266
        %v1268 = vpop.xlane.xlu0 %1267
        %v1269 = vmul.f32 %v1268, %v1262
        %v1270 = vadd.f32 %v1269, 1e-05
        %v1271 = vrsqrt.pop %v1270
        %v1272 = vmul.f32 %v1264, %v1271
        %v1274 = vlaneseq
        %v1275 = vshrl.u32 %v1274, 7
        %v1276 = vsub.s32 0, %v1275
        %v1277 = vrot.slane %v567, %v1276
        %v1279 = vmul.f32 %v1272, %v1277
        %v1281 = vlaneseq
        %v1282 = vshrl.u32 %v1281, 7
        %v1283 = vsub.s32 0, %v1282
        %v1284 = vrot.slane %v568, %v1283
        %v1286 = vadd.f32 %v1279, %v1284
        %v1287 = vpack.c.bf16 %v1286, %v1286
        %v1289 = vlaneseq
        %v1290 = vshrl.u32 %v1289, 7
        %v1291 = vsub.s32 0, %v1290
        %v1292 = vrot.slane %v569, %v1291
        %v1298 = vunpack.c.l.b16 %v554
        %v1299 = vunpack.c.l.b16 %v555
        %v1300 = vunpack.c.l.b16 %v556
        %v1301 = vunpack.c.l.b16 %v557
        %v1302 = vpack.c.b16 %v1299, %v1298
        %v1303 = vpack.c.b16 %v1301, %v1300
        %v1307 = vsel %vm585, %v1287, 0
        %1309 = vmatprep.subr.bf16.mxu0 0
        %1310 = vmatpush1.bf16.msra.mxu0 %v1302
        %1311 = vmatprep.subr.bf16.mxu0 0
        %1312 = vmatpush1.bf16.msra.mxu0 %v1303
        %1313 = vmatprep.subr.bf16.mxu0 0
        %1314 = vmatpush1.bf16.msra.mxu0 0
        %1315 = vmatprep.subr.bf16.mxu0 0
        %1316 = vmatpush1.bf16.msra.mxu0 0
        %1317 = vmatprep.subr.bf16.mxu0 0
        %1318 = vmatpush1.bf16.msra.mxu0 0
        %1319 = vmatprep.subr.bf16.mxu0 0
        %1320 = vmatpush1.bf16.msra.mxu0 0
        %1321 = vmatprep.subr.bf16.mxu0 0
        %1322 = vmatpush1.bf16.msra.mxu0 0
        %1323 = vmatprep.subr.bf16.mxu0 0
        %1324 = vmatpush1.bf16.msra.mxu0 0
        %1325 = vmatprep.subr.bf16.mxu0 0
        %1326 = vmatpush1.bf16.msra.mxu0 0
        %1327 = vmatprep.subr.bf16.mxu0 0
        %1328 = vmatpush1.bf16.msra.mxu0 0
        %1329 = vmatprep.subr.bf16.mxu0 0
        %1330 = vmatpush1.bf16.msra.mxu0 0
        %1331 = vmatprep.subr.bf16.mxu0 0
        %1332 = vmatpush1.bf16.msra.mxu0 0
        %1333 = vmatprep.subr.bf16.mxu0 0
        %1334 = vmatpush1.bf16.msra.mxu0 0
        %1335 = vmatprep.subr.bf16.mxu0 0
        %1336 = vmatpush1.bf16.msra.mxu0 0
        %1337 = vmatprep.subr.bf16.mxu0 0
        %1338 = vmatpush1.bf16.msra.mxu0 0
        %1339 = vmatprep.subr.bf16.mxu0 0
        %1340 = vmatpush1.bf16.msra.mxu0 0
        %1341 = vmatprep.mubr.bf16.mxu0 0
        %1342 = vmatmul.mubr.bf16.gmra.mrb[0].mxu0 %v1307
        %v1343 = vpop.f32.mrb[0].mxu0
        %v1344 = vadd.f32 %v1292, %v1343
        %v1345 = vpop.f32.mrb[0].mxu0
        %v1346 = vpop.f32.mrb[0].mxu0
        %v1347 = vpop.f32.mrb[0].mxu0
        %1348 = vdwg.mxu0
        %v1349 = vmul.f32 %v1344, 1.702
        %v1350 = vxor.u32 %v1349, 2147483648
        %v1351 = vmul.f32 %v1350, 1.442695
        %v1352 = vpow.pop %v1351
        %v1353 = vadd.f32 %v1352, 1.0
        %v1354 = vrcp.pop %v1353
        %v1355 = vmul.f32 1.0, %v1354
        %v1356 = vmul.f32 %v1344, %v1355
        %v1357 = vpack.c.bf16 %v1356, %v1356
        %v1359 = vlaneseq
        %v1360 = vshrl.u32 %v1359, 7
        %v1361 = vsub.s32 0, %v1360
        %v1362 = vrot.slane %v570, %v1361
        %v1372 = vunpack.c.l.b16 %v558
        %v1373 = vunpack.c.l.b16 %v559
        %v1374 = vunpack.c.l.b16 %v560
        %v1375 = vunpack.c.l.b16 %v561
        %v1376 = vunpack.c.l.b16 %v562
        %v1377 = vunpack.c.l.b16 %v563
        %v1378 = vunpack.c.l.b16 %v564
        %v1379 = vunpack.c.l.b16 %v565
        %v1380 = vpack.c.b16 %v1373, %v1372
        %v1381 = vpack.c.b16 %v1375, %v1374
        %v1382 = vpack.c.b16 %v1377, %v1376
        %v1383 = vpack.c.b16 %v1379, %v1378
        %vm1388 = vcmask 523264
        %v1390 = vsel %vm1388, %v1357, 0
        %1392 = vmatprep.subr.bf16.mxu0 0
        %1393 = vmatpush1.bf16.msra.mxu0 %v1380
        %1394 = vmatprep.subr.bf16.mxu0 0
        %1395 = vmatpush1.bf16.msra.mxu0 %v1381
        %1396 = vmatprep.subr.bf16.mxu0 0
        %1397 = vmatpush1.bf16.msra.mxu0 %v1382
        %1398 = vmatprep.subr.bf16.mxu0 0
        %1399 = vmatpush1.bf16.msra.mxu0 %v1383
        %1400 = vmatprep.subr.bf16.mxu0 0
        %1401 = vmatpush1.bf16.msra.mxu0 0
        %1402 = vmatprep.subr.bf16.mxu0 0
        %1403 = vmatpush1.bf16.msra.mxu0 0
        %1404 = vmatprep.subr.bf16.mxu0 0
        %1405 = vmatpush1.bf16.msra.mxu0 0
        %1406 = vmatprep.subr.bf16.mxu0 0
        %1407 = vmatpush1.bf16.msra.mxu0 0
        %1408 = vmatprep.subr.bf16.mxu0 0
        %1409 = vmatpush1.bf16.msra.mxu0 0
        %1410 = vmatprep.subr.bf16.mxu0 0
        %1411 = vmatpush1.bf16.msra.mxu0 0
        %1412 = vmatprep.subr.bf16.mxu0 0
        %1413 = vmatpush1.bf16.msra.mxu0 0
        %1414 = vmatprep.subr.bf16.mxu0 0
        %1415 = vmatpush1.bf16.msra.mxu0 0
        %1416 = vmatprep.subr.bf16.mxu0 0
        %1417 = vmatpush1.bf16.msra.mxu0 0
        %1418 = vmatprep.subr.bf16.mxu0 0
        %1419 = vmatpush1.bf16.msra.mxu0 0
        %1420 = vmatprep.subr.bf16.mxu0 0
        %1421 = vmatpush1.bf16.msra.mxu0 0
        %1422 = vmatprep.subr.bf16.mxu0 0
        %1423 = vmatpush1.bf16.msra.mxu0 0
        %1424 = vmatprep.mubr.bf16.mxu0 0
        %1425 = vmatmul.mubr.bf16.gmra.mrb[0].mxu0 %v1390
        %v1426 = vpop.f32.mrb[0].mxu0
        %v1427 = vadd.f32 %v1362, %v1426
        %v1428 = vpop.f32.mrb[0].mxu0
        %v1429 = vpop.f32.mrb[0].mxu0
        %v1430 = vpop.f32.mrb[0].mxu0
        %1431 = vdwg.mxu0
        %v1432 = vadd.f32 %v1258, %v1427
        %1433 = vst.msk [vmem:[%s523] sm:$0xff] %vm585, %v1432
        %s1434 = sand.u32 %s337, 1
        %s1435 = scalar_lea.sflag [#allocation4], %s1434
        %s1436 = sand.u32 %s337, 1
        %s1437 = smul.addr %s1436, 8
        %s1438 = scalar_lea.vmem [#allocation10], %s1437
        // Predicated region
        $region89: #{tpu_custom_call.1} parent=71 // pred_check
          %p1439 = pneg %p347
        $region90: #{tpu_custom_call.1} parent=71 // pred_check_branch
          %1441 = sbr.rel (%p1439) target = $region92
        $region91: #{tpu_custom_call.1} parent=71 // pred_region
          %s1443 = ssub.s32 128, 128
          %1444 = vsyncadd %s1435, %s1443
          %s1445 = sadd.s32 %s35, %s34
          %s1446 = smul.addr %s1445, 128
          %s1447 = scalar_lea.hbm %s13, %s1446
          %s1449 = sshll.u32 %s1438, 4
          %s1450 = int_to_ptr.vmem [resolvable:$true] %s1449
          %1452 = dma.vmem_to_hbm [thread:$0]  %s1450, 128, %s1447, %s1435
        $region92: #{tpu_custom_call.1} parent=71 // pred_fallthru
          _
      $region72: #{tpu_custom_call.1} parent=5 // pred_fallthru
        _
      %p1453 = scmp.le.s32.totalorder 2, %s25
      // Predicated region
      $region93: #{tpu_custom_call.1} parent=5 // pred_check
        %p1454 = pneg %p1453
      $region94: #{tpu_custom_call.1} parent=5 // pred_check_branch
        %1456 = sbr.rel (%p1454) target = $region96
      $region95: #{tpu_custom_call.1} parent=5 // pred_region
        %s1457 = ssub.s32 %s25, 2
        // Predicated region
        $region97: #{tpu_custom_call.1} parent=95 // pred_check
          %p1458 = pneg %p353
        $region98: #{tpu_custom_call.1} parent=95 // pred_check_branch
          %1460 = sbr.rel (%p1458) target = $region100
        $region99: #{tpu_custom_call.1} parent=95 // pred_region
          %s1461 = sand.u32 %s338, 1
          %s1462 = scalar_lea.sflag [#allocation4], %s1461
          %s1463 = sand.u32 %s338, 1
          %s1464 = smul.addr %s1463, 8
          %s1465 = scalar_lea.vmem [#allocation10], %s1464
          %1466 = dma.done %s1462, 128
        $region100: #{tpu_custom_call.1} parent=95 // pred_fallthru
          _
      $region96: #{tpu_custom_call.1} parent=5 // pred_fallthru
        _
    $region6: #{tpu_custom_call.1} parent=1 // loop_footer
      %s29 = sadd.s32 1, %s25
    $region7: #{tpu_custom_call.1} parent=1 // loop_footer_branch
      %24 = sbr.rel target = $region3
    $region8: #{tpu_custom_call.1} parent=1 // loop_exit
      _
    %1467 = vsyncpa [#allocation3], 1
    %s1468 = scalar_lea.sflag [#allocation3], 1
    %1469 = vsyncpa %s1468, 1
    %1470 = vsyncpa [#allocation6], 1
    %1471 = vsyncpa [#allocation9], 1
    %1472 = vsyncpa [#allocation4], 1
    %s1473 = scalar_lea.sflag [#allocation4], 1
    %1474 = vsyncpa %s1473, 1

</llo_original>
